<compile_context>
chip_gen: v7x
topology: tpu7x:2x2x1
jax: 0.10.0
libtpu: 0.0.40
codegen_flags: <defaults>
</compile_context>

<pallas_src>
import functools
import math
import numpy as np
import jax
import jax.numpy as jnp
from jax.experimental import pallas as pl
from jax.experimental.pallas import tpu as pltpu

EPS = 1e-6


# --------------------------------------------------------------------------
# Norm helpers (alpha * (x - mean) / (unbiased_std + eps) + bias)
# --------------------------------------------------------------------------
def _norm_in_kernel(x, alpha, bias):
    m = jnp.mean(x, axis=-1, keepdims=True)
    xc = x - m
    var = jnp.sum(xc * xc, axis=-1, keepdims=True) * (1.0 / (x.shape[-1] - 1))
    inv = pl.reciprocal(jnp.sqrt(var) + EPS, approx=True)   # EUP, not VPU divide
    return alpha * xc * inv + bias


def _norm_ref(x, alpha, bias):
    m = jnp.mean(x, axis=-1, keepdims=True)
    xc = x - m
    var = jnp.sum(xc * xc, axis=-1, keepdims=True) / (x.shape[-1] - 1)
    return alpha * xc / (jnp.sqrt(var) + EPS) + bias


# --------------------------------------------------------------------------
# Kernel: one grid step = TB batch rows, all Ns*Nt tokens of each.
#   direction=0: sentences are (b, t) pairs, sequence over stations Ns.
#   direction=1: sentences are (b, s) pairs, sequence over time Nt.
# --------------------------------------------------------------------------
def selfattn_block_kernel(x_ref, e_ref,
                          w1x_ref, w1e_ref, w2_ref, wqkv_ref, wo_ref,
                          f1_ref, f2_ref,
                          bqkv_ref, v2d_ref, vd_ref,
                          o_ref, *scratch, direction, compute_dtype):
    f32 = jnp.float32
    cd = compute_dtype
    TB, Ns, Nt, d = x_ref.shape
    M = TB * Ns * Nt

    # ---- bring tokens into sentence-major order -------------------------
    if direction == 0:
        # In-VMEM relayout (b,s,t,:) -> (b,t,s,:) using strided ref reads and
        # whole-tile slice stores into scratch (robust Mosaic lowering).
        xt_scr, et_scr = scratch                    # (TB, Nt, Ns, d) each
        for t in range(Nt):
            xt_scr[:, t, :, :] = x_ref[:, :, t, :]
            et_scr[:, t, :, :] = e_ref[:, :, t, :]
        x = xt_scr[...].reshape(M, d).astype(cd)    # rows ordered (b, t, s)
        e = et_scr[...].reshape(M, d).astype(cd)
        G, S = TB * Nt, Ns
    else:
        x = x_ref[...].reshape(M, d).astype(cd)     # rows ordered (b, s, t)
        e = e_ref[...].reshape(M, d).astype(cd)
        G, S = TB * Ns, Nt

    # ---- model_emb: Linear(2d->2d) (split x/e halves -> no concat) -> ReLU
    #                 -> Linear(2d->d) -> ReLU  (dropouts are identities)
    h = jnp.dot(x, w1x_ref[...], preferred_element_type=f32)
    h = h + jnp.dot(e, w1e_ref[...], preferred_element_type=f32)
    h = jnp.maximum(h + v2d_ref[0:1, :], 0.0)                          # (M, 2d)
    x0 = jnp.maximum(
        jnp.dot(h.astype(cd), w2_ref[...], preferred_element_type=f32)
        + vd_ref[0:1, :], 0.0)                                         # (M, d)

    # ---- single-head self-attention, QKV packed, 1/sqrt(d) folded into Wq
    qkv = jnp.dot(x0.astype(cd), wqkv_ref[...],
                  preferred_element_type=f32) + bqkv_ref[...]          # (M, 3d)
    q = qkv[:, 0:d].reshape(G, S, d)
    k = qkv[:, d:2 * d].reshape(G, S, d)
    v = qkv[:, 2 * d:3 * d].reshape(G, S, d)

    s = jnp.einsum('gsd,gud->gsu', q.astype(cd), k.astype(cd),
                   preferred_element_type=f32)                         # (G,S,S)
    s = s - jnp.max(s, axis=-1, keepdims=True)
    p = jnp.exp(s)
    p = p * pl.reciprocal(jnp.sum(p, axis=-1, keepdims=True), approx=True)
    ctx = jnp.einsum('gsu,gud->gsd', p.astype(cd), v.astype(cd),
                     preferred_element_type=f32).reshape(M, d)
    attn = jnp.dot(ctx.astype(cd), wo_ref[...],
                   preferred_element_type=f32) + vd_ref[1:2, :]

    # ---- residual + norm_1 ----------------------------------------------
    x1 = _norm_in_kernel(x0 + attn, vd_ref[2:3, :], vd_ref[3:4, :])

    # ---- pos_ffn: Linear(d->2d)->ReLU->Linear(2d->d)->ReLU, resid, norm_2
    f = jnp.maximum(
        jnp.dot(x1.astype(cd), f1_ref[...], preferred_element_type=f32)
        + v2d_ref[1:2, :], 0.0)
    f = jnp.maximum(
        jnp.dot(f.astype(cd), f2_ref[...], preferred_element_type=f32)
        + vd_ref[4:5, :], 0.0)
    x2 = _norm_in_kernel(x1 + f, vd_ref[5:6, :], vd_ref[6:7, :])

    # ---- write back in the module's (b, Ns, Nt, d) layout ----------------
    if direction == 0:
        x2_4d = x2.reshape(TB, Nt, Ns, d)
        for t in range(Nt):
            o_ref[:, :, t, :] = x2_4d[:, t, :, :].astype(o_ref.dtype)
    else:
        o_ref[...] = x2.reshape(TB, Ns, Nt, d).astype(o_ref.dtype)


# --------------------------------------------------------------------------
# Parameters
# --------------------------------------------------------------------------
def init_params(key, d_h):
    """Deterministic synthetic parameters; matrices stored as (in, out)."""
    ks = jax.random.split(key, 12)
    s = 0.1
    f32 = jnp.float32
    d, d2 = d_h, 2 * d_h
    return {
        "W1": jax.random.normal(ks[0], (d2, d2), f32) * s,   # model_emb L1
        "b1": jnp.zeros((d2,), f32),
        "W2": jax.random.normal(ks[1], (d2, d), f32) * s,    # model_emb L2
        "b2": jnp.zeros((d,), f32),
        "Wq": jax.random.normal(ks[2], (d, d), f32) * s,
        "bq": jax.random.normal(ks[3], (d,), f32) * s,
        "Wk": jax.random.normal(ks[4], (d, d), f32) * s,
        "bk": jax.random.normal(ks[5], (d,), f32) * s,
        "Wv": jax.random.normal(ks[6], (d, d), f32) * s,
        "bv": jax.random.normal(ks[7], (d,), f32) * s,
        "Wo": jax.random.normal(ks[8], (d, d), f32) * s,     # attn out_proj
        "bo": jnp.zeros((d,), f32),
        "A1": jnp.ones((d,), f32), "Bi1": jnp.zeros((d,), f32),   # norm_1
        "F1": jax.random.normal(ks[9], (d, d2), f32) * s,    # pos_ffn L1
        "fb1": jnp.zeros((d2,), f32),
        "F2": jax.random.normal(ks[10], (d2, d), f32) * s,   # pos_ffn L2
        "fb2": jnp.zeros((d,), f32),
        "A2": jnp.ones((d,), f32), "Bi2": jnp.zeros((d,), f32),   # norm_2
    }


def _pack_params(p, compute_dtype):
    """Pack 20 logical params into 7 weight matrices + 3 small vector packs.
    The attention scale 1/sqrt(d) is folded into Wq / bq here."""
    d = p["Wo"].shape[0]
    wd = compute_dtype
    scale = 1.0 / math.sqrt(d)
    weights = [
        p["W1"][:d, :].astype(wd),                                   # W1x (d,2d)
        p["W1"][d:, :].astype(wd),                                   # W1e (d,2d)
        p["W2"].astype(wd),                                          # (2d, d)
        jnp.concatenate([p["Wq"] * scale, p["Wk"], p["Wv"]],
                        axis=1).astype(wd),                          # Wqkv (d,3d)
        p["Wo"].astype(wd),                                          # (d, d)
        p["F1"].astype(wd),                                          # (d, 2d)
        p["F2"].astype(wd),                                          # (2d, d)
    ]
    bqkv = jnp.concatenate([p["bq"] * scale, p["bk"], p["bv"]])[None, :]  # (1,3d)
    v2d = jnp.stack([p["b1"], p["fb1"]], axis=0)                     # (2, 2d) f32
    vd = jnp.stack([p["b2"], p["bo"], p["A1"], p["Bi1"],
                    p["fb2"], p["A2"], p["Bi2"]], axis=0)            # (7, d) f32
    return weights + [bqkv, v2d, vd]


def _pick_block_batch(bs, Ns, Nt, d_h, budget_bytes=256 << 10):
    """Largest divisor of bs whose (TB, Ns, Nt, d_h) f32 block stays under a
    conservative per-buffer budget (leaves plenty of headroom for the
    double-buffered in/out blocks + f32 intermediates under the default
    scoped-VMEM limit on v5e/v6e/v7x)."""
    per_b = Ns * Nt * d_h * 4
    tb = max(1, min(bs, budget_bytes // max(per_b, 1)))
    while bs % tb:
        tb -= 1
    # Keep >= 2 grid steps when possible: enables DMA/compute overlap and
    # lets v7x megacore split the (parallel) batch axis across TensorCores.
    if tb == bs and bs > 1 and bs % 2 == 0:
        tb //= 2
    return tb


# --------------------------------------------------------------------------
# Wrapper
# --------------------------------------------------------------------------
def selfattn_block(x, e, params, Ns, Nt, d_h, direction=0, heads=1,
                   compute_dtype=jnp.bfloat16):
    assert heads == 1, "PyTorch module is only shape-consistent for heads == 1"
    if direction not in (0, 1):
        raise ValueError("direction must be 0 or 1")
    bs = x.shape[0]
    assert x.shape == (bs, Ns, Nt, d_h) and e.shape == x.shape
    packed = _pack_params(params, compute_dtype)

    tb = _pick_block_batch(bs, Ns, Nt, d_h)
    grid = (bs // tb,)

    # Full-extent minor dims -> contiguous, unmasked HBM<->VMEM DMAs.
    data_spec = pl.BlockSpec((tb, Ns, Nt, d_h), lambda i: (i, 0, 0, 0))
    param_specs = [pl.BlockSpec(w.shape, lambda i, n=w.ndim: (0,) * n)
                   for w in packed]

    scratch_shapes = []
    if direction == 0:
        # In-VMEM relayout buffers for the (b,s,t)->(b,t,s) token regrouping.
        scratch_shapes = [pltpu.VMEM((tb, Nt, Ns, d_h), x.dtype),
                          pltpu.VMEM((tb, Nt, Ns, d_h), e.dtype)]

    kernel = functools.partial(selfattn_block_kernel,
                               direction=direction,
                               compute_dtype=compute_dtype)
    out = pl.pallas_call(
        kernel,
        out_shape=jax.ShapeDtypeStruct((bs, Ns, Nt, d_h), jnp.float32),
        grid=grid,
        in_specs=[data_spec, data_spec] + param_specs,
        out_specs=data_spec,
        scratch_shapes=scratch_shapes,
        compiler_params=pltpu.CompilerParams(
            dimension_semantics=("parallel",)),
    )(x, e, *packed)
    return out


# --------------------------------------------------------------------------
# Pure-JAX reference of the PyTorch forward (eval mode, heads=1, f32)
# --------------------------------------------------------------------------
def selfattn_block_reference(x, e, p, Ns, Nt, d_h, direction=0):
    bs = x.shape[0]
    d = d_h
    xe = jnp.concatenate([x, e], axis=-1)
    h = jnp.maximum(xe @ p["W1"] + p["b1"], 0.0)
    x0 = jnp.maximum(h @ p["W2"] + p["b2"], 0.0)           # (bs, Ns, Nt, d)
    if direction == 0:
        x0 = x0.transpose(0, 2, 1, 3).reshape(bs * Nt, Ns, d)
    else:
        x0 = x0.reshape(bs * Ns, Nt, d)
    q = x0 @ p["Wq"] + p["bq"]
    k = x0 @ p["Wk"] + p["bk"]
    v = x0 @ p["Wv"] + p["bv"]
    s = jnp.einsum('bsd,bud->bsu', q / math.sqrt(d), k)
    pr = jax.nn.softmax(s, axis=-1)
    attn = jnp.einsum('bsu,bud->bsd', pr, v) @ p["Wo"] + p["bo"]
    x1 = _norm_ref(x0 + attn, p["A1"], p["Bi1"])
    f = jnp.maximum(x1 @ p["F1"] + p["fb1"], 0.0)
    f = jnp.maximum(f @ p["F2"] + p["fb2"], 0.0)
    x2 = _norm_ref(x1 + f, p["A2"], p["Bi2"])
    if direction == 0:
        return x2.reshape(bs, Nt, Ns, d).transpose(0, 2, 1, 3)
    return x2.reshape(bs, Ns, Nt, d)


if __name__ == "__main__":
    bs, Ns, Nt, d_h, heads = 2, 8, 8, 32, 1     # heads must be 1 (see note)
    key = jax.random.PRNGKey(0)
    kx, ke, kp = jax.random.split(key, 3)
    x = jax.random.normal(kx, (bs, Ns, Nt, d_h), dtype=jnp.float32)
    e = jax.random.normal(ke, (bs, Ns, Nt, d_h), dtype=jnp.float32)
    params = init_params(kp, d_h)

    for direction in (0, 1):
        ref = selfattn_block_reference(x, e, params, Ns, Nt, d_h, direction)

        # f32 matmuls (v5e-friendly) — tight check against the reference.
        out_f32 = jax.block_until_ready(
            selfattn_block(x, e, params, Ns, Nt, d_h, direction,
                           compute_dtype=jnp.float32))
        assert out_f32.shape == (bs, Ns, Nt, d_h * heads)
        np.testing.assert_allclose(np.asarray(out_f32), np.asarray(ref),
                                   rtol=5e-3, atol=5e-3)

        # bf16 matmul operands, f32 accumulation — recommended on v6e/v7x.
        out_bf16 = jax.block_until_ready(
            selfattn_block(x, e, params, Ns, Nt, d_h, direction,
                           compute_dtype=jnp.bfloat16))
        np.testing.assert_allclose(np.asarray(out_bf16), np.asarray(ref),
                                   rtol=3e-2, atol=3e-2)

    print("KERNEL_OK")
</pallas_src>

<mosaic_0001>
module attributes {stable_mosaic.version = 11 : i64} {
  func.func @selfattn_block_kernel(%arg0: i32, %arg1: memref<1x8x8x32xf32, #tpu.memory_space<vmem>>, %arg2: memref<1x8x8x32xf32, #tpu.memory_space<vmem>>, %arg3: memref<32x64xf32, #tpu.memory_space<vmem>>, %arg4: memref<32x64xf32, #tpu.memory_space<vmem>>, %arg5: memref<64x32xf32, #tpu.memory_space<vmem>>, %arg6: memref<32x96xf32, #tpu.memory_space<vmem>>, %arg7: memref<32x32xf32, #tpu.memory_space<vmem>>, %arg8: memref<32x64xf32, #tpu.memory_space<vmem>>, %arg9: memref<64x32xf32, #tpu.memory_space<vmem>>, %arg10: memref<1x96xf32, #tpu.memory_space<vmem>>, %arg11: memref<2x64xf32, #tpu.memory_space<vmem>>, %arg12: memref<7x32xf32, #tpu.memory_space<vmem>>, %arg13: memref<1x8x8x32xf32, #tpu.memory_space<vmem>>, %arg14: memref<1x8x8x32xf32, #tpu.memory_space<vmem>>, %arg15: memref<1x8x8x32xf32, #tpu.memory_space<vmem>>) attributes {dimension_semantics = [#tpu.dimension_semantics<parallel>], iteration_bounds = array<i64: 2>, scalar_prefetch = 0 : i64, scratch_operands = 2 : i64, tpu.core_type = #tpu.core_type<tc>, window_params = [{transform_indices = @transform_0, window_bounds = array<i64: 1, 8, 8, 32>}, {transform_indices = @transform_1, window_bounds = array<i64: 1, 8, 8, 32>}, {pipeline_mode = #tpu.pipeline_mode<synchronous>, transform_indices = @transform_2, window_bounds = array<i64: 32, 64>}, {pipeline_mode = #tpu.pipeline_mode<synchronous>, transform_indices = @transform_3, window_bounds = array<i64: 32, 64>}, {pipeline_mode = #tpu.pipeline_mode<synchronous>, transform_indices = @transform_4, window_bounds = array<i64: 64, 32>}, {pipeline_mode = #tpu.pipeline_mode<synchronous>, transform_indices = @transform_5, window_bounds = array<i64: 32, 96>}, {pipeline_mode = #tpu.pipeline_mode<synchronous>, transform_indices = @transform_6, window_bounds = array<i64: 32, 32>}, {pipeline_mode = #tpu.pipeline_mode<synchronous>, transform_indices = @transform_7, window_bounds = array<i64: 32, 64>}, {pipeline_mode = #tpu.pipeline_mode<synchronous>, transform_indices = @transform_8, window_bounds = array<i64: 64, 32>}, {pipeline_mode = #tpu.pipeline_mode<synchronous>, transform_indices = @transform_9, window_bounds = array<i64: 1, 96>}, {pipeline_mode = #tpu.pipeline_mode<synchronous>, transform_indices = @transform_10, window_bounds = array<i64: 2, 64>}, {pipeline_mode = #tpu.pipeline_mode<synchronous>, transform_indices = @transform_11, window_bounds = array<i64: 7, 32>}, {transform_indices = @transform_12, window_bounds = array<i64: 1, 8, 8, 32>}]} {
    %c0 = arith.constant 0 : index
    %c0_0 = arith.constant 0 : index
    %c0_1 = arith.constant 0 : index
    %c0_2 = arith.constant 0 : index
    %0 = vector.load %arg1[%c0, %c0_0, %c0_1, %c0_2] : memref<1x8x8x32xf32, #tpu.memory_space<vmem>>, vector<1x8x1x32xf32>
    %1 = vector.shape_cast %0 : vector<1x8x1x32xf32> to vector<1x8x32xf32>
    %c0_3 = arith.constant 0 : index
    %c0_4 = arith.constant 0 : index
    %c0_5 = arith.constant 0 : index
    %c0_6 = arith.constant 0 : index
    %2 = vector.load %arg14[%c0_3, %c0_4, %c0_5, %c0_6] : memref<1x8x8x32xf32, #tpu.memory_space<vmem>>, vector<1x1x8x32xf32>
    %3 = vector.shape_cast %2 : vector<1x1x8x32xf32> to vector<1x8x32xf32>
    %4 = vector.shape_cast %1 : vector<1x8x32xf32> to vector<1x1x8x32xf32>
    tpu.vector_store %arg14[%c0_3, %c0_4, %c0_5, %c0_6], %4 {strides = array<i32>} : memref<1x8x8x32xf32, #tpu.memory_space<vmem>>, vector<1x1x8x32xf32>,
    %c0_7 = arith.constant 0 : index
    %c0_8 = arith.constant 0 : index
    %c0_9 = arith.constant 0 : index
    %c0_10 = arith.constant 0 : index
    %5 = vector.load %arg2[%c0_7, %c0_8, %c0_9, %c0_10] : memref<1x8x8x32xf32, #tpu.memory_space<vmem>>, vector<1x8x1x32xf32>
    %6 = vector.shape_cast %5 : vector<1x8x1x32xf32> to vector<1x8x32xf32>
    %c0_11 = arith.constant 0 : index
    %c0_12 = arith.constant 0 : index
    %c0_13 = arith.constant 0 : index
    %c0_14 = arith.constant 0 : index
    %7 = vector.load %arg15[%c0_11, %c0_12, %c0_13, %c0_14] : memref<1x8x8x32xf32, #tpu.memory_space<vmem>>, vector<1x1x8x32xf32>
    %8 = vector.shape_cast %7 : vector<1x1x8x32xf32> to vector<1x8x32xf32>
    %9 = vector.shape_cast %6 : vector<1x8x32xf32> to vector<1x1x8x32xf32>
    tpu.vector_store %arg15[%c0_11, %c0_12, %c0_13, %c0_14], %9 {strides = array<i32>} : memref<1x8x8x32xf32, #tpu.memory_space<vmem>>, vector<1x1x8x32xf32>,
    %c0_15 = arith.constant 0 : index
    %c0_16 = arith.constant 0 : index
    %c1 = arith.constant 1 : index
    %c0_17 = arith.constant 0 : index
    %10 = vector.load %arg1[%c0_15, %c0_16, %c1, %c0_17] : memref<1x8x8x32xf32, #tpu.memory_space<vmem>>, vector<1x8x1x32xf32>
    %11 = vector.shape_cast %10 : vector<1x8x1x32xf32> to vector<1x8x32xf32>
    %c0_18 = arith.constant 0 : index
    %c1_19 = arith.constant 1 : index
    %c0_20 = arith.constant 0 : index
    %c0_21 = arith.constant 0 : index
    %12 = vector.load %arg14[%c0_18, %c1_19, %c0_20, %c0_21] : memref<1x8x8x32xf32, #tpu.memory_space<vmem>>, vector<1x1x8x32xf32>
    %13 = vector.shape_cast %12 : vector<1x1x8x32xf32> to vector<1x8x32xf32>
    %14 = vector.shape_cast %11 : vector<1x8x32xf32> to vector<1x1x8x32xf32>
    tpu.vector_store %arg14[%c0_18, %c1_19, %c0_20, %c0_21], %14 {strides = array<i32>} : memref<1x8x8x32xf32, #tpu.memory_space<vmem>>, vector<1x1x8x32xf32>,
    %c0_22 = arith.constant 0 : index
    %c0_23 = arith.constant 0 : index
    %c1_24 = arith.constant 1 : index
    %c0_25 = arith.constant 0 : index
    %15 = vector.load %arg2[%c0_22, %c0_23, %c1_24, %c0_25] : memref<1x8x8x32xf32, #tpu.memory_space<vmem>>, vector<1x8x1x32xf32>
    %16 = vector.shape_cast %15 : vector<1x8x1x32xf32> to vector<1x8x32xf32>
    %c0_26 = arith.constant 0 : index
    %c1_27 = arith.constant 1 : index
    %c0_28 = arith.constant 0 : index
    %c0_29 = arith.constant 0 : index
    %17 = vector.load %arg15[%c0_26, %c1_27, %c0_28, %c0_29] : memref<1x8x8x32xf32, #tpu.memory_space<vmem>>, vector<1x1x8x32xf32>
    %18 = vector.shape_cast %17 : vector<1x1x8x32xf32> to vector<1x8x32xf32>
    %19 = vector.shape_cast %16 : vector<1x8x32xf32> to vector<1x1x8x32xf32>
    tpu.vector_store %arg15[%c0_26, %c1_27, %c0_28, %c0_29], %19 {strides = array<i32>} : memref<1x8x8x32xf32, #tpu.memory_space<vmem>>, vector<1x1x8x32xf32>,
    %c0_30 = arith.constant 0 : index
    %c0_31 = arith.constant 0 : index
    %c2 = arith.constant 2 : index
    %c0_32 = arith.constant 0 : index
    %20 = vector.load %arg1[%c0_30, %c0_31, %c2, %c0_32] : memref<1x8x8x32xf32, #tpu.memory_space<vmem>>, vector<1x8x1x32xf32>
    %21 = vector.shape_cast %20 : vector<1x8x1x32xf32> to vector<1x8x32xf32>
    %c0_33 = arith.constant 0 : index
    %c2_34 = arith.constant 2 : index
    %c0_35 = arith.constant 0 : index
    %c0_36 = arith.constant 0 : index
    %22 = vector.load %arg14[%c0_33, %c2_34, %c0_35, %c0_36] : memref<1x8x8x32xf32, #tpu.memory_space<vmem>>, vector<1x1x8x32xf32>
    %23 = vector.shape_cast %22 : vector<1x1x8x32xf32> to vector<1x8x32xf32>
    %24 = vector.shape_cast %21 : vector<1x8x32xf32> to vector<1x1x8x32xf32>
    tpu.vector_store %arg14[%c0_33, %c2_34, %c0_35, %c0_36], %24 {strides = array<i32>} : memref<1x8x8x32xf32, #tpu.memory_space<vmem>>, vector<1x1x8x32xf32>,
    %c0_37 = arith.constant 0 : index
    %c0_38 = arith.constant 0 : index
    %c2_39 = arith.constant 2 : index
    %c0_40 = arith.constant 0 : index
    %25 = vector.load %arg2[%c0_37, %c0_38, %c2_39, %c0_40] : memref<1x8x8x32xf32, #tpu.memory_space<vmem>>, vector<1x8x1x32xf32>
    %26 = vector.shape_cast %25 : vector<1x8x1x32xf32> to vector<1x8x32xf32>
    %c0_41 = arith.constant 0 : index
    %c2_42 = arith.constant 2 : index
    %c0_43 = arith.constant 0 : index
    %c0_44 = arith.constant 0 : index
    %27 = vector.load %arg15[%c0_41, %c2_42, %c0_43, %c0_44] : memref<1x8x8x32xf32, #tpu.memory_space<vmem>>, vector<1x1x8x32xf32>
    %28 = vector.shape_cast %27 : vector<1x1x8x32xf32> to vector<1x8x32xf32>
    %29 = vector.shape_cast %26 : vector<1x8x32xf32> to vector<1x1x8x32xf32>
    tpu.vector_store %arg15[%c0_41, %c2_42, %c0_43, %c0_44], %29 {strides = array<i32>} : memref<1x8x8x32xf32, #tpu.memory_space<vmem>>, vector<1x1x8x32xf32>,
    %c0_45 = arith.constant 0 : index
    %c0_46 = arith.constant 0 : index
    %c3 = arith.constant 3 : index
    %c0_47 = arith.constant 0 : index
    %30 = vector.load %arg1[%c0_45, %c0_46, %c3, %c0_47] : memref<1x8x8x32xf32, #tpu.memory_space<vmem>>, vector<1x8x1x32xf32>
    %31 = vector.shape_cast %30 : vector<1x8x1x32xf32> to vector<1x8x32xf32>
    %c0_48 = arith.constant 0 : index
    %c3_49 = arith.constant 3 : index
    %c0_50 = arith.constant 0 : index
    %c0_51 = arith.constant 0 : index
    %32 = vector.load %arg14[%c0_48, %c3_49, %c0_50, %c0_51] : memref<1x8x8x32xf32, #tpu.memory_space<vmem>>, vector<1x1x8x32xf32>
    %33 = vector.shape_cast %32 : vector<1x1x8x32xf32> to vector<1x8x32xf32>
    %34 = vector.shape_cast %31 : vector<1x8x32xf32> to vector<1x1x8x32xf32>
    tpu.vector_store %arg14[%c0_48, %c3_49, %c0_50, %c0_51], %34 {strides = array<i32>} : memref<1x8x8x32xf32, #tpu.memory_space<vmem>>, vector<1x1x8x32xf32>,
    %c0_52 = arith.constant 0 : index
    %c0_53 = arith.constant 0 : index
    %c3_54 = arith.constant 3 : index
    %c0_55 = arith.constant 0 : index
    %35 = vector.load %arg2[%c0_52, %c0_53, %c3_54, %c0_55] : memref<1x8x8x32xf32, #tpu.memory_space<vmem>>, vector<1x8x1x32xf32>
    %36 = vector.shape_cast %35 : vector<1x8x1x32xf32> to vector<1x8x32xf32>
    %c0_56 = arith.constant 0 : index
    %c3_57 = arith.constant 3 : index
    %c0_58 = arith.constant 0 : index
    %c0_59 = arith.constant 0 : index
    %37 = vector.load %arg15[%c0_56, %c3_57, %c0_58, %c0_59] : memref<1x8x8x32xf32, #tpu.memory_space<vmem>>, vector<1x1x8x32xf32>
    %38 = vector.shape_cast %37 : vector<1x1x8x32xf32> to vector<1x8x32xf32>
    %39 = vector.shape_cast %36 : vector<1x8x32xf32> to vector<1x1x8x32xf32>
    tpu.vector_store %arg15[%c0_56, %c3_57, %c0_58, %c0_59], %39 {strides = array<i32>} : memref<1x8x8x32xf32, #tpu.memory_space<vmem>>, vector<1x1x8x32xf32>,
    %c0_60 = arith.constant 0 : index
    %c0_61 = arith.constant 0 : index
    %c4 = arith.constant 4 : index
    %c0_62 = arith.constant 0 : index
    %40 = vector.load %arg1[%c0_60, %c0_61, %c4, %c0_62] : memref<1x8x8x32xf32, #tpu.memory_space<vmem>>, vector<1x8x1x32xf32>
    %41 = vector.shape_cast %40 : vector<1x8x1x32xf32> to vector<1x8x32xf32>
    %c0_63 = arith.constant 0 : index
    %c4_64 = arith.constant 4 : index
    %c0_65 = arith.constant 0 : index
    %c0_66 = arith.constant 0 : index
    %42 = vector.load %arg14[%c0_63, %c4_64, %c0_65, %c0_66] : memref<1x8x8x32xf32, #tpu.memory_space<vmem>>, vector<1x1x8x32xf32>
    %43 = vector.shape_cast %42 : vector<1x1x8x32xf32> to vector<1x8x32xf32>
    %44 = vector.shape_cast %41 : vector<1x8x32xf32> to vector<1x1x8x32xf32>
    tpu.vector_store %arg14[%c0_63, %c4_64, %c0_65, %c0_66], %44 {strides = array<i32>} : memref<1x8x8x32xf32, #tpu.memory_space<vmem>>, vector<1x1x8x32xf32>,
    %c0_67 = arith.constant 0 : index
    %c0_68 = arith.constant 0 : index
    %c4_69 = arith.constant 4 : index
    %c0_70 = arith.constant 0 : index
    %45 = vector.load %arg2[%c0_67, %c0_68, %c4_69, %c0_70] : memref<1x8x8x32xf32, #tpu.memory_space<vmem>>, vector<1x8x1x32xf32>
    %46 = vector.shape_cast %45 : vector<1x8x1x32xf32> to vector<1x8x32xf32>
    %c0_71 = arith.constant 0 : index
    %c4_72 = arith.constant 4 : index
    %c0_73 = arith.constant 0 : index
    %c0_74 = arith.constant 0 : index
    %47 = vector.load %arg15[%c0_71, %c4_72, %c0_73, %c0_74] : memref<1x8x8x32xf32, #tpu.memory_space<vmem>>, vector<1x1x8x32xf32>
    %48 = vector.shape_cast %47 : vector<1x1x8x32xf32> to vector<1x8x32xf32>
    %49 = vector.shape_cast %46 : vector<1x8x32xf32> to vector<1x1x8x32xf32>
    tpu.vector_store %arg15[%c0_71, %c4_72, %c0_73, %c0_74], %49 {strides = array<i32>} : memref<1x8x8x32xf32, #tpu.memory_space<vmem>>, vector<1x1x8x32xf32>,
    %c0_75 = arith.constant 0 : index
    %c0_76 = arith.constant 0 : index
    %c5 = arith.constant 5 : index
    %c0_77 = arith.constant 0 : index
    %50 = vector.load %arg1[%c0_75, %c0_76, %c5, %c0_77] : memref<1x8x8x32xf32, #tpu.memory_space<vmem>>, vector<1x8x1x32xf32>
    %51 = vector.shape_cast %50 : vector<1x8x1x32xf32> to vector<1x8x32xf32>
    %c0_78 = arith.constant 0 : index
    %c5_79 = arith.constant 5 : index
    %c0_80 = arith.constant 0 : index
    %c0_81 = arith.constant 0 : index
    %52 = vector.load %arg14[%c0_78, %c5_79, %c0_80, %c0_81] : memref<1x8x8x32xf32, #tpu.memory_space<vmem>>, vector<1x1x8x32xf32>
    %53 = vector.shape_cast %52 : vector<1x1x8x32xf32> to vector<1x8x32xf32>
    %54 = vector.shape_cast %51 : vector<1x8x32xf32> to vector<1x1x8x32xf32>
    tpu.vector_store %arg14[%c0_78, %c5_79, %c0_80, %c0_81], %54 {strides = array<i32>} : memref<1x8x8x32xf32, #tpu.memory_space<vmem>>, vector<1x1x8x32xf32>,
    %c0_82 = arith.constant 0 : index
    %c0_83 = arith.constant 0 : index
    %c5_84 = arith.constant 5 : index
    %c0_85 = arith.constant 0 : index
    %55 = vector.load %arg2[%c0_82, %c0_83, %c5_84, %c0_85] : memref<1x8x8x32xf32, #tpu.memory_space<vmem>>, vector<1x8x1x32xf32>
    %56 = vector.shape_cast %55 : vector<1x8x1x32xf32> to vector<1x8x32xf32>
    %c0_86 = arith.constant 0 : index
    %c5_87 = arith.constant 5 : index
    %c0_88 = arith.constant 0 : index
    %c0_89 = arith.constant 0 : index
    %57 = vector.load %arg15[%c0_86, %c5_87, %c0_88, %c0_89] : memref<1x8x8x32xf32, #tpu.memory_space<vmem>>, vector<1x1x8x32xf32>
    %58 = vector.shape_cast %57 : vector<1x1x8x32xf32> to vector<1x8x32xf32>
    %59 = vector.shape_cast %56 : vector<1x8x32xf32> to vector<1x1x8x32xf32>
    tpu.vector_store %arg15[%c0_86, %c5_87, %c0_88, %c0_89], %59 {strides = array<i32>} : memref<1x8x8x32xf32, #tpu.memory_space<vmem>>, vector<1x1x8x32xf32>,
    %c0_90 = arith.constant 0 : index
    %c0_91 = arith.constant 0 : index
    %c6 = arith.constant 6 : index
    %c0_92 = arith.constant 0 : index
    %60 = vector.load %arg1[%c0_90, %c0_91, %c6, %c0_92] : memref<1x8x8x32xf32, #tpu.memory_space<vmem>>, vector<1x8x1x32xf32>
    %61 = vector.shape_cast %60 : vector<1x8x1x32xf32> to vector<1x8x32xf32>
    %c0_93 = arith.constant 0 : index
    %c6_94 = arith.constant 6 : index
    %c0_95 = arith.constant 0 : index
    %c0_96 = arith.constant 0 : index
    %62 = vector.load %arg14[%c0_93, %c6_94, %c0_95, %c0_96] : memref<1x8x8x32xf32, #tpu.memory_space<vmem>>, vector<1x1x8x32xf32>
    %63 = vector.shape_cast %62 : vector<1x1x8x32xf32> to vector<1x8x32xf32>
    %64 = vector.shape_cast %61 : vector<1x8x32xf32> to vector<1x1x8x32xf32>
    tpu.vector_store %arg14[%c0_93, %c6_94, %c0_95, %c0_96], %64 {strides = array<i32>} : memref<1x8x8x32xf32, #tpu.memory_space<vmem>>, vector<1x1x8x32xf32>,
    %c0_97 = arith.constant 0 : index
    %c0_98 = arith.constant 0 : index
    %c6_99 = arith.constant 6 : index
    %c0_100 = arith.constant 0 : index
    %65 = vector.load %arg2[%c0_97, %c0_98, %c6_99, %c0_100] : memref<1x8x8x32xf32, #tpu.memory_space<vmem>>, vector<1x8x1x32xf32>
    %66 = vector.shape_cast %65 : vector<1x8x1x32xf32> to vector<1x8x32xf32>
    %c0_101 = arith.constant 0 : index
    %c6_102 = arith.constant 6 : index
    %c0_103 = arith.constant 0 : index
    %c0_104 = arith.constant 0 : index
    %67 = vector.load %arg15[%c0_101, %c6_102, %c0_103, %c0_104] : memref<1x8x8x32xf32, #tpu.memory_space<vmem>>, vector<1x1x8x32xf32>
    %68 = vector.shape_cast %67 : vector<1x1x8x32xf32> to vector<1x8x32xf32>
    %69 = vector.shape_cast %66 : vector<1x8x32xf32> to vector<1x1x8x32xf32>
    tpu.vector_store %arg15[%c0_101, %c6_102, %c0_103, %c0_104], %69 {strides = array<i32>} : memref<1x8x8x32xf32, #tpu.memory_space<vmem>>, vector<1x1x8x32xf32>,
    %c0_105 = arith.constant 0 : index
    %c0_106 = arith.constant 0 : index
    %c7 = arith.constant 7 : index
    %c0_107 = arith.constant 0 : index
    %70 = vector.load %arg1[%c0_105, %c0_106, %c7, %c0_107] : memref<1x8x8x32xf32, #tpu.memory_space<vmem>>, vector<1x8x1x32xf32>
    %71 = vector.shape_cast %70 : vector<1x8x1x32xf32> to vector<1x8x32xf32>
    %c0_108 = arith.constant 0 : index
    %c7_109 = arith.constant 7 : index
    %c0_110 = arith.constant 0 : index
    %c0_111 = arith.constant 0 : index
    %72 = vector.load %arg14[%c0_108, %c7_109, %c0_110, %c0_111] : memref<1x8x8x32xf32, #tpu.memory_space<vmem>>, vector<1x1x8x32xf32>
    %73 = vector.shape_cast %72 : vector<1x1x8x32xf32> to vector<1x8x32xf32>
    %74 = vector.shape_cast %71 : vector<1x8x32xf32> to vector<1x1x8x32xf32>
    tpu.vector_store %arg14[%c0_108, %c7_109, %c0_110, %c0_111], %74 {strides = array<i32>} : memref<1x8x8x32xf32, #tpu.memory_space<vmem>>, vector<1x1x8x32xf32>,
    %c0_112 = arith.constant 0 : index
    %c0_113 = arith.constant 0 : index
    %c7_114 = arith.constant 7 : index
    %c0_115 = arith.constant 0 : index
    %75 = vector.load %arg2[%c0_112, %c0_113, %c7_114, %c0_115] : memref<1x8x8x32xf32, #tpu.memory_space<vmem>>, vector<1x8x1x32xf32>
    %76 = vector.shape_cast %75 : vector<1x8x1x32xf32> to vector<1x8x32xf32>
    %c0_116 = arith.constant 0 : index
    %c7_117 = arith.constant 7 : index
    %c0_118 = arith.constant 0 : index
    %c0_119 = arith.constant 0 : index
    %77 = vector.load %arg15[%c0_116, %c7_117, %c0_118, %c0_119] : memref<1x8x8x32xf32, #tpu.memory_space<vmem>>, vector<1x1x8x32xf32>
    %78 = vector.shape_cast %77 : vector<1x1x8x32xf32> to vector<1x8x32xf32>
    %79 = vector.shape_cast %76 : vector<1x8x32xf32> to vector<1x1x8x32xf32>
    tpu.vector_store %arg15[%c0_116, %c7_117, %c0_118, %c0_119], %79 {strides = array<i32>} : memref<1x8x8x32xf32, #tpu.memory_space<vmem>>, vector<1x1x8x32xf32>,
    %c0_120 = arith.constant 0 : index
    %c0_121 = arith.constant 0 : index
    %c0_122 = arith.constant 0 : index
    %c0_123 = arith.constant 0 : index
    %80 = vector.load %arg14[%c0_120, %c0_121, %c0_122, %c0_123] : memref<1x8x8x32xf32, #tpu.memory_space<vmem>>, vector<1x8x8x32xf32>
    %81 = vector.shape_cast %80 : vector<1x8x8x32xf32> to vector<64x32xf32>
    %c0_124 = arith.constant 0 : index
    %c0_125 = arith.constant 0 : index
    %c0_126 = arith.constant 0 : index
    %c0_127 = arith.constant 0 : index
    %82 = vector.load %arg15[%c0_124, %c0_125, %c0_126, %c0_127] : memref<1x8x8x32xf32, #tpu.memory_space<vmem>>, vector<1x8x8x32xf32>
    %83 = vector.shape_cast %82 : vector<1x8x8x32xf32> to vector<64x32xf32>
    %c0_128 = arith.constant 0 : index
    %c0_129 = arith.constant 0 : index
    %84 = vector.load %arg3[%c0_128, %c0_129] : memref<32x64xf32, #tpu.memory_space<vmem>>, vector<32x64xf32>
    %cst = arith.constant dense<0.000000e+00> : vector<64x64xf32>
    %85 = tpu.matmul %81, %84, %cst {dimension_numbers = #tpu.dot_dimension_numbers<[1], [0], [0], [1], [0, 0, 1, 1], [], []>} : vector<64x32xf32>, vector<32x64xf32>, vector<64x64xf32> -> vector<64x64xf32>
    %c0_130 = arith.constant 0 : index
    %c0_131 = arith.constant 0 : index
    %86 = vector.load %arg4[%c0_130, %c0_131] : memref<32x64xf32, #tpu.memory_space<vmem>>, vector<32x64xf32>
    %cst_132 = arith.constant dense<0.000000e+00> : vector<64x64xf32>
    %87 = tpu.matmul %83, %86, %cst_132 {dimension_numbers = #tpu.dot_dimension_numbers<[1], [0], [0], [1], [0, 0, 1, 1], [], []>} : vector<64x32xf32>, vector<32x64xf32>, vector<64x64xf32> -> vector<64x64xf32>
    %88 = arith.addf %85, %87 : vector<64x64xf32>
    %c0_133 = arith.constant 0 : index
    %c0_134 = arith.constant 0 : index
    %89 = vector.load %arg11[%c0_133, %c0_134] : memref<2x64xf32, #tpu.memory_space<vmem>>, vector<1x64xf32>
    %90 = vector.broadcast %89 : vector<1x64xf32> to vector<64x64xf32>
    %91 = arith.addf %88, %90 : vector<64x64xf32>
    %cst_135 = arith.constant 0.000000e+00 : f32
    %92 = vector.broadcast %cst_135 : f32 to vector<64x64xf32>
    %93 = arith.maximumf %91, %92 : vector<64x64xf32>
    %c0_136 = arith.constant 0 : index
    %c0_137 = arith.constant 0 : index
    %94 = vector.load %arg5[%c0_136, %c0_137] : memref<64x32xf32, #tpu.memory_space<vmem>>, vector<64x32xf32>
    %cst_138 = arith.constant dense<0.000000e+00> : vector<64x32xf32>
    %95 = tpu.matmul %93, %94, %cst_138 {dimension_numbers = #tpu.dot_dimension_numbers<[1], [0], [0], [1], [0, 0, 1, 1], [], []>} : vector<64x64xf32>, vector<64x32xf32>, vector<64x32xf32> -> vector<64x32xf32>
    %c0_139 = arith.constant 0 : index
    %c0_140 = arith.constant 0 : index
    %96 = vector.load %arg12[%c0_139, %c0_140] : memref<7x32xf32, #tpu.memory_space<vmem>>, vector<1x32xf32>
    %97 = vector.broadcast %96 : vector<1x32xf32> to vector<64x32xf32>
    %98 = arith.addf %95, %97 : vector<64x32xf32>
    %cst_141 = arith.constant 0.000000e+00 : f32
    %99 = vector.broadcast %cst_141 : f32 to vector<64x32xf32>
    %100 = arith.maximumf %98, %99 : vector<64x32xf32>
    %c0_142 = arith.constant 0 : index
    %c0_143 = arith.constant 0 : index
    %101 = vector.load %arg6[%c0_142, %c0_143] : memref<32x96xf32, #tpu.memory_space<vmem>>, vector<32x96xf32>
    %cst_144 = arith.constant dense<0.000000e+00> : vector<64x96xf32>
    %102 = tpu.matmul %100, %101, %cst_144 {dimension_numbers = #tpu.dot_dimension_numbers<[1], [0], [0], [1], [0, 0, 1, 1], [], []>} : vector<64x32xf32>, vector<32x96xf32>, vector<64x96xf32> -> vector<64x96xf32>
    %c0_145 = arith.constant 0 : index
    %c0_146 = arith.constant 0 : index
    %103 = vector.load %arg10[%c0_145, %c0_146] : memref<1x96xf32, #tpu.memory_space<vmem>>, vector<1x96xf32>
    %104 = vector.broadcast %103 : vector<1x96xf32> to vector<64x96xf32>
    %105 = arith.addf %102, %104 : vector<64x96xf32>
    %106 = vector.extract_strided_slice %105 {offsets = [0, 0], sizes = [64, 32], strides = [1, 1]} : vector<64x96xf32> to vector<64x32xf32>
    %107 = vector.shape_cast %106 : vector<64x32xf32> to vector<8x8x32xf32>
    %108 = vector.extract_strided_slice %105 {offsets = [0, 32], sizes = [64, 32], strides = [1, 1]} : vector<64x96xf32> to vector<64x32xf32>
    %109 = vector.shape_cast %108 : vector<64x32xf32> to vector<8x8x32xf32>
    %110 = vector.extract_strided_slice %105 {offsets = [0, 64], sizes = [64, 32], strides = [1, 1]} : vector<64x96xf32> to vector<64x32xf32>
    %111 = vector.shape_cast %110 : vector<64x32xf32> to vector<8x8x32xf32>
    "tpu.trace_start"() <{level = 10 : i32, message = "gsd,gud->gsu"}> : () -> ()
    %cst_147 = arith.constant dense<0.000000e+00> : vector<8x8x8xf32>
    %112 = tpu.matmul %107, %109, %cst_147 {dimension_numbers = #tpu.dot_dimension_numbers<[2], [2], [1], [1], [0, 0, 0, 1, 1, 1], [0], [0]>} : vector<8x8x32xf32>, vector<8x8x32xf32>, vector<8x8x8xf32> -> vector<8x8x8xf32>
    "tpu.trace_stop"() : () -> ()
    %cst_148 = arith.constant dense<0xFF800000> : vector<8x8xf32>
    %113 = vector.multi_reduction <maximumf>, %112, %cst_148 [2] : vector<8x8x8xf32> to vector<8x8xf32>
    %114 = vector.shape_cast %113 : vector<8x8xf32> to vector<8x8x1xf32>
    %115 = vector.broadcast %114 : vector<8x8x1xf32> to vector<8x8x8xf32>
    %116 = arith.subf %112, %115 : vector<8x8x8xf32>
    %117 = math.exp %116 : vector<8x8x8xf32>
    %cst_149 = arith.constant dense<0.000000e+00> : vector<8x8xf32>
    %118 = vector.multi_reduction <add>, %117, %cst_149 [2] : vector<8x8x8xf32> to vector<8x8xf32>
    %119 = vector.shape_cast %118 : vector<8x8xf32> to vector<8x8x1xf32>
    %120 = tpu.reciprocal %119 {approx = true} : vector<8x8x1xf32> -> vector<8x8x1xf32>
    %121 = vector.broadcast %120 : vector<8x8x1xf32> to vector<8x8x8xf32>
    %122 = arith.mulf %117, %121 : vector<8x8x8xf32>
    "tpu.trace_start"() <{level = 10 : i32, message = "gsu,gud->gsd"}> : () -> ()
    %cst_150 = arith.constant dense<0.000000e+00> : vector<8x8x32xf32>
    %123 = tpu.matmul %122, %111, %cst_150 {dimension_numbers = #tpu.dot_dimension_numbers<[2], [1], [1], [2], [0, 0, 0, 1, 1, 2], [0], [0]>} : vector<8x8x8xf32>, vector<8x8x32xf32>, vector<8x8x32xf32> -> vector<8x8x32xf32>
    "tpu.trace_stop"() : () -> ()
    %124 = vector.shape_cast %123 : vector<8x8x32xf32> to vector<64x32xf32>
    %c0_151 = arith.constant 0 : index
    %c0_152 = arith.constant 0 : index
    %125 = vector.load %arg7[%c0_151, %c0_152] : memref<32x32xf32, #tpu.memory_space<vmem>>, vector<32x32xf32>
    %cst_153 = arith.constant dense<0.000000e+00> : vector<64x32xf32>
    %126 = tpu.matmul %124, %125, %cst_153 {dimension_numbers = #tpu.dot_dimension_numbers<[1], [0], [0], [1], [0, 0, 1, 1], [], []>} : vector<64x32xf32>, vector<32x32xf32>, vector<64x32xf32> -> vector<64x32xf32>
    %c1_154 = arith.constant 1 : index
    %c0_155 = arith.constant 0 : index
    %127 = vector.load %arg12[%c1_154, %c0_155] : memref<7x32xf32, #tpu.memory_space<vmem>>, vector<1x32xf32>
    %128 = vector.broadcast %127 : vector<1x32xf32> to vector<64x32xf32>
    %129 = arith.addf %126, %128 : vector<64x32xf32>
    %130 = arith.addf %100, %129 : vector<64x32xf32>
    %c2_156 = arith.constant 2 : index
    %c0_157 = arith.constant 0 : index
    %131 = vector.load %arg12[%c2_156, %c0_157] : memref<7x32xf32, #tpu.memory_space<vmem>>, vector<1x32xf32>
    %c3_158 = arith.constant 3 : index
    %c0_159 = arith.constant 0 : index
    %132 = vector.load %arg12[%c3_158, %c0_159] : memref<7x32xf32, #tpu.memory_space<vmem>>, vector<1x32xf32>
    %cst_160 = arith.constant dense<0.000000e+00> : vector<64xf32>
    %133 = vector.multi_reduction <add>, %130, %cst_160 [1] : vector<64x32xf32> to vector<64xf32>
    %134 = vector.shape_cast %133 : vector<64xf32> to vector<64x1xf32>
    %cst_161 = arith.constant 3.200000e+01 : f32
    %135 = vector.broadcast %cst_161 : f32 to vector<64x1xf32>
    %136 = arith.divf %134, %135 : vector<64x1xf32>
    %137 = vector.broadcast %136 : vector<64x1xf32> to vector<64x32xf32>
    %138 = arith.subf %130, %137 : vector<64x32xf32>
    %139 = arith.mulf %138, %138 : vector<64x32xf32>
    %cst_162 = arith.constant dense<0.000000e+00> : vector<64xf32>
    %140 = vector.multi_reduction <add>, %139, %cst_162 [1] : vector<64x32xf32> to vector<64xf32>
    %141 = vector.shape_cast %140 : vector<64xf32> to vector<64x1xf32>
    %cst_163 = arith.constant 0.0322580636 : f32
    %142 = vector.broadcast %cst_163 : f32 to vector<64x1xf32>
    %143 = arith.mulf %141, %142 : vector<64x1xf32>
    %144 = math.sqrt %143 : vector<64x1xf32>
    %cst_164 = arith.constant 9.99999997E-7 : f32
    %145 = vector.broadcast %cst_164 : f32 to vector<64x1xf32>
    %146 = arith.addf %144, %145 : vector<64x1xf32>
    %147 = tpu.reciprocal %146 {approx = true} : vector<64x1xf32> -> vector<64x1xf32>
    %148 = vector.broadcast %131 : vector<1x32xf32> to vector<64x32xf32>
    %149 = arith.mulf %148, %138 : vector<64x32xf32>
    %150 = vector.broadcast %147 : vector<64x1xf32> to vector<64x32xf32>
    %151 = arith.mulf %149, %150 : vector<64x32xf32>
    %152 = vector.broadcast %132 : vector<1x32xf32> to vector<64x32xf32>
    %153 = arith.addf %151, %152 : vector<64x32xf32>
    %c0_165 = arith.constant 0 : index
    %c0_166 = arith.constant 0 : index
    %154 = vector.load %arg8[%c0_165, %c0_166] : memref<32x64xf32, #tpu.memory_space<vmem>>, vector<32x64xf32>
    %cst_167 = arith.constant dense<0.000000e+00> : vector<64x64xf32>
    %155 = tpu.matmul %153, %154, %cst_167 {dimension_numbers = #tpu.dot_dimension_numbers<[1], [0], [0], [1], [0, 0, 1, 1], [], []>} : vector<64x32xf32>, vector<32x64xf32>, vector<64x64xf32> -> vector<64x64xf32>
    %c1_168 = arith.constant 1 : index
    %c0_169 = arith.constant 0 : index
    %156 = vector.load %arg11[%c1_168, %c0_169] : memref<2x64xf32, #tpu.memory_space<vmem>>, vector<1x64xf32>
    %157 = vector.broadcast %156 : vector<1x64xf32> to vector<64x64xf32>
    %158 = arith.addf %155, %157 : vector<64x64xf32>
    %cst_170 = arith.constant 0.000000e+00 : f32
    %159 = vector.broadcast %cst_170 : f32 to vector<64x64xf32>
    %160 = arith.maximumf %158, %159 : vector<64x64xf32>
    %c0_171 = arith.constant 0 : index
    %c0_172 = arith.constant 0 : index
    %161 = vector.load %arg9[%c0_171, %c0_172] : memref<64x32xf32, #tpu.memory_space<vmem>>, vector<64x32xf32>
    %cst_173 = arith.constant dense<0.000000e+00> : vector<64x32xf32>
    %162 = tpu.matmul %160, %161, %cst_173 {dimension_numbers = #tpu.dot_dimension_numbers<[1], [0], [0], [1], [0, 0, 1, 1], [], []>} : vector<64x64xf32>, vector<64x32xf32>, vector<64x32xf32> -> vector<64x32xf32>
    %c4_174 = arith.constant 4 : index
    %c0_175 = arith.constant 0 : index
    %163 = vector.load %arg12[%c4_174, %c0_175] : memref<7x32xf32, #tpu.memory_space<vmem>>, vector<1x32xf32>
    %164 = vector.broadcast %163 : vector<1x32xf32> to vector<64x32xf32>
    %165 = arith.addf %162, %164 : vector<64x32xf32>
    %cst_176 = arith.constant 0.000000e+00 : f32
    %166 = vector.broadcast %cst_176 : f32 to vector<64x32xf32>
    %167 = arith.maximumf %165, %166 : vector<64x32xf32>
    %168 = arith.addf %153, %167 : vector<64x32xf32>
    %c5_177 = arith.constant 5 : index
    %c0_178 = arith.constant 0 : index
    %169 = vector.load %arg12[%c5_177, %c0_178] : memref<7x32xf32, #tpu.memory_space<vmem>>, vector<1x32xf32>
    %c6_179 = arith.constant 6 : index
    %c0_180 = arith.constant 0 : index
    %170 = vector.load %arg12[%c6_179, %c0_180] : memref<7x32xf32, #tpu.memory_space<vmem>>, vector<1x32xf32>
    %cst_181 = arith.constant dense<0.000000e+00> : vector<64xf32>
    %171 = vector.multi_reduction <add>, %168, %cst_181 [1] : vector<64x32xf32> to vector<64xf32>
    %172 = vector.shape_cast %171 : vector<64xf32> to vector<64x1xf32>
    %cst_182 = arith.constant 3.200000e+01 : f32
    %173 = vector.broadcast %cst_182 : f32 to vector<64x1xf32>
    %174 = arith.divf %172, %173 : vector<64x1xf32>
    %175 = vector.broadcast %174 : vector<64x1xf32> to vector<64x32xf32>
    %176 = arith.subf %168, %175 : vector<64x32xf32>
    %177 = arith.mulf %176, %176 : vector<64x32xf32>
    %cst_183 = arith.constant dense<0.000000e+00> : vector<64xf32>
    %178 = vector.multi_reduction <add>, %177, %cst_183 [1] : vector<64x32xf32> to vector<64xf32>
    %179 = vector.shape_cast %178 : vector<64xf32> to vector<64x1xf32>
    %cst_184 = arith.constant 0.0322580636 : f32
    %180 = vector.broadcast %cst_184 : f32 to vector<64x1xf32>
    %181 = arith.mulf %179, %180 : vector<64x1xf32>
    %182 = math.sqrt %181 : vector<64x1xf32>
    %cst_185 = arith.constant 9.99999997E-7 : f32
    %183 = vector.broadcast %cst_185 : f32 to vector<64x1xf32>
    %184 = arith.addf %182, %183 : vector<64x1xf32>
    %185 = tpu.reciprocal %184 {approx = true} : vector<64x1xf32> -> vector<64x1xf32>
    %186 = vector.broadcast %169 : vector<1x32xf32> to vector<64x32xf32>
    %187 = arith.mulf %186, %176 : vector<64x32xf32>
    %188 = vector.broadcast %185 : vector<64x1xf32> to vector<64x32xf32>
    %189 = arith.mulf %187, %188 : vector<64x32xf32>
    %190 = vector.broadcast %170 : vector<1x32xf32> to vector<64x32xf32>
    %191 = arith.addf %189, %190 : vector<64x32xf32>
    %192 = vector.shape_cast %191 : vector<64x32xf32> to vector<1x8x8x32xf32>
    %193 = vector.extract_strided_slice %192 {offsets = [0, 0, 0, 0], sizes = [1, 1, 8, 32], strides = [1, 1, 1, 1]} : vector<1x8x8x32xf32> to vector<1x1x8x32xf32>
    %194 = vector.shape_cast %193 : vector<1x1x8x32xf32> to vector<1x8x32xf32>
    %c0_186 = arith.constant 0 : index
    %c0_187 = arith.constant 0 : index
    %c0_188 = arith.constant 0 : index
    %c0_189 = arith.constant 0 : index
    %195 = vector.load %arg13[%c0_186, %c0_187, %c0_188, %c0_189] : memref<1x8x8x32xf32, #tpu.memory_space<vmem>>, vector<1x8x1x32xf32>
    %196 = vector.shape_cast %195 : vector<1x8x1x32xf32> to vector<1x8x32xf32>
    %197 = vector.shape_cast %194 : vector<1x8x32xf32> to vector<1x8x1x32xf32>
    tpu.vector_store %arg13[%c0_186, %c0_187, %c0_188, %c0_189], %197 {strides = array<i32>} : memref<1x8x8x32xf32, #tpu.memory_space<vmem>>, vector<1x8x1x32xf32>,
    %198 = vector.extract_strided_slice %192 {offsets = [0, 1, 0, 0], sizes = [1, 1, 8, 32], strides = [1, 1, 1, 1]} : vector<1x8x8x32xf32> to vector<1x1x8x32xf32>
    %199 = vector.shape_cast %198 : vector<1x1x8x32xf32> to vector<1x8x32xf32>
    %c0_190 = arith.constant 0 : index
    %c0_191 = arith.constant 0 : index
    %c1_192 = arith.constant 1 : index
    %c0_193 = arith.constant 0 : index
    %200 = vector.load %arg13[%c0_190, %c0_191, %c1_192, %c0_193] : memref<1x8x8x32xf32, #tpu.memory_space<vmem>>, vector<1x8x1x32xf32>
    %201 = vector.shape_cast %200 : vector<1x8x1x32xf32> to vector<1x8x32xf32>
    %202 = vector.shape_cast %199 : vector<1x8x32xf32> to vector<1x8x1x32xf32>
    tpu.vector_store %arg13[%c0_190, %c0_191, %c1_192, %c0_193], %202 {strides = array<i32>} : memref<1x8x8x32xf32, #tpu.memory_space<vmem>>, vector<1x8x1x32xf32>,
    %203 = vector.extract_strided_slice %192 {offsets = [0, 2, 0, 0], sizes = [1, 1, 8, 32], strides = [1, 1, 1, 1]} : vector<1x8x8x32xf32> to vector<1x1x8x32xf32>
    %204 = vector.shape_cast %203 : vector<1x1x8x32xf32> to vector<1x8x32xf32>
    %c0_194 = arith.constant 0 : index
    %c0_195 = arith.constant 0 : index
    %c2_196 = arith.constant 2 : index
    %c0_197 = arith.constant 0 : index
    %205 = vector.load %arg13[%c0_194, %c0_195, %c2_196, %c0_197] : memref<1x8x8x32xf32, #tpu.memory_space<vmem>>, vector<1x8x1x32xf32>
    %206 = vector.shape_cast %205 : vector<1x8x1x32xf32> to vector<1x8x32xf32>
    %207 = vector.shape_cast %204 : vector<1x8x32xf32> to vector<1x8x1x32xf32>
    tpu.vector_store %arg13[%c0_194, %c0_195, %c2_196, %c0_197], %207 {strides = array<i32>} : memref<1x8x8x32xf32, #tpu.memory_space<vmem>>, vector<1x8x1x32xf32>,
    %208 = vector.extract_strided_slice %192 {offsets = [0, 3, 0, 0], sizes = [1, 1, 8, 32], strides = [1, 1, 1, 1]} : vector<1x8x8x32xf32> to vector<1x1x8x32xf32>
    %209 = vector.shape_cast %208 : vector<1x1x8x32xf32> to vector<1x8x32xf32>
    %c0_198 = arith.constant 0 : index
    %c0_199 = arith.constant 0 : index
    %c3_200 = arith.constant 3 : index
    %c0_201 = arith.constant 0 : index
    %210 = vector.load %arg13[%c0_198, %c0_199, %c3_200, %c0_201] : memref<1x8x8x32xf32, #tpu.memory_space<vmem>>, vector<1x8x1x32xf32>
    %211 = vector.shape_cast %210 : vector<1x8x1x32xf32> to vector<1x8x32xf32>
    %212 = vector.shape_cast %209 : vector<1x8x32xf32> to vector<1x8x1x32xf32>
    tpu.vector_store %arg13[%c0_198, %c0_199, %c3_200, %c0_201], %212 {strides = array<i32>} : memref<1x8x8x32xf32, #tpu.memory_space<vmem>>, vector<1x8x1x32xf32>,
    %213 = vector.extract_strided_slice %192 {offsets = [0, 4, 0, 0], sizes = [1, 1, 8, 32], strides = [1, 1, 1, 1]} : vector<1x8x8x32xf32> to vector<1x1x8x32xf32>
    %214 = vector.shape_cast %213 : vector<1x1x8x32xf32> to vector<1x8x32xf32>
    %c0_202 = arith.constant 0 : index
    %c0_203 = arith.constant 0 : index
    %c4_204 = arith.constant 4 : index
    %c0_205 = arith.constant 0 : index
    %215 = vector.load %arg13[%c0_202, %c0_203, %c4_204, %c0_205] : memref<1x8x8x32xf32, #tpu.memory_space<vmem>>, vector<1x8x1x32xf32>
    %216 = vector.shape_cast %215 : vector<1x8x1x32xf32> to vector<1x8x32xf32>
    %217 = vector.shape_cast %214 : vector<1x8x32xf32> to vector<1x8x1x32xf32>
    tpu.vector_store %arg13[%c0_202, %c0_203, %c4_204, %c0_205], %217 {strides = array<i32>} : memref<1x8x8x32xf32, #tpu.memory_space<vmem>>, vector<1x8x1x32xf32>,
    %218 = vector.extract_strided_slice %192 {offsets = [0, 5, 0, 0], sizes = [1, 1, 8, 32], strides = [1, 1, 1, 1]} : vector<1x8x8x32xf32> to vector<1x1x8x32xf32>
    %219 = vector.shape_cast %218 : vector<1x1x8x32xf32> to vector<1x8x32xf32>
    %c0_206 = arith.constant 0 : index
    %c0_207 = arith.constant 0 : index
    %c5_208 = arith.constant 5 : index
    %c0_209 = arith.constant 0 : index
    %220 = vector.load %arg13[%c0_206, %c0_207, %c5_208, %c0_209] : memref<1x8x8x32xf32, #tpu.memory_space<vmem>>, vector<1x8x1x32xf32>
    %221 = vector.shape_cast %220 : vector<1x8x1x32xf32> to vector<1x8x32xf32>
    %222 = vector.shape_cast %219 : vector<1x8x32xf32> to vector<1x8x1x32xf32>
    tpu.vector_store %arg13[%c0_206, %c0_207, %c5_208, %c0_209], %222 {strides = array<i32>} : memref<1x8x8x32xf32, #tpu.memory_space<vmem>>, vector<1x8x1x32xf32>,
    %223 = vector.extract_strided_slice %192 {offsets = [0, 6, 0, 0], sizes = [1, 1, 8, 32], strides = [1, 1, 1, 1]} : vector<1x8x8x32xf32> to vector<1x1x8x32xf32>
    %224 = vector.shape_cast %223 : vector<1x1x8x32xf32> to vector<1x8x32xf32>
    %c0_210 = arith.constant 0 : index
    %c0_211 = arith.constant 0 : index
    %c6_212 = arith.constant 6 : index
    %c0_213 = arith.constant 0 : index
    %225 = vector.load %arg13[%c0_210, %c0_211, %c6_212, %c0_213] : memref<1x8x8x32xf32, #tpu.memory_space<vmem>>, vector<1x8x1x32xf32>
    %226 = vector.shape_cast %225 : vector<1x8x1x32xf32> to vector<1x8x32xf32>
    %227 = vector.shape_cast %224 : vector<1x8x32xf32> to vector<1x8x1x32xf32>
    tpu.vector_store %arg13[%c0_210, %c0_211, %c6_212, %c0_213], %227 {strides = array<i32>} : memref<1x8x8x32xf32, #tpu.memory_space<vmem>>, vector<1x8x1x32xf32>,
    %228 = vector.extract_strided_slice %192 {offsets = [0, 7, 0, 0], sizes = [1, 1, 8, 32], strides = [1, 1, 1, 1]} : vector<1x8x8x32xf32> to vector<1x1x8x32xf32>
    %229 = vector.shape_cast %228 : vector<1x1x8x32xf32> to vector<1x8x32xf32>
    %c0_214 = arith.constant 0 : index
    %c0_215 = arith.constant 0 : index
    %c7_216 = arith.constant 7 : index
    %c0_217 = arith.constant 0 : index
    %230 = vector.load %arg13[%c0_214, %c0_215, %c7_216, %c0_217] : memref<1x8x8x32xf32, #tpu.memory_space<vmem>>, vector<1x8x1x32xf32>
    %231 = vector.shape_cast %230 : vector<1x8x1x32xf32> to vector<1x8x32xf32>
    %232 = vector.shape_cast %229 : vector<1x8x32xf32> to vector<1x8x1x32xf32>
    tpu.vector_store %arg13[%c0_214, %c0_215, %c7_216, %c0_217], %232 {strides = array<i32>} : memref<1x8x8x32xf32, #tpu.memory_space<vmem>>, vector<1x8x1x32xf32>,
    return
  }
  func.func @transform_0(%arg0: i32) -> (i32, i32, i32, i32) {
    %c0_i32 = arith.constant 0 : i32
    %c0_i32_0 = arith.constant 0 : i32
    %c0_i32_1 = arith.constant 0 : i32
    %c0_i32_2 = arith.constant 0 : i32
    return %arg0, %c0_i32, %c0_i32_0, %c0_i32_1 : i32, i32, i32, i32
  }
  func.func @transform_1(%arg0: i32) -> (i32, i32, i32, i32) {
    %c0_i32 = arith.constant 0 : i32
    %c0_i32_0 = arith.constant 0 : i32
    %c0_i32_1 = arith.constant 0 : i32
    %c0_i32_2 = arith.constant 0 : i32
    return %arg0, %c0_i32, %c0_i32_0, %c0_i32_1 : i32, i32, i32, i32
  }
  func.func @transform_2(%arg0: i32) -> (i32, i32) {
    %c0_i32 = arith.constant 0 : i32
    %c0_i32_0 = arith.constant 0 : i32
    %c0_i32_1 = arith.constant 0 : i32
    return %c0_i32, %c0_i32_0 : i32, i32
  }
  func.func @transform_3(%arg0: i32) -> (i32, i32) {
    %c0_i32 = arith.constant 0 : i32
    %c0_i32_0 = arith.constant 0 : i32
    %c0_i32_1 = arith.constant 0 : i32
    return %c0_i32, %c0_i32_0 : i32, i32
  }
  func.func @transform_4(%arg0: i32) -> (i32, i32) {
    %c0_i32 = arith.constant 0 : i32
    %c0_i32_0 = arith.constant 0 : i32
    %c0_i32_1 = arith.constant 0 : i32
    return %c0_i32, %c0_i32_0 : i32, i32
  }
  func.func @transform_5(%arg0: i32) -> (i32, i32) {
    %c0_i32 = arith.constant 0 : i32
    %c0_i32_0 = arith.constant 0 : i32
    %c0_i32_1 = arith.constant 0 : i32
    return %c0_i32, %c0_i32_0 : i32, i32
  }
  func.func @transform_6(%arg0: i32) -> (i32, i32) {
    %c0_i32 = arith.constant 0 : i32
    %c0_i32_0 = arith.constant 0 : i32
    %c0_i32_1 = arith.constant 0 : i32
    return %c0_i32, %c0_i32_0 : i32, i32
  }
  func.func @transform_7(%arg0: i32) -> (i32, i32) {
    %c0_i32 = arith.constant 0 : i32
    %c0_i32_0 = arith.constant 0 : i32
    %c0_i32_1 = arith.constant 0 : i32
    return %c0_i32, %c0_i32_0 : i32, i32
  }
  func.func @transform_8(%arg0: i32) -> (i32, i32) {
    %c0_i32 = arith.constant 0 : i32
    %c0_i32_0 = arith.constant 0 : i32
    %c0_i32_1 = arith.constant 0 : i32
    return %c0_i32, %c0_i32_0 : i32, i32
  }
  func.func @transform_9(%arg0: i32) -> (i32, i32) {
    %c0_i32 = arith.constant 0 : i32
    %c0_i32_0 = arith.constant 0 : i32
    %c0_i32_1 = arith.constant 0 : i32
    return %c0_i32, %c0_i32_0 : i32, i32
  }
  func.func @transform_10(%arg0: i32) -> (i32, i32) {
    %c0_i32 = arith.constant 0 : i32
    %c0_i32_0 = arith.constant 0 : i32
    %c0_i32_1 = arith.constant 0 : i32
    return %c0_i32, %c0_i32_0 : i32, i32
  }
  func.func @transform_11(%arg0: i32) -> (i32, i32) {
    %c0_i32 = arith.constant 0 : i32
    %c0_i32_0 = arith.constant 0 : i32
    %c0_i32_1 = arith.constant 0 : i32
    return %c0_i32, %c0_i32_0 : i32, i32
  }
  func.func @transform_12(%arg0: i32) -> (i32, i32, i32, i32) {
    %c0_i32 = arith.constant 0 : i32
    %c0_i32_0 = arith.constant 0 : i32
    %c0_i32_1 = arith.constant 0 : i32
    %c0_i32_2 = arith.constant 0 : i32
    return %arg0, %c0_i32, %c0_i32_0, %c0_i32_1 : i32, i32, i32, i32
  }
}

</mosaic_0001>

<llo_original>
// kernel: tpu_custom_call.1
$region0: #{tpu_custom_call.1}
  #allocation0 [shape = 'u32[]', space=smem, size = 0x4, offset = 0x4, fixed_abs, tag = 'smem constant byte address 0x4 - core index']
  #allocation1 [shape = 'u32[144,128]{1,0:T(1,128)}', space=vmem, size = 0x12000, scoped, tag = 'internal scratch']
  #allocation2 [shape = 'f32[1,8,8,32]{3,2,1,0:T(8,128)}', space=vmem, size = 0x8000, scoped, tag = 'scratch operand']
  #allocation3 [shape = 'f32[1,8,8,32]{3,2,1,0:T(8,128)}', space=vmem, size = 0x8000, scoped, tag = 'scratch operand']
  %s0 = inlined_call_operand.vmem [shape: f32[2,8,8,32], index: 0, kind: input, shape index: {}]
  %s1 = inlined_call_operand.hbm [shape: f32[2,8,8,32], index: 1, kind: input, shape index: {}]
  %s2 = inlined_call_operand.vmem [shape: f32[32,64], index: 2, kind: input, shape index: {}]
  %s3 = inlined_call_operand.hbm [shape: f32[32,64], index: 3, kind: input, shape index: {}]
  %s4 = inlined_call_operand.vmem [shape: f32[64,32], index: 4, kind: input, shape index: {}]
  %s5 = inlined_call_operand.hbm [shape: f32[32,96], index: 5, kind: input, shape index: {}]
  %s6 = inlined_call_operand.hbm [shape: f32[32,32], index: 6, kind: input, shape index: {}]
  %s7 = inlined_call_operand.hbm [shape: f32[32,64], index: 7, kind: input, shape index: {}]
  %s8 = inlined_call_operand.vmem [shape: f32[64,32], index: 8, kind: input, shape index: {}]
  %s9 = inlined_call_operand.vmem [shape: f32[1,96], index: 9, kind: input, shape index: {}]
  %s10 = inlined_call_operand.vmem [shape: f32[2,64], index: 10, kind: input, shape index: {}]
  %s11 = inlined_call_operand.vmem [shape: f32[7,32], index: 11, kind: input, shape index: {}]
  %s12 = inlined_call_operand.hbm [shape: f32[2,8,8,32], index: 12, kind: output, shape index: {}]
  %s13 = sld [smem:[#allocation0]]
  $region101: #{tpu_custom_call.1} parent=0
    _
  %s15 = ssub.s32 1, %s13
  %s16 = scalar_select 0, %s15, %s13
  $region1: #{tpu_custom_call.1} parent=0
    #allocation4 [shape = 'u8[65536]{0}', space=vmem, size = 0x10000, scoped, tag = 'input window, operand 1']
    #allocation5 [shape = 's32[2]{0}', space=sflag, size = 0x8, scoped, tag = 'scoped memory for tpu_custom_call.1']
    #allocation6 [shape = 's32[2]{0}', space=sflag, size = 0x8, scoped, tag = 'scoped memory for tpu_custom_call.1']
    #allocation7 [shape = 'u8[16384]{0}', space=vmem, size = 0x4000, scoped, tag = 'input window, operand 3, single buffered']
    #allocation8 [shape = 's32[1]{0}', space=sflag, size = 0x4, scoped, tag = 'scoped memory for tpu_custom_call.1']
    #allocation9 [shape = 'u8[16384]{0}', space=vmem, size = 0x4000, scoped, tag = 'input window, operand 5, single buffered']
    #allocation10 [shape = 'u8[16384]{0}', space=vmem, size = 0x4000, scoped, tag = 'input window, operand 6, single buffered']
    #allocation11 [shape = 's32[1]{0}', space=sflag, size = 0x4, scoped, tag = 'scoped memory for tpu_custom_call.1']
    #allocation12 [shape = 'u8[16384]{0}', space=vmem, size = 0x4000, scoped, tag = 'input window, operand 7, single buffered']
    #allocation13 [shape = 'u8[65536]{0}', space=vmem, size = 0x10000, scoped, tag = 'output window, operand 0']
    %17 = vsyncpa [#allocation5], 0
    %s18 = scalar_lea.sflag [#allocation5], 1
    %19 = vsyncpa %s18, 0
    %20 = vsyncpa [#allocation8], 0
    %21 = vsyncpa [#allocation11], 0
    %22 = vsyncpa [#allocation6], 0
    %s23 = scalar_lea.sflag [#allocation6], 1
    %24 = vsyncpa %s23, 0
    loop: start=0, step=1, limit=4
    $region2: #{tpu_custom_call.1} parent=1 // loop_pre_header
      _
    $region3: #{tpu_custom_call.1} parent=1 // loop_header
      %s26 = sphi 0, %s30
      %p27 = scmp.ge.s32.totalorder %s26, 4
      %s36 = sphi 0, %s38
      %s39 = sphi 0, %s36
      %s40 = sphi 0, %s39
      %s56 = sphi 0, %s40
      %s62 = sphi 0, %s64
      %s65 = sphi 0, %s62
      %s66 = sphi 0, %s65
      %s82 = sphi 0, %s66
      %s86 = sphi 0, %s86
      %s88 = sphi 0, %s86
      %s89 = sphi 0, %s88
      %s103 = sphi 0, %s89
      %s107 = sphi 0, %s107
      %s109 = sphi 0, %s107
      %s110 = sphi 0, %s109
      %s124 = sphi 0, %s110
      %s128 = sphi 0, %s128
      %s130 = sphi 0, %s128
      %s131 = sphi 0, %s130
      %s145 = sphi 0, %s131
      %s149 = sphi 0, %s149
      %s151 = sphi 0, %s149
      %s152 = sphi 0, %s151
      %s166 = sphi 0, %s152
      %s170 = sphi 0, %s170
      %s172 = sphi 0, %s170
      %s173 = sphi 0, %s172
      %s187 = sphi 0, %s173
      %s191 = sphi 0, %s191
      %s193 = sphi 0, %s191
      %s194 = sphi 0, %s193
      %s208 = sphi 0, %s194
      %s212 = sphi 0, %s212
      %s214 = sphi 0, %s212
      %s215 = sphi 0, %s214
      %s229 = sphi 0, %s215
      %s233 = sphi 0, %s233
      %s235 = sphi 0, %s233
      %s236 = sphi 0, %s235
      %s250 = sphi 0, %s236
      %s254 = sphi 0, %s254
      %s256 = sphi 0, %s254
      %s257 = sphi 0, %s256
      %s271 = sphi 0, %s257
      %s275 = sphi 0, %s275
      %s277 = sphi 0, %s275
      %s278 = sphi 0, %s277
      %s292 = sphi 0, %s278
      %s298 = sphi 0, %s300
      %s301 = sphi 0, %s298
      %s302 = sphi 0, %s301
      %s318 = sphi 0, %s302
    $region4: #{tpu_custom_call.1} parent=1 // loop_header_branch
      %29 = sbr.rel (%p27) target = $region8
    $region5: #{tpu_custom_call.1} parent=1 // loop_body
      %s31 = ssub.s32 %s26, 1
      %s32 = ssub.s32 %s26, 2
      %s33 = sadd.s32 %s26, 1
      %s34 = ssub.s32 %s26, %s33
      %p35 = scmp.eq.s32.totalorder %s34, 0
      %s37 = sadd.s32 %s36, 1
      %s38 = scalar_select %p35, %s36, %s37
      %p41 = pneg %p35
      %p42 = scmp.eq.s32.totalorder %s26, 1
      %p43 = por %p41, %p42
      %p44 = scmp.ne.s32.totalorder %s36, %s39
      %p45 = scmp.eq.s32.totalorder %s26, 0
      %p46 = por %p44, %p45
      %p47 = scmp.ne.s32.totalorder %s36, %s39
      %p48 = scmp.eq.s32.totalorder %s31, 1
      %p49 = por %p47, %p48
      %p50 = scmp.ne.s32.totalorder %s39, %s40
      %p51 = scmp.eq.s32.totalorder %s31, 0
      %p52 = por %p50, %p51
      %p53 = scmp.ne.s32.totalorder %s39, %s40
      %p54 = scmp.eq.s32.totalorder %s32, 1
      %p55 = por %p53, %p54
      %p57 = scmp.ne.s32.totalorder %s40, %s56
      %p58 = scmp.eq.s32.totalorder %s32, 0
      %p59 = por %p57, %p58
      %s60 = ssub.s32 %s26, %s33
      %p61 = scmp.eq.s32.totalorder %s60, 0
      %s63 = sadd.s32 %s62, 1
      %s64 = scalar_select %p61, %s62, %s63
      %p67 = pneg %p61
      %p68 = scmp.eq.s32.totalorder %s26, 1
      %p69 = por %p67, %p68
      %p70 = scmp.ne.s32.totalorder %s62, %s65
      %p71 = scmp.eq.s32.totalorder %s26, 0
      %p72 = por %p70, %p71
      %p73 = scmp.ne.s32.totalorder %s62, %s65
      %p74 = scmp.eq.s32.totalorder %s31, 1
      %p75 = por %p73, %p74
      %p76 = scmp.ne.s32.totalorder %s65, %s66
      %p77 = scmp.eq.s32.totalorder %s31, 0
      %p78 = por %p76, %p77
      %p79 = scmp.ne.s32.totalorder %s65, %s66
      %p80 = scmp.eq.s32.totalorder %s32, 1
      %p81 = por %p79, %p80
      %p83 = scmp.ne.s32.totalorder %s66, %s82
      %p84 = scmp.eq.s32.totalorder %s32, 0
      %p85 = por %p83, %p84
      %s87 = sadd.s32 %s86, 1
      %p90 = scmp.eq.s32.totalorder %s26, 1
      %p91 = scmp.ne.s32.totalorder %s86, %s88
      %p92 = scmp.eq.s32.totalorder %s26, 0
      %p93 = por %p91, %p92
      %p94 = scmp.ne.s32.totalorder %s86, %s88
      %p95 = scmp.eq.s32.totalorder %s31, 1
      %p96 = por %p94, %p95
      %p97 = scmp.ne.s32.totalorder %s88, %s89
      %p98 = scmp.eq.s32.totalorder %s31, 0
      %p99 = por %p97, %p98
      %p100 = scmp.ne.s32.totalorder %s88, %s89
      %p101 = scmp.eq.s32.totalorder %s32, 1
      %p102 = por %p100, %p101
      %p104 = scmp.ne.s32.totalorder %s89, %s103
      %p105 = scmp.eq.s32.totalorder %s32, 0
      %p106 = por %p104, %p105
      %s108 = sadd.s32 %s107, 1
      %p111 = scmp.eq.s32.totalorder %s26, 1
      %p112 = scmp.ne.s32.totalorder %s107, %s109
      %p113 = scmp.eq.s32.totalorder %s26, 0
      %p114 = por %p112, %p113
      %p115 = scmp.ne.s32.totalorder %s107, %s109
      %p116 = scmp.eq.s32.totalorder %s31, 1
      %p117 = por %p115, %p116
      %p118 = scmp.ne.s32.totalorder %s109, %s110
      %p119 = scmp.eq.s32.totalorder %s31, 0
      %p120 = por %p118, %p119
      %p121 = scmp.ne.s32.totalorder %s109, %s110
      %p122 = scmp.eq.s32.totalorder %s32, 1
      %p123 = por %p121, %p122
      %p125 = scmp.ne.s32.totalorder %s110, %s124
      %p126 = scmp.eq.s32.totalorder %s32, 0
      %p127 = por %p125, %p126
      %s129 = sadd.s32 %s128, 1
      %p132 = scmp.eq.s32.totalorder %s26, 1
      %p133 = scmp.ne.s32.totalorder %s128, %s130
      %p134 = scmp.eq.s32.totalorder %s26, 0
      %p135 = por %p133, %p134
      %p136 = scmp.ne.s32.totalorder %s128, %s130
      %p137 = scmp.eq.s32.totalorder %s31, 1
      %p138 = por %p136, %p137
      %p139 = scmp.ne.s32.totalorder %s130, %s131
      %p140 = scmp.eq.s32.totalorder %s31, 0
      %p141 = por %p139, %p140
      %p142 = scmp.ne.s32.totalorder %s130, %s131
      %p143 = scmp.eq.s32.totalorder %s32, 1
      %p144 = por %p142, %p143
      %p146 = scmp.ne.s32.totalorder %s131, %s145
      %p147 = scmp.eq.s32.totalorder %s32, 0
      %p148 = por %p146, %p147
      %s150 = sadd.s32 %s149, 1
      %p153 = scmp.eq.s32.totalorder %s26, 1
      %p154 = scmp.ne.s32.totalorder %s149, %s151
      %p155 = scmp.eq.s32.totalorder %s26, 0
      %p156 = por %p154, %p155
      %p157 = scmp.ne.s32.totalorder %s149, %s151
      %p158 = scmp.eq.s32.totalorder %s31, 1
      %p159 = por %p157, %p158
      %p160 = scmp.ne.s32.totalorder %s151, %s152
      %p161 = scmp.eq.s32.totalorder %s31, 0
      %p162 = por %p160, %p161
      %p163 = scmp.ne.s32.totalorder %s151, %s152
      %p164 = scmp.eq.s32.totalorder %s32, 1
      %p165 = por %p163, %p164
      %p167 = scmp.ne.s32.totalorder %s152, %s166
      %p168 = scmp.eq.s32.totalorder %s32, 0
      %p169 = por %p167, %p168
      %s171 = sadd.s32 %s170, 1
      %p174 = scmp.eq.s32.totalorder %s26, 1
      %p175 = scmp.ne.s32.totalorder %s170, %s172
      %p176 = scmp.eq.s32.totalorder %s26, 0
      %p177 = por %p175, %p176
      %p178 = scmp.ne.s32.totalorder %s170, %s172
      %p179 = scmp.eq.s32.totalorder %s31, 1
      %p180 = por %p178, %p179
      %p181 = scmp.ne.s32.totalorder %s172, %s173
      %p182 = scmp.eq.s32.totalorder %s31, 0
      %p183 = por %p181, %p182
      %p184 = scmp.ne.s32.totalorder %s172, %s173
      %p185 = scmp.eq.s32.totalorder %s32, 1
      %p186 = por %p184, %p185
      %p188 = scmp.ne.s32.totalorder %s173, %s187
      %p189 = scmp.eq.s32.totalorder %s32, 0
      %p190 = por %p188, %p189
      %s192 = sadd.s32 %s191, 1
      %p195 = scmp.eq.s32.totalorder %s26, 1
      %p196 = scmp.ne.s32.totalorder %s191, %s193
      %p197 = scmp.eq.s32.totalorder %s26, 0
      %p198 = por %p196, %p197
      %p199 = scmp.ne.s32.totalorder %s191, %s193
      %p200 = scmp.eq.s32.totalorder %s31, 1
      %p201 = por %p199, %p200
      %p202 = scmp.ne.s32.totalorder %s193, %s194
      %p203 = scmp.eq.s32.totalorder %s31, 0
      %p204 = por %p202, %p203
      %p205 = scmp.ne.s32.totalorder %s193, %s194
      %p206 = scmp.eq.s32.totalorder %s32, 1
      %p207 = por %p205, %p206
      %p209 = scmp.ne.s32.totalorder %s194, %s208
      %p210 = scmp.eq.s32.totalorder %s32, 0
      %p211 = por %p209, %p210
      %s213 = sadd.s32 %s212, 1
      %p216 = scmp.eq.s32.totalorder %s26, 1
      %p217 = scmp.ne.s32.totalorder %s212, %s214
      %p218 = scmp.eq.s32.totalorder %s26, 0
      %p219 = por %p217, %p218
      %p220 = scmp.ne.s32.totalorder %s212, %s214
      %p221 = scmp.eq.s32.totalorder %s31, 1
      %p222 = por %p220, %p221
      %p223 = scmp.ne.s32.totalorder %s214, %s215
      %p224 = scmp.eq.s32.totalorder %s31, 0
      %p225 = por %p223, %p224
      %p226 = scmp.ne.s32.totalorder %s214, %s215
      %p227 = scmp.eq.s32.totalorder %s32, 1
      %p228 = por %p226, %p227
      %p230 = scmp.ne.s32.totalorder %s215, %s229
      %p231 = scmp.eq.s32.totalorder %s32, 0
      %p232 = por %p230, %p231
      %s234 = sadd.s32 %s233, 1
      %p237 = scmp.eq.s32.totalorder %s26, 1
      %p238 = scmp.ne.s32.totalorder %s233, %s235
      %p239 = scmp.eq.s32.totalorder %s26, 0
      %p240 = por %p238, %p239
      %p241 = scmp.ne.s32.totalorder %s233, %s235
      %p242 = scmp.eq.s32.totalorder %s31, 1
      %p243 = por %p241, %p242
      %p244 = scmp.ne.s32.totalorder %s235, %s236
      %p245 = scmp.eq.s32.totalorder %s31, 0
      %p246 = por %p244, %p245
      %p247 = scmp.ne.s32.totalorder %s235, %s236
      %p248 = scmp.eq.s32.totalorder %s32, 1
      %p249 = por %p247, %p248
      %p251 = scmp.ne.s32.totalorder %s236, %s250
      %p252 = scmp.eq.s32.totalorder %s32, 0
      %p253 = por %p251, %p252
      %s255 = sadd.s32 %s254, 1
      %p258 = scmp.eq.s32.totalorder %s26, 1
      %p259 = scmp.ne.s32.totalorder %s254, %s256
      %p260 = scmp.eq.s32.totalorder %s26, 0
      %p261 = por %p259, %p260
      %p262 = scmp.ne.s32.totalorder %s254, %s256
      %p263 = scmp.eq.s32.totalorder %s31, 1
      %p264 = por %p262, %p263
      %p265 = scmp.ne.s32.totalorder %s256, %s257
      %p266 = scmp.eq.s32.totalorder %s31, 0
      %p267 = por %p265, %p266
      %p268 = scmp.ne.s32.totalorder %s256, %s257
      %p269 = scmp.eq.s32.totalorder %s32, 1
      %p270 = por %p268, %p269
      %p272 = scmp.ne.s32.totalorder %s257, %s271
      %p273 = scmp.eq.s32.totalorder %s32, 0
      %p274 = por %p272, %p273
      %s276 = sadd.s32 %s275, 1
      %p279 = scmp.eq.s32.totalorder %s26, 1
      %p280 = scmp.ne.s32.totalorder %s275, %s277
      %p281 = scmp.eq.s32.totalorder %s26, 0
      %p282 = por %p280, %p281
      %p283 = scmp.ne.s32.totalorder %s275, %s277
      %p284 = scmp.eq.s32.totalorder %s31, 1
      %p285 = por %p283, %p284
      %p286 = scmp.ne.s32.totalorder %s277, %s278
      %p287 = scmp.eq.s32.totalorder %s31, 0
      %p288 = por %p286, %p287
      %p289 = scmp.ne.s32.totalorder %s277, %s278
      %p290 = scmp.eq.s32.totalorder %s32, 1
      %p291 = por %p289, %p290
      %p293 = scmp.ne.s32.totalorder %s278, %s292
      %p294 = scmp.eq.s32.totalorder %s32, 0
      %p295 = por %p293, %p294
      %s296 = ssub.s32 %s26, %s33
      %p297 = scmp.eq.s32.totalorder %s296, 0
      %s299 = sadd.s32 %s298, 1
      %s300 = scalar_select %p297, %s298, %s299
      %p303 = pneg %p297
      %p304 = scmp.eq.s32.totalorder %s26, 1
      %p305 = por %p303, %p304
      %p306 = scmp.ne.s32.totalorder %s298, %s301
      %p307 = scmp.eq.s32.totalorder %s26, 0
      %p308 = por %p306, %p307
      %p309 = scmp.ne.s32.totalorder %s298, %s301
      %p310 = scmp.eq.s32.totalorder %s31, 1
      %p311 = por %p309, %p310
      %p312 = scmp.ne.s32.totalorder %s301, %s302
      %p313 = scmp.eq.s32.totalorder %s31, 0
      %p314 = por %p312, %p313
      %p315 = scmp.ne.s32.totalorder %s301, %s302
      %p316 = scmp.eq.s32.totalorder %s32, 1
      %p317 = por %p315, %p316
      %p319 = scmp.ne.s32.totalorder %s302, %s318
      %p320 = scmp.eq.s32.totalorder %s32, 0
      %p321 = por %p319, %p320
      %p322 = scmp.le.s32.totalorder 1, %s26
      %p323 = scmp.lt.s32.totalorder %s26, 3
      %p324 = pnand %p322, %p323
      %p325 = pneg %p324
      // Predicated region
      $region9: #{tpu_custom_call.1} parent=5 // pred_check
        _
      $region10: #{tpu_custom_call.1} parent=5 // pred_check_branch
        %327 = sbr.rel (%p324) target = $region12
      $region11: #{tpu_custom_call.1} parent=5 // pred_region
        %s328 = ssub.s32 %s26, 1
        // Predicated region
        $region13: #{tpu_custom_call.1} parent=11 // pred_check
          %p329 = pneg %p99
        $region14: #{tpu_custom_call.1} parent=11 // pred_check_branch
          %331 = sbr.rel (%p329) target = $region16
        $region15: #{tpu_custom_call.1} parent=11 // pred_region
          _
        $region16: #{tpu_custom_call.1} parent=11 // pred_fallthru
          _
        // Predicated region
        $region17: #{tpu_custom_call.1} parent=11 // pred_check
          %p332 = pneg %p120
        $region18: #{tpu_custom_call.1} parent=11 // pred_check_branch
          %334 = sbr.rel (%p332) target = $region20
        $region19: #{tpu_custom_call.1} parent=11 // pred_region
          %s336 = ssub.s32 512, 512
          %337 = vsyncadd [#allocation8], %s336
          %s338 = sshll.u32 [#allocation7], 4
          %s339 = int_to_ptr.vmem [resolvable:$true] %s338
          %344 = dma.hbm_to_vmem [thread:$0]  %s3, 512, %s339, [#allocation8], 128, 128, 8
        $region20: #{tpu_custom_call.1} parent=11 // pred_fallthru
          _
        // Predicated region
        $region21: #{tpu_custom_call.1} parent=11 // pred_check
          %p345 = pneg %p141
        $region22: #{tpu_custom_call.1} parent=11 // pred_check_branch
          %347 = sbr.rel (%p345) target = $region24
        $region23: #{tpu_custom_call.1} parent=11 // pred_region
          _
        $region24: #{tpu_custom_call.1} parent=11 // pred_fallthru
          _
        // Predicated region
        $region25: #{tpu_custom_call.1} parent=11 // pred_check
          %p348 = pneg %p162
        $region26: #{tpu_custom_call.1} parent=11 // pred_check_branch
          %350 = sbr.rel (%p348) target = $region28
        $region27: #{tpu_custom_call.1} parent=11 // pred_region
          %s352 = ssub.s32 512, 512
          %353 = vsyncadd [#allocation8], %s352
          %s354 = sshll.u32 [#allocation9], 4
          %s355 = int_to_ptr.vmem [resolvable:$true] %s354
          %360 = dma.hbm_to_vmem [thread:$0]  %s5, 512, %s355, [#allocation8], 128, 128, 8
        $region28: #{tpu_custom_call.1} parent=11 // pred_fallthru
          _
        // Predicated region
        $region29: #{tpu_custom_call.1} parent=11 // pred_check
          %p361 = pneg %p183
        $region30: #{tpu_custom_call.1} parent=11 // pred_check_branch
          %363 = sbr.rel (%p361) target = $region32
        $region31: #{tpu_custom_call.1} parent=11 // pred_region
          %s365 = ssub.s32 512, 512
          %366 = vsyncadd [#allocation11], %s365
          %s367 = sshll.u32 [#allocation10], 4
          %s368 = int_to_ptr.vmem [resolvable:$true] %s367
          %373 = dma.hbm_to_vmem [thread:$0]  %s6, 512, %s368, [#allocation11], 128, 128, 8
        $region32: #{tpu_custom_call.1} parent=11 // pred_fallthru
          _
        // Predicated region
        $region33: #{tpu_custom_call.1} parent=11 // pred_check
          %p374 = pneg %p204
        $region34: #{tpu_custom_call.1} parent=11 // pred_check_branch
          %376 = sbr.rel (%p374) target = $region36
        $region35: #{tpu_custom_call.1} parent=11 // pred_region
          %s378 = ssub.s32 512, 512
          %379 = vsyncadd [#allocation11], %s378
          %s380 = sshll.u32 [#allocation12], 4
          %s381 = int_to_ptr.vmem [resolvable:$true] %s380
          %386 = dma.hbm_to_vmem [thread:$0]  %s7, 512, %s381, [#allocation11], 128, 128, 8
        $region36: #{tpu_custom_call.1} parent=11 // pred_fallthru
          _
        // Predicated region
        $region37: #{tpu_custom_call.1} parent=11 // pred_check
          %p387 = pneg %p225
        $region38: #{tpu_custom_call.1} parent=11 // pred_check_branch
          %389 = sbr.rel (%p387) target = $region40
        $region39: #{tpu_custom_call.1} parent=11 // pred_region
          _
        $region40: #{tpu_custom_call.1} parent=11 // pred_fallthru
          _
        // Predicated region
        $region41: #{tpu_custom_call.1} parent=11 // pred_check
          %p390 = pneg %p246
        $region42: #{tpu_custom_call.1} parent=11 // pred_check_branch
          %392 = sbr.rel (%p390) target = $region44
        $region43: #{tpu_custom_call.1} parent=11 // pred_region
          _
        $region44: #{tpu_custom_call.1} parent=11 // pred_fallthru
          _
        // Predicated region
        $region45: #{tpu_custom_call.1} parent=11 // pred_check
          %p393 = pneg %p267
        $region46: #{tpu_custom_call.1} parent=11 // pred_check_branch
          %395 = sbr.rel (%p393) target = $region48
        $region47: #{tpu_custom_call.1} parent=11 // pred_region
          _
        $region48: #{tpu_custom_call.1} parent=11 // pred_fallthru
          _
        // Predicated region
        $region49: #{tpu_custom_call.1} parent=11 // pred_check
          %p396 = pneg %p288
        $region50: #{tpu_custom_call.1} parent=11 // pred_check_branch
          %398 = sbr.rel (%p396) target = $region52
        $region51: #{tpu_custom_call.1} parent=11 // pred_region
          _
        $region52: #{tpu_custom_call.1} parent=11 // pred_fallthru
          _
      $region12: #{tpu_custom_call.1} parent=5 // pred_fallthru
        _
      %p399 = scmp.lt.s32.totalorder %s26, 2
      // Predicated region
      $region53: #{tpu_custom_call.1} parent=5 // pred_check
        %p400 = pneg %p399
      $region54: #{tpu_custom_call.1} parent=5 // pred_check_branch
        %402 = sbr.rel (%p400) target = $region56
      $region55: #{tpu_custom_call.1} parent=5 // pred_region
        // Predicated region
        $region57: #{tpu_custom_call.1} parent=55 // pred_check
          %p403 = pneg %p46
        $region58: #{tpu_custom_call.1} parent=55 // pred_check_branch
          %405 = sbr.rel (%p403) target = $region60
        $region59: #{tpu_custom_call.1} parent=55 // pred_region
          %p406 = scmp.lt.s32.totalorder %s26, 1
          %s407 = scalar_select %p406, %s26, 1
          %s408 = smul.addr %s407, 8
          %s409 = smul.addr %s408, 8
          %s410 = scalar_lea.vmem %s0, %s409
        $region60: #{tpu_custom_call.1} parent=55 // pred_fallthru
          _
        // Predicated region
        $region61: #{tpu_custom_call.1} parent=55 // pred_check
          %p411 = pneg %p72
        $region62: #{tpu_custom_call.1} parent=55 // pred_check_branch
          %413 = sbr.rel (%p411) target = $region64
        $region63: #{tpu_custom_call.1} parent=55 // pred_region
          %s414 = sand.u32 %s62, 1
          %s415 = scalar_lea.sflag [#allocation5], %s414
          %s416 = sand.u32 %s62, 1
          %s417 = smul.addr %s416, 64
          %s418 = scalar_lea.vmem [#allocation4], %s417
          %s420 = ssub.s32 1024, 1024
          %421 = vsyncadd %s415, %s420
          %s422 = smul.addr %s26, 8
          %s423 = smul.addr %s422, 128
          %s424 = scalar_lea.hbm %s1, %s423
          %s425 = sshll.u32 %s418, 4
          %s426 = int_to_ptr.vmem [resolvable:$true] %s425
          %431 = dma.hbm_to_vmem [thread:$0]  %s424, 1024, %s426, %s415, 128, 128, 8
        $region64: #{tpu_custom_call.1} parent=55 // pred_fallthru
          _
      $region56: #{tpu_custom_call.1} parent=5 // pred_fallthru
        _
      %p432 = scmp.le.s32.totalorder 1, %s26
      %p433 = scmp.lt.s32.totalorder %s26, 3
      %p434 = pnand %p432, %p433
      %p435 = pneg %p434
      // Predicated region
      $region65: #{tpu_custom_call.1} parent=5 // pred_check
        _
      $region66: #{tpu_custom_call.1} parent=5 // pred_check_branch
        %437 = sbr.rel (%p434) target = $region68
      $region67: #{tpu_custom_call.1} parent=5 // pred_region
        %s438 = ssub.s32 %s26, 1
        %s439 = sand.u32 %s65, 1
        %s440 = scalar_lea.sflag [#allocation5], %s439
        %s441 = sand.u32 %s65, 1
        %s442 = smul.addr %s441, 64
        %s443 = scalar_lea.vmem [#allocation4], %s442
        // Predicated region
        $region69: #{tpu_custom_call.1} parent=67 // pred_check
          %p444 = pneg %p78
        $region70: #{tpu_custom_call.1} parent=67 // pred_check_branch
          %446 = sbr.rel (%p444) target = $region72
        $region71: #{tpu_custom_call.1} parent=67 // pred_region
          %447 = dma.done %s440, 1024
        $region72: #{tpu_custom_call.1} parent=67 // pred_fallthru
          _
        // Predicated region
        $region73: #{tpu_custom_call.1} parent=67 // pred_check
          %p448 = pneg %p120
        $region74: #{tpu_custom_call.1} parent=67 // pred_check_branch
          %450 = sbr.rel (%p448) target = $region76
        $region75: #{tpu_custom_call.1} parent=67 // pred_region
          %451 = dma.done [#allocation8], 512
        $region76: #{tpu_custom_call.1} parent=67 // pred_fallthru
          _
        // Predicated region
        $region77: #{tpu_custom_call.1} parent=67 // pred_check
          %p452 = pneg %p162
        $region78: #{tpu_custom_call.1} parent=67 // pred_check_branch
          %454 = sbr.rel (%p452) target = $region80
        $region79: #{tpu_custom_call.1} parent=67 // pred_region
          %455 = dma.done [#allocation8], 512
        $region80: #{tpu_custom_call.1} parent=67 // pred_fallthru
          _
        // Predicated region
        $region81: #{tpu_custom_call.1} parent=67 // pred_check
          %p456 = pneg %p183
        $region82: #{tpu_custom_call.1} parent=67 // pred_check_branch
          %458 = sbr.rel (%p456) target = $region84
        $region83: #{tpu_custom_call.1} parent=67 // pred_region
          %459 = dma.done [#allocation11], 512
        $region84: #{tpu_custom_call.1} parent=67 // pred_fallthru
          _
        // Predicated region
        $region85: #{tpu_custom_call.1} parent=67 // pred_check
          %p460 = pneg %p204
        $region86: #{tpu_custom_call.1} parent=67 // pred_check_branch
          %462 = sbr.rel (%p460) target = $region88
        $region87: #{tpu_custom_call.1} parent=67 // pred_region
          %463 = dma.done [#allocation11], 512
        $region88: #{tpu_custom_call.1} parent=67 // pred_fallthru
          _
        %p464 = scmp.lt.s32.totalorder %s31, 1
        %s465 = scalar_select %p464, %s31, 1
        %s466 = smul.addr %s465, 8
        %s467 = smul.addr %s466, 8
        %s468 = scalar_lea.vmem %s0, %s467
        %p469 = pneg %p52
        %p470 = pneg %p49
        %s471 = sand.u32 %s65, 1
        %s472 = scalar_lea.sflag [#allocation5], %s471
        %s473 = sand.u32 %s65, 1
        %s474 = smul.addr %s473, 64
        %s475 = scalar_lea.vmem [#allocation4], %s474
        %p476 = pneg %p78
        %p477 = pneg %p75
        %p478 = pneg %p99
        %p479 = pneg %p96
        %p480 = pneg %p120
        %p481 = pneg %p117
        %p482 = pneg %p141
        %p483 = pneg %p138
        %p484 = pneg %p162
        %p485 = pneg %p159
        %p486 = pneg %p183
        %p487 = pneg %p180
        %p488 = pneg %p204
        %p489 = pneg %p201
        %p490 = pneg %p225
        %p491 = pneg %p222
        %p492 = pneg %p246
        %p493 = pneg %p243
        %p494 = pneg %p267
        %p495 = pneg %p264
        %p496 = pneg %p288
        %p497 = pneg %p285
        %p498 = pneg %p314
        %p499 = pneg %p311
        %s500 = sand.u32 %s301, 1
        %s501 = scalar_lea.sflag [#allocation6], %s500
        %s502 = sand.u32 %s301, 1
        %s503 = smul.addr %s502, 64
        %s504 = scalar_lea.vmem [#allocation13], %s503
        %p505 = scmp.lt.s32.totalorder %s31, 1
        %s506 = scalar_select %p505, %s31, 1
        %s507 = smul.addr %s506, 8
        %s508 = smul.addr %s507, 8
        %s509 = scalar_lea.vmem %s0, %s508
        %v510 = vld [vmem:[%s509] sm:$0x1]
        %v511 = vld [vmem:[%s509 + $0x8] sm:$0x1]
        %v512 = vld [vmem:[%s509 + $0x10] sm:$0x1]
        %v513 = vld [vmem:[%s509 + $0x18] sm:$0x1]
        %v514 = vld [vmem:[%s509 + $0x20] sm:$0x1]
        %v515 = vld [vmem:[%s509 + $0x28] sm:$0x1]
        %v516 = vld [vmem:[%s509 + $0x30] sm:$0x1]
        %v517 = vld [vmem:[%s509 + $0x38] sm:$0x1]
        %v526 = vrot.slane %v511, 7
        %vm527 = vcmask 1041409
        %v528 = vsel %vm527, %v526, %v510
        %v529 = vrot.slane %v512, 6
        %vm530 = vcmask 1042434
        %v531 = vsel %vm530, %v529, %v528
        %v532 = vrot.slane %v513, 5
        %vm533 = vcmask 1043459
        %v534 = vsel %vm533, %v532, %v531
        %v535 = vrot.slane %v514, 4
        %vm536 = vcmask 1044484
        %v537 = vsel %vm536, %v535, %v534
        %v538 = vrot.slane %v515, 3
        %vm539 = vcmask 1045509
        %v540 = vsel %vm539, %v538, %v537
        %v541 = vrot.slane %v516, 2
        %vm542 = vcmask 1046534
        %v543 = vsel %vm542, %v541, %v540
        %v544 = vrot.slane %v517, 1
        %vm545 = vcmask 1047559
        %v546 = vsel %vm545, %v544, %v543
        %vm548 = vcmask 261120
        %549 = vst.msk [vmem:[#allocation2] sm:$0xff] %vm548, %v546
        %v550 = vld [vmem:[%s443] sm:$0x1]
        %v551 = vld [vmem:[%s443 + $0x8] sm:$0x1]
        %v552 = vld [vmem:[%s443 + $0x10] sm:$0x1]
        %v553 = vld [vmem:[%s443 + $0x18] sm:$0x1]
        %v554 = vld [vmem:[%s443 + $0x20] sm:$0x1]
        %v555 = vld [vmem:[%s443 + $0x28] sm:$0x1]
        %v556 = vld [vmem:[%s443 + $0x30] sm:$0x1]
        %v557 = vld [vmem:[%s443 + $0x38] sm:$0x1]
        %v566 = vrot.slane %v551, 7
        %v567 = vsel %vm527, %v566, %v550
        %v568 = vrot.slane %v552, 6
        %v569 = vsel %vm530, %v568, %v567
        %v570 = vrot.slane %v553, 5
        %v571 = vsel %vm533, %v570, %v569
        %v572 = vrot.slane %v554, 4
        %v573 = vsel %vm536, %v572, %v571
        %v574 = vrot.slane %v555, 3
        %v575 = vsel %vm539, %v574, %v573
        %v576 = vrot.slane %v556, 2
        %v577 = vsel %vm542, %v576, %v575
        %v578 = vrot.slane %v557, 1
        %v579 = vsel %vm545, %v578, %v577
        %581 = vst.msk [vmem:[#allocation3] sm:$0xff] %vm548, %v579
        %v582 = vld [vmem:[%s509 + $0x1] sm:$0x1]
        %v583 = vld [vmem:[%s509 + $0x9] sm:$0x1]
        %v584 = vld [vmem:[%s509 + $0x11] sm:$0x1]
        %v585 = vld [vmem:[%s509 + $0x19] sm:$0x1]
        %v586 = vld [vmem:[%s509 + $0x21] sm:$0x1]
        %v587 = vld [vmem:[%s509 + $0x29] sm:$0x1]
        %v588 = vld [vmem:[%s509 + $0x31] sm:$0x1]
        %v589 = vld [vmem:[%s509 + $0x39] sm:$0x1]
        %v598 = vrot.slane %v583, 7
        %v599 = vsel %vm527, %v598, %v582
        %v600 = vrot.slane %v584, 6
        %v601 = vsel %vm530, %v600, %v599
        %v602 = vrot.slane %v585, 5
        %v603 = vsel %vm533, %v602, %v601
        %v604 = vrot.slane %v586, 4
        %v605 = vsel %vm536, %v604, %v603
        %v606 = vrot.slane %v587, 3
        %v607 = vsel %vm539, %v606, %v605
        %v608 = vrot.slane %v588, 2
        %v609 = vsel %vm542, %v608, %v607
        %v610 = vrot.slane %v589, 1
        %v611 = vsel %vm545, %v610, %v609
        %s613 = scalar_lea.vmem [#allocation2], 8
        %614 = vst.msk [vmem:[%s613] sm:$0xff] %vm548, %v611
        %v615 = vld [vmem:[%s443 + $0x1] sm:$0x1]
        %v616 = vld [vmem:[%s443 + $0x9] sm:$0x1]
        %v617 = vld [vmem:[%s443 + $0x11] sm:$0x1]
        %v618 = vld [vmem:[%s443 + $0x19] sm:$0x1]
        %v619 = vld [vmem:[%s443 + $0x21] sm:$0x1]
        %v620 = vld [vmem:[%s443 + $0x29] sm:$0x1]
        %v621 = vld [vmem:[%s443 + $0x31] sm:$0x1]
        %v622 = vld [vmem:[%s443 + $0x39] sm:$0x1]
        %v631 = vrot.slane %v616, 7
        %v632 = vsel %vm527, %v631, %v615
        %v633 = vrot.slane %v617, 6
        %v634 = vsel %vm530, %v633, %v632
        %v635 = vrot.slane %v618, 5
        %v636 = vsel %vm533, %v635, %v634
        %v637 = vrot.slane %v619, 4
        %v638 = vsel %vm536, %v637, %v636
        %v639 = vrot.slane %v620, 3
        %v640 = vsel %vm539, %v639, %v638
        %v641 = vrot.slane %v621, 2
        %v642 = vsel %vm542, %v641, %v640
        %v643 = vrot.slane %v622, 1
        %v644 = vsel %vm545, %v643, %v642
        %s646 = scalar_lea.vmem [#allocation3], 8
        %647 = vst.msk [vmem:[%s646] sm:$0xff] %vm548, %v644
        %v648 = vld [vmem:[%s509 + $0x2] sm:$0x1]
        %v649 = vld [vmem:[%s509 + $0xa] sm:$0x1]
        %v650 = vld [vmem:[%s509 + $0x12] sm:$0x1]
        %v651 = vld [vmem:[%s509 + $0x1a] sm:$0x1]
        %v652 = vld [vmem:[%s509 + $0x22] sm:$0x1]
        %v653 = vld [vmem:[%s509 + $0x2a] sm:$0x1]
        %v654 = vld [vmem:[%s509 + $0x32] sm:$0x1]
        %v655 = vld [vmem:[%s509 + $0x3a] sm:$0x1]
        %v664 = vrot.slane %v649, 7
        %v665 = vsel %vm527, %v664, %v648
        %v666 = vrot.slane %v650, 6
        %v667 = vsel %vm530, %v666, %v665
        %v668 = vrot.slane %v651, 5
        %v669 = vsel %vm533, %v668, %v667
        %v670 = vrot.slane %v652, 4
        %v671 = vsel %vm536, %v670, %v669
        %v672 = vrot.slane %v653, 3
        %v673 = vsel %vm539, %v672, %v671
        %v674 = vrot.slane %v654, 2
        %v675 = vsel %vm542, %v674, %v673
        %v676 = vrot.slane %v655, 1
        %v677 = vsel %vm545, %v676, %v675
        %s679 = scalar_lea.vmem [#allocation2], 16
        %680 = vst.msk [vmem:[%s679] sm:$0xff] %vm548, %v677
        %v681 = vld [vmem:[%s443 + $0x2] sm:$0x1]
        %v682 = vld [vmem:[%s443 + $0xa] sm:$0x1]
        %v683 = vld [vmem:[%s443 + $0x12] sm:$0x1]
        %v684 = vld [vmem:[%s443 + $0x1a] sm:$0x1]
        %v685 = vld [vmem:[%s443 + $0x22] sm:$0x1]
        %v686 = vld [vmem:[%s443 + $0x2a] sm:$0x1]
        %v687 = vld [vmem:[%s443 + $0x32] sm:$0x1]
        %v688 = vld [vmem:[%s443 + $0x3a] sm:$0x1]
        %v697 = vrot.slane %v682, 7
        %v698 = vsel %vm527, %v697, %v681
        %v699 = vrot.slane %v683, 6
        %v700 = vsel %vm530, %v699, %v698
        %v701 = vrot.slane %v684, 5
        %v702 = vsel %vm533, %v701, %v700
        %v703 = vrot.slane %v685, 4
        %v704 = vsel %vm536, %v703, %v702
        %v705 = vrot.slane %v686, 3
        %v706 = vsel %vm539, %v705, %v704
        %v707 = vrot.slane %v687, 2
        %v708 = vsel %vm542, %v707, %v706
        %v709 = vrot.slane %v688, 1
        %v710 = vsel %vm545, %v709, %v708
        %s712 = scalar_lea.vmem [#allocation3], 16
        %713 = vst.msk [vmem:[%s712] sm:$0xff] %vm548, %v710
        %v714 = vld [vmem:[%s509 + $0x3] sm:$0x1]
        %v715 = vld [vmem:[%s509 + $0xb] sm:$0x1]
        %v716 = vld [vmem:[%s509 + $0x13] sm:$0x1]
        %v717 = vld [vmem:[%s509 + $0x1b] sm:$0x1]
        %v718 = vld [vmem:[%s509 + $0x23] sm:$0x1]
        %v719 = vld [vmem:[%s509 + $0x2b] sm:$0x1]
        %v720 = vld [vmem:[%s509 + $0x33] sm:$0x1]
        %v721 = vld [vmem:[%s509 + $0x3b] sm:$0x1]
        %v730 = vrot.slane %v715, 7
        %v731 = vsel %vm527, %v730, %v714
        %v732 = vrot.slane %v716, 6
        %v733 = vsel %vm530, %v732, %v731
        %v734 = vrot.slane %v717, 5
        %v735 = vsel %vm533, %v734, %v733
        %v736 = vrot.slane %v718, 4
        %v737 = vsel %vm536, %v736, %v735
        %v738 = vrot.slane %v719, 3
        %v739 = vsel %vm539, %v738, %v737
        %v740 = vrot.slane %v720, 2
        %v741 = vsel %vm542, %v740, %v739
        %v742 = vrot.slane %v721, 1
        %v743 = vsel %vm545, %v742, %v741
        %s745 = scalar_lea.vmem [#allocation2], 24
        %746 = vst.msk [vmem:[%s745] sm:$0xff] %vm548, %v743
        %v747 = vld [vmem:[%s443 + $0x3] sm:$0x1]
        %v748 = vld [vmem:[%s443 + $0xb] sm:$0x1]
        %v749 = vld [vmem:[%s443 + $0x13] sm:$0x1]
        %v750 = vld [vmem:[%s443 + $0x1b] sm:$0x1]
        %v751 = vld [vmem:[%s443 + $0x23] sm:$0x1]
        %v752 = vld [vmem:[%s443 + $0x2b] sm:$0x1]
        %v753 = vld [vmem:[%s443 + $0x33] sm:$0x1]
        %v754 = vld [vmem:[%s443 + $0x3b] sm:$0x1]
        %v763 = vrot.slane %v748, 7
        %v764 = vsel %vm527, %v763, %v747
        %v765 = vrot.slane %v749, 6
        %v766 = vsel %vm530, %v765, %v764
        %v767 = vrot.slane %v750, 5
        %v768 = vsel %vm533, %v767, %v766
        %v769 = vrot.slane %v751, 4
        %v770 = vsel %vm536, %v769, %v768
        %v771 = vrot.slane %v752, 3
        %v772 = vsel %vm539, %v771, %v770
        %v773 = vrot.slane %v753, 2
        %v774 = vsel %vm542, %v773, %v772
        %v775 = vrot.slane %v754, 1
        %v776 = vsel %vm545, %v775, %v774
        %s778 = scalar_lea.vmem [#allocation3], 24
        %779 = vst.msk [vmem:[%s778] sm:$0xff] %vm548, %v776
        %v780 = vld [vmem:[%s509 + $0x4] sm:$0x1]
        %v781 = vld [vmem:[%s509 + $0xc] sm:$0x1]
        %v782 = vld [vmem:[%s509 + $0x14] sm:$0x1]
        %v783 = vld [vmem:[%s509 + $0x1c] sm:$0x1]
        %v784 = vld [vmem:[%s509 + $0x24] sm:$0x1]
        %v785 = vld [vmem:[%s509 + $0x2c] sm:$0x1]
        %v786 = vld [vmem:[%s509 + $0x34] sm:$0x1]
        %v787 = vld [vmem:[%s509 + $0x3c] sm:$0x1]
        %v796 = vrot.slane %v781, 7
        %v797 = vsel %vm527, %v796, %v780
        %v798 = vrot.slane %v782, 6
        %v799 = vsel %vm530, %v798, %v797
        %v800 = vrot.slane %v783, 5
        %v801 = vsel %vm533, %v800, %v799
        %v802 = vrot.slane %v784, 4
        %v803 = vsel %vm536, %v802, %v801
        %v804 = vrot.slane %v785, 3
        %v805 = vsel %vm539, %v804, %v803
        %v806 = vrot.slane %v786, 2
        %v807 = vsel %vm542, %v806, %v805
        %v808 = vrot.slane %v787, 1
        %v809 = vsel %vm545, %v808, %v807
        %s811 = scalar_lea.vmem [#allocation2], 32
        %812 = vst.msk [vmem:[%s811] sm:$0xff] %vm548, %v809
        %v813 = vld [vmem:[%s443 + $0x4] sm:$0x1]
        %v814 = vld [vmem:[%s443 + $0xc] sm:$0x1]
        %v815 = vld [vmem:[%s443 + $0x14] sm:$0x1]
        %v816 = vld [vmem:[%s443 + $0x1c] sm:$0x1]
        %v817 = vld [vmem:[%s443 + $0x24] sm:$0x1]
        %v818 = vld [vmem:[%s443 + $0x2c] sm:$0x1]
        %v819 = vld [vmem:[%s443 + $0x34] sm:$0x1]
        %v820 = vld [vmem:[%s443 + $0x3c] sm:$0x1]
        %v829 = vrot.slane %v814, 7
        %v830 = vsel %vm527, %v829, %v813
        %v831 = vrot.slane %v815, 6
        %v832 = vsel %vm530, %v831, %v830
        %v833 = vrot.slane %v816, 5
        %v834 = vsel %vm533, %v833, %v832
        %v835 = vrot.slane %v817, 4
        %v836 = vsel %vm536, %v835, %v834
        %v837 = vrot.slane %v818, 3
        %v838 = vsel %vm539, %v837, %v836
        %v839 = vrot.slane %v819, 2
        %v840 = vsel %vm542, %v839, %v838
        %v841 = vrot.slane %v820, 1
        %v842 = vsel %vm545, %v841, %v840
        %s844 = scalar_lea.vmem [#allocation3], 32
        %845 = vst.msk [vmem:[%s844] sm:$0xff] %vm548, %v842
        %v846 = vld [vmem:[%s509 + $0x5] sm:$0x1]
        %v847 = vld [vmem:[%s509 + $0xd] sm:$0x1]
        %v848 = vld [vmem:[%s509 + $0x15] sm:$0x1]
        %v849 = vld [vmem:[%s509 + $0x1d] sm:$0x1]
        %v850 = vld [vmem:[%s509 + $0x25] sm:$0x1]
        %v851 = vld [vmem:[%s509 + $0x2d] sm:$0x1]
        %v852 = vld [vmem:[%s509 + $0x35] sm:$0x1]
        %v853 = vld [vmem:[%s509 + $0x3d] sm:$0x1]
        %v862 = vrot.slane %v847, 7
        %v863 = vsel %vm527, %v862, %v846
        %v864 = vrot.slane %v848, 6
        %v865 = vsel %vm530, %v864, %v863
        %v866 = vrot.slane %v849, 5
        %v867 = vsel %vm533, %v866, %v865
        %v868 = vrot.slane %v850, 4
        %v869 = vsel %vm536, %v868, %v867
        %v870 = vrot.slane %v851, 3
        %v871 = vsel %vm539, %v870, %v869
        %v872 = vrot.slane %v852, 2
        %v873 = vsel %vm542, %v872, %v871
        %v874 = vrot.slane %v853, 1
        %v875 = vsel %vm545, %v874, %v873
        %s877 = scalar_lea.vmem [#allocation2], 40
        %878 = vst.msk [vmem:[%s877] sm:$0xff] %vm548, %v875
        %v879 = vld [vmem:[%s443 + $0x5] sm:$0x1]
        %v880 = vld [vmem:[%s443 + $0xd] sm:$0x1]
        %v881 = vld [vmem:[%s443 + $0x15] sm:$0x1]
        %v882 = vld [vmem:[%s443 + $0x1d] sm:$0x1]
        %v883 = vld [vmem:[%s443 + $0x25] sm:$0x1]
        %v884 = vld [vmem:[%s443 + $0x2d] sm:$0x1]
        %v885 = vld [vmem:[%s443 + $0x35] sm:$0x1]
        %v886 = vld [vmem:[%s443 + $0x3d] sm:$0x1]
        %v895 = vrot.slane %v880, 7
        %v896 = vsel %vm527, %v895, %v879
        %v897 = vrot.slane %v881, 6
        %v898 = vsel %vm530, %v897, %v896
        %v899 = vrot.slane %v882, 5
        %v900 = vsel %vm533, %v899, %v898
        %v901 = vrot.slane %v883, 4
        %v902 = vsel %vm536, %v901, %v900
        %v903 = vrot.slane %v884, 3
        %v904 = vsel %vm539, %v903, %v902
        %v905 = vrot.slane %v885, 2
        %v906 = vsel %vm542, %v905, %v904
        %v907 = vrot.slane %v886, 1
        %v908 = vsel %vm545, %v907, %v906
        %s910 = scalar_lea.vmem [#allocation3], 40
        %911 = vst.msk [vmem:[%s910] sm:$0xff] %vm548, %v908
        %v912 = vld [vmem:[%s509 + $0x6] sm:$0x1]
        %v913 = vld [vmem:[%s509 + $0xe] sm:$0x1]
        %v914 = vld [vmem:[%s509 + $0x16] sm:$0x1]
        %v915 = vld [vmem:[%s509 + $0x1e] sm:$0x1]
        %v916 = vld [vmem:[%s509 + $0x26] sm:$0x1]
        %v917 = vld [vmem:[%s509 + $0x2e] sm:$0x1]
        %v918 = vld [vmem:[%s509 + $0x36] sm:$0x1]
        %v919 = vld [vmem:[%s509 + $0x3e] sm:$0x1]
        %v928 = vrot.slane %v913, 7
        %v929 = vsel %vm527, %v928, %v912
        %v930 = vrot.slane %v914, 6
        %v931 = vsel %vm530, %v930, %v929
        %v932 = vrot.slane %v915, 5
        %v933 = vsel %vm533, %v932, %v931
        %v934 = vrot.slane %v916, 4
        %v935 = vsel %vm536, %v934, %v933
        %v936 = vrot.slane %v917, 3
        %v937 = vsel %vm539, %v936, %v935
        %v938 = vrot.slane %v918, 2
        %v939 = vsel %vm542, %v938, %v937
        %v940 = vrot.slane %v919, 1
        %v941 = vsel %vm545, %v940, %v939
        %s943 = scalar_lea.vmem [#allocation2], 48
        %944 = vst.msk [vmem:[%s943] sm:$0xff] %vm548, %v941
        %v945 = vld [vmem:[%s443 + $0x6] sm:$0x1]
        %v946 = vld [vmem:[%s443 + $0xe] sm:$0x1]
        %v947 = vld [vmem:[%s443 + $0x16] sm:$0x1]
        %v948 = vld [vmem:[%s443 + $0x1e] sm:$0x1]
        %v949 = vld [vmem:[%s443 + $0x26] sm:$0x1]
        %v950 = vld [vmem:[%s443 + $0x2e] sm:$0x1]
        %v951 = vld [vmem:[%s443 + $0x36] sm:$0x1]
        %v952 = vld [vmem:[%s443 + $0x3e] sm:$0x1]
        %v961 = vrot.slane %v946, 7
        %v962 = vsel %vm527, %v961, %v945
        %v963 = vrot.slane %v947, 6
        %v964 = vsel %vm530, %v963, %v962
        %v965 = vrot.slane %v948, 5
        %v966 = vsel %vm533, %v965, %v964
        %v967 = vrot.slane %v949, 4
        %v968 = vsel %vm536, %v967, %v966
        %v969 = vrot.slane %v950, 3
        %v970 = vsel %vm539, %v969, %v968
        %v971 = vrot.slane %v951, 2
        %v972 = vsel %vm542, %v971, %v970
        %v973 = vrot.slane %v952, 1
        %v974 = vsel %vm545, %v973, %v972
        %s976 = scalar_lea.vmem [#allocation3], 48
        %977 = vst.msk [vmem:[%s976] sm:$0xff] %vm548, %v974
        %v978 = vld [vmem:[%s509 + $0x7] sm:$0x1]
        %v979 = vld [vmem:[%s509 + $0xf] sm:$0x1]
        %v980 = vld [vmem:[%s509 + $0x17] sm:$0x1]
        %v981 = vld [vmem:[%s509 + $0x1f] sm:$0x1]
        %v982 = vld [vmem:[%s509 + $0x27] sm:$0x1]
        %v983 = vld [vmem:[%s509 + $0x2f] sm:$0x1]
        %v984 = vld [vmem:[%s509 + $0x37] sm:$0x1]
        %v985 = vld [vmem:[%s509 + $0x3f] sm:$0x1]
        %v994 = vrot.slane %v979, 7
        %v995 = vsel %vm527, %v994, %v978
        %v996 = vrot.slane %v980, 6
        %v997 = vsel %vm530, %v996, %v995
        %v998 = vrot.slane %v981, 5
        %v999 = vsel %vm533, %v998, %v997
        %v1000 = vrot.slane %v982, 4
        %v1001 = vsel %vm536, %v1000, %v999
        %v1002 = vrot.slane %v983, 3
        %v1003 = vsel %vm539, %v1002, %v1001
        %v1004 = vrot.slane %v984, 2
        %v1005 = vsel %vm542, %v1004, %v1003
        %v1006 = vrot.slane %v985, 1
        %v1007 = vsel %vm545, %v1006, %v1005
        %s1009 = scalar_lea.vmem [#allocation2], 56
        %1010 = vst.msk [vmem:[%s1009] sm:$0xff] %vm548, %v1007
        %v1011 = vld [vmem:[%s443 + $0x7] sm:$0x1]
        %v1012 = vld [vmem:[%s443 + $0xf] sm:$0x1]
        %v1013 = vld [vmem:[%s443 + $0x17] sm:$0x1]
        %v1014 = vld [vmem:[%s443 + $0x1f] sm:$0x1]
        %v1015 = vld [vmem:[%s443 + $0x27] sm:$0x1]
        %v1016 = vld [vmem:[%s443 + $0x2f] sm:$0x1]
        %v1017 = vld [vmem:[%s443 + $0x37] sm:$0x1]
        %v1018 = vld [vmem:[%s443 + $0x3f] sm:$0x1]
        %v1027 = vrot.slane %v1012, 7
        %v1028 = vsel %vm527, %v1027, %v1011
        %v1029 = vrot.slane %v1013, 6
        %v1030 = vsel %vm530, %v1029, %v1028
        %v1031 = vrot.slane %v1014, 5
        %v1032 = vsel %vm533, %v1031, %v1030
        %v1033 = vrot.slane %v1015, 4
        %v1034 = vsel %vm536, %v1033, %v1032
        %v1035 = vrot.slane %v1016, 3
        %v1036 = vsel %vm539, %v1035, %v1034
        %v1037 = vrot.slane %v1017, 2
        %v1038 = vsel %vm542, %v1037, %v1036
        %v1039 = vrot.slane %v1018, 1
        %v1040 = vsel %vm545, %v1039, %v1038
        %s1042 = scalar_lea.vmem [#allocation3], 56
        %1043 = vst.msk [vmem:[%s1042] sm:$0xff] %vm548, %v1040
        %v1044 = vld [vmem:[#allocation2] sm:$0xff]
        %v1045 = vld [vmem:[#allocation2 + $0x8] sm:$0xff]
        %v1046 = vld [vmem:[#allocation2 + $0x10] sm:$0xff]
        %v1047 = vld [vmem:[#allocation2 + $0x18] sm:$0xff]
        %v1048 = vld [vmem:[#allocation2 + $0x20] sm:$0xff]
        %v1049 = vld [vmem:[#allocation2 + $0x28] sm:$0xff]
        %v1050 = vld [vmem:[#allocation2 + $0x30] sm:$0xff]
        %v1051 = vld [vmem:[#allocation2 + $0x38] sm:$0xff]
        %v1052 = vld [vmem:[#allocation3] sm:$0xff]
        %v1053 = vld [vmem:[#allocation3 + $0x8] sm:$0xff]
        %v1054 = vld [vmem:[#allocation3 + $0x10] sm:$0xff]
        %v1055 = vld [vmem:[#allocation3 + $0x18] sm:$0xff]
        %v1056 = vld [vmem:[#allocation3 + $0x20] sm:$0xff]
        %v1057 = vld [vmem:[#allocation3 + $0x28] sm:$0xff]
        %v1058 = vld [vmem:[#allocation3 + $0x30] sm:$0xff]
        %v1059 = vld [vmem:[#allocation3 + $0x38] sm:$0xff]
        %v1060 = vld [vmem:[%s2] sm:$0xff]
        %v1061 = vld [vmem:[%s2 + $0x8] sm:$0xff]
        %v1062 = vld [vmem:[%s2 + $0x10] sm:$0xff]
        %v1063 = vld [vmem:[%s2 + $0x18] sm:$0xff]
        %v1064 = vld [vmem:[#allocation7] sm:$0xff]
        %v1065 = vld [vmem:[#allocation7 + $0x8] sm:$0xff]
        %v1066 = vld [vmem:[#allocation7 + $0x10] sm:$0xff]
        %v1067 = vld [vmem:[#allocation7 + $0x18] sm:$0xff]
        %v1069 = vsel %vm548, %v1052, 0
        %v1072 = vsel %vm548, %v1053, 0
        %v1075 = vsel %vm548, %v1054, 0
        %v1078 = vsel %vm548, %v1055, 0
        %v1081 = vsel %vm548, %v1056, 0
        %v1084 = vsel %vm548, %v1057, 0
        %v1087 = vsel %vm548, %v1058, 0
        %v1090 = vsel %vm548, %v1059, 0
        %1092 = vmatprep.subr.mxu0 0.0
        %1093 = vmatpush1.msra.mxu0 %v1064
        %1094 = vmatprep.subr.mxu0 0.0
        %1095 = vmatpush1.msra.mxu0 %v1065
        %1096 = vmatprep.subr.mxu0 0.0
        %1097 = vmatpush1.msra.mxu0 %v1066
        %1098 = vmatprep.subr.mxu0 0.0
        %1099 = vmatpush1.msra.mxu0 %v1067
        %1100 = vmatprep.subr.mxu0 0.0
        %1101 = vmatpush1.msra.mxu0 0.0
        %1102 = vmatprep.subr.mxu0 0.0
        %1103 = vmatpush1.msra.mxu0 0.0
        %1104 = vmatprep.subr.mxu0 0.0
        %1105 = vmatpush1.msra.mxu0 0.0
        %1106 = vmatprep.subr.mxu0 0.0
        %1107 = vmatpush1.msra.mxu0 0.0
        %1108 = vmatprep.subr.mxu0 0.0
        %1109 = vmatpush1.msra.mxu0 0.0
        %1110 = vmatprep.subr.mxu0 0.0
        %1111 = vmatpush1.msra.mxu0 0.0
        %1112 = vmatprep.subr.mxu0 0.0
        %1113 = vmatpush1.msra.mxu0 0.0
        %1114 = vmatprep.subr.mxu0 0.0
        %1115 = vmatpush1.msra.mxu0 0.0
        %1116 = vmatprep.subr.mxu0 0.0
        %1117 = vmatpush1.msra.mxu0 0.0
        %1118 = vmatprep.subr.mxu0 0.0
        %1119 = vmatpush1.msra.mxu0 0.0
        %1120 = vmatprep.subr.mxu0 0.0
        %1121 = vmatpush1.msra.mxu0 0.0
        %1122 = vmatprep.subr.mxu0 0.0
        %1123 = vmatpush1.msra.mxu0 0.0
        %1124 = vmatprep.subr.mxu0 0.0
        %1125 = vmatpush1.msra.mxu0 0.0
        %1126 = vmatprep.subr.mxu0 0.0
        %1127 = vmatpush1.msra.mxu0 0.0
        %1128 = vmatprep.subr.mxu0 0.0
        %1129 = vmatpush1.msra.mxu0 0.0
        %1130 = vmatprep.subr.mxu0 0.0
        %1131 = vmatpush1.msra.mxu0 0.0
        %1132 = vmatprep.subr.mxu0 0.0
        %1133 = vmatpush1.msra.mxu0 0.0
        %1134 = vmatprep.subr.mxu0 0.0
        %1135 = vmatpush1.msra.mxu0 0.0
        %1136 = vmatprep.subr.mxu0 0.0
        %1137 = vmatpush1.msra.mxu0 0.0
        %1138 = vmatprep.subr.mxu0 0.0
        %1139 = vmatpush1.msra.mxu0 0.0
        %1140 = vmatprep.subr.mxu0 0.0
        %1141 = vmatpush1.msra.mxu0 0.0
        %1142 = vmatprep.subr.mxu0 0.0
        %1143 = vmatpush1.msra.mxu0 0.0
        %1144 = vmatprep.subr.mxu0 0.0
        %1145 = vmatpush1.msra.mxu0 0.0
        %1146 = vmatprep.subr.mxu0 0.0
        %1147 = vmatpush1.msra.mxu0 0.0
        %1148 = vmatprep.subr.mxu0 0.0
        %1149 = vmatpush1.msra.mxu0 0.0
        %1150 = vmatprep.subr.mxu0 0.0
        %1151 = vmatpush1.msra.mxu0 0.0
        %1152 = vmatprep.subr.mxu0 0.0
        %1153 = vmatpush1.msra.mxu0 0.0
        %1154 = vmatprep.subr.mxu0 0.0
        %1155 = vmatpush1.msra.mxu0 0.0
        %1156 = vmatprep.mubr.f32.mxu0 0.0
        %1157 = vmatmul.mubr.f32.gmra.mrb[0].mxu0 %v1069
        %v1158 = vpop.f32.mrb[0].mxu0
        %v1159 = vadd.f32 0.0, %v1158
        %v1160 = vpop.f32.mrb[0].mxu0
        %1161 = vmatprep.mubr.f32.mxu0 0.0
        %1162 = vmatmul.mubr.f32.gmra.mrb[0].mxu0 %v1072
        %v1163 = vpop.f32.mrb[0].mxu0
        %v1164 = vadd.f32 0.0, %v1163
        %v1165 = vpop.f32.mrb[0].mxu0
        %1166 = vmatprep.mubr.f32.mxu0 0.0
        %1167 = vmatmul.mubr.f32.gmra.mrb[0].mxu0 %v1075
        %v1168 = vpop.f32.mrb[0].mxu0
        %v1169 = vadd.f32 0.0, %v1168
        %v1170 = vpop.f32.mrb[0].mxu0
        %1171 = vmatprep.mubr.f32.mxu0 0.0
        %1172 = vmatmul.mubr.f32.gmra.mrb[0].mxu0 %v1078
        %v1173 = vpop.f32.mrb[0].mxu0
        %v1174 = vadd.f32 0.0, %v1173
        %v1175 = vpop.f32.mrb[0].mxu0
        %1176 = vmatprep.mubr.f32.mxu0 0.0
        %1177 = vmatmul.mubr.f32.gmra.mrb[0].mxu0 %v1081
        %v1178 = vpop.f32.mrb[0].mxu0
        %v1179 = vadd.f32 0.0, %v1178
        %v1180 = vpop.f32.mrb[0].mxu0
        %1181 = vmatprep.mubr.f32.mxu0 0.0
        %1182 = vmatmul.mubr.f32.gmra.mrb[0].mxu0 %v1084
        %v1183 = vpop.f32.mrb[0].mxu0
        %v1184 = vadd.f32 0.0, %v1183
        %v1185 = vpop.f32.mrb[0].mxu0
        %1186 = vmatprep.mubr.f32.mxu0 0.0
        %1187 = vmatmul.mubr.f32.gmra.mrb[0].mxu0 %v1087
        %v1188 = vpop.f32.mrb[0].mxu0
        %v1189 = vadd.f32 0.0, %v1188
        %v1190 = vpop.f32.mrb[0].mxu0
        %1191 = vmatprep.mubr.f32.mxu0 0.0
        %1192 = vmatmul.mubr.f32.gmra.mrb[0].mxu0 %v1090
        %v1193 = vpop.f32.mrb[0].mxu0
        %v1194 = vadd.f32 0.0, %v1193
        %v1195 = vpop.f32.mrb[0].mxu0
        %1196 = vdwg.mxu0
        %v1198 = vsel %vm548, %v1044, 0
        %v1201 = vsel %vm548, %v1045, 0
        %v1204 = vsel %vm548, %v1046, 0
        %v1207 = vsel %vm548, %v1047, 0
        %v1210 = vsel %vm548, %v1048, 0
        %v1213 = vsel %vm548, %v1049, 0
        %v1216 = vsel %vm548, %v1050, 0
        %v1219 = vsel %vm548, %v1051, 0
        %1221 = vmatprep.subr.mxu0 0.0
        %1222 = vmatpush1.msra.mxu0 %v1060
        %1223 = vmatprep.subr.mxu0 0.0
        %1224 = vmatpush1.msra.mxu0 %v1061
        %1225 = vmatprep.subr.mxu0 0.0
        %1226 = vmatpush1.msra.mxu0 %v1062
        %1227 = vmatprep.subr.mxu0 0.0
        %1228 = vmatpush1.msra.mxu0 %v1063
        %1229 = vmatprep.subr.mxu0 0.0
        %1230 = vmatpush1.msra.mxu0 0.0
        %1231 = vmatprep.subr.mxu0 0.0
        %1232 = vmatpush1.msra.mxu0 0.0
        %1233 = vmatprep.subr.mxu0 0.0
        %1234 = vmatpush1.msra.mxu0 0.0
        %1235 = vmatprep.subr.mxu0 0.0
        %1236 = vmatpush1.msra.mxu0 0.0
        %1237 = vmatprep.subr.mxu0 0.0
        %1238 = vmatpush1.msra.mxu0 0.0
        %1239 = vmatprep.subr.mxu0 0.0
        %1240 = vmatpush1.msra.mxu0 0.0
        %1241 = vmatprep.subr.mxu0 0.0
        %1242 = vmatpush1.msra.mxu0 0.0
        %1243 = vmatprep.subr.mxu0 0.0
        %1244 = vmatpush1.msra.mxu0 0.0
        %1245 = vmatprep.subr.mxu0 0.0
        %1246 = vmatpush1.msra.mxu0 0.0
        %1247 = vmatprep.subr.mxu0 0.0
        %1248 = vmatpush1.msra.mxu0 0.0
        %1249 = vmatprep.subr.mxu0 0.0
        %1250 = vmatpush1.msra.mxu0 0.0
        %1251 = vmatprep.subr.mxu0 0.0
        %1252 = vmatpush1.msra.mxu0 0.0
        %1253 = vmatprep.subr.mxu0 0.0
        %1254 = vmatpush1.msra.mxu0 0.0
        %1255 = vmatprep.subr.mxu0 0.0
        %1256 = vmatpush1.msra.mxu0 0.0
        %1257 = vmatprep.subr.mxu0 0.0
        %1258 = vmatpush1.msra.mxu0 0.0
        %1259 = vmatprep.subr.mxu0 0.0
        %1260 = vmatpush1.msra.mxu0 0.0
        %1261 = vmatprep.subr.mxu0 0.0
        %1262 = vmatpush1.msra.mxu0 0.0
        %1263 = vmatprep.subr.mxu0 0.0
        %1264 = vmatpush1.msra.mxu0 0.0
        %1265 = vmatprep.subr.mxu0 0.0
        %1266 = vmatpush1.msra.mxu0 0.0
        %1267 = vmatprep.subr.mxu0 0.0
        %1268 = vmatpush1.msra.mxu0 0.0
        %1269 = vmatprep.subr.mxu0 0.0
        %1270 = vmatpush1.msra.mxu0 0.0
        %1271 = vmatprep.subr.mxu0 0.0
        %1272 = vmatpush1.msra.mxu0 0.0
        %1273 = vmatprep.subr.mxu0 0.0
        %1274 = vmatpush1.msra.mxu0 0.0
        %1275 = vmatprep.subr.mxu0 0.0
        %1276 = vmatpush1.msra.mxu0 0.0
        %1277 = vmatprep.subr.mxu0 0.0
        %1278 = vmatpush1.msra.mxu0 0.0
        %1279 = vmatprep.subr.mxu0 0.0
        %1280 = vmatpush1.msra.mxu0 0.0
        %1281 = vmatprep.subr.mxu0 0.0
        %1282 = vmatpush1.msra.mxu0 0.0
        %1283 = vmatprep.subr.mxu0 0.0
        %1284 = vmatpush1.msra.mxu0 0.0
        %1285 = vmatprep.mubr.f32.mxu0 0.0
        %1286 = vmatmul.mubr.f32.gmra.mrb[0].mxu0 %v1198
        %v1287 = vpop.f32.mrb[0].mxu0
        %v1288 = vadd.f32 %v1159, %v1287
        %v1289 = vpop.f32.mrb[0].mxu0
        %1290 = vmatprep.mubr.f32.mxu0 0.0
        %1291 = vmatmul.mubr.f32.gmra.mrb[0].mxu0 %v1201
        %v1292 = vpop.f32.mrb[0].mxu0
        %v1293 = vadd.f32 %v1164, %v1292
        %v1294 = vpop.f32.mrb[0].mxu0
        %1295 = vmatprep.mubr.f32.mxu0 0.0
        %1296 = vmatmul.mubr.f32.gmra.mrb[0].mxu0 %v1204
        %v1297 = vpop.f32.mrb[0].mxu0
        %v1298 = vadd.f32 %v1169, %v1297
        %v1299 = vpop.f32.mrb[0].mxu0
        %1300 = vmatprep.mubr.f32.mxu0 0.0
        %1301 = vmatmul.mubr.f32.gmra.mrb[0].mxu0 %v1207
        %v1302 = vpop.f32.mrb[0].mxu0
        %v1303 = vadd.f32 %v1174, %v1302
        %v1304 = vpop.f32.mrb[0].mxu0
        %1305 = vmatprep.mubr.f32.mxu0 0.0
        %1306 = vmatmul.mubr.f32.gmra.mrb[0].mxu0 %v1210
        %v1307 = vpop.f32.mrb[0].mxu0
        %v1308 = vadd.f32 %v1179, %v1307
        %v1309 = vpop.f32.mrb[0].mxu0
        %1310 = vmatprep.mubr.f32.mxu0 0.0
        %1311 = vmatmul.mubr.f32.gmra.mrb[0].mxu0 %v1213
        %v1312 = vpop.f32.mrb[0].mxu0
        %v1313 = vadd.f32 %v1184, %v1312
        %v1314 = vpop.f32.mrb[0].mxu0
        %1315 = vmatprep.mubr.f32.mxu0 0.0
        %1316 = vmatmul.mubr.f32.gmra.mrb[0].mxu0 %v1216
        %v1317 = vpop.f32.mrb[0].mxu0
        %v1318 = vadd.f32 %v1189, %v1317
        %v1319 = vpop.f32.mrb[0].mxu0
        %1320 = vmatprep.mubr.f32.mxu0 0.0
        %1321 = vmatmul.mubr.f32.gmra.mrb[0].mxu0 %v1219
        %v1322 = vpop.f32.mrb[0].mxu0
        %v1323 = vadd.f32 %v1194, %v1322
        %v1324 = vpop.f32.mrb[0].mxu0
        %1325 = vdwg.mxu0
        %v1326 = vld [vmem:[%s10] sm:$0x1]
        %v1327 = vlaneseq
        %v1328 = vshrl.u32 %v1327, 7
        %v1329 = vsub.s32 0, %v1328
        %v1330 = vrot.slane %v1326, %v1329
        %v1331 = vadd.f32 %v1288, %v1330
        %v1332 = vadd.f32 %v1293, %v1330
        %v1333 = vadd.f32 %v1298, %v1330
        %v1334 = vadd.f32 %v1303, %v1330
        %v1335 = vadd.f32 %v1308, %v1330
        %v1336 = vadd.f32 %v1313, %v1330
        %v1337 = vadd.f32 %v1318, %v1330
        %v1338 = vadd.f32 %v1323, %v1330
        %v1339 = vmax.f32 %v1331, 0.0
        %v1340 = vmax.f32 %v1332, 0.0
        %v1341 = vmax.f32 %v1333, 0.0
        %v1342 = vmax.f32 %v1334, 0.0
        %v1343 = vmax.f32 %v1335, 0.0
        %v1344 = vmax.f32 %v1336, 0.0
        %v1345 = vmax.f32 %v1337, 0.0
        %v1346 = vmax.f32 %v1338, 0.0
        %v1347 = vld [vmem:[%s4] sm:$0xff]
        %v1348 = vld [vmem:[%s4 + $0x8] sm:$0xff]
        %v1349 = vld [vmem:[%s4 + $0x10] sm:$0xff]
        %v1350 = vld [vmem:[%s4 + $0x18] sm:$0xff]
        %v1351 = vld [vmem:[%s4 + $0x20] sm:$0xff]
        %v1352 = vld [vmem:[%s4 + $0x28] sm:$0xff]
        %v1353 = vld [vmem:[%s4 + $0x30] sm:$0xff]
        %v1354 = vld [vmem:[%s4 + $0x38] sm:$0xff]
        %v1355 = vld [vmem:[%s11] sm:$0x1]
        %v1356 = vlaneseq
        %v1357 = vshrl.u32 %v1356, 7
        %v1358 = vsub.s32 0, %v1357
        %v1359 = vrot.slane %v1355, %v1358
        %vm1360 = vcmask 523264
        %v1362 = vsel %vm1360, %v1339, 0
        %v1365 = vsel %vm1360, %v1340, 0
        %v1368 = vsel %vm1360, %v1341, 0
        %v1371 = vsel %vm1360, %v1342, 0
        %v1374 = vsel %vm1360, %v1343, 0
        %v1377 = vsel %vm1360, %v1344, 0
        %v1380 = vsel %vm1360, %v1345, 0
        %v1383 = vsel %vm1360, %v1346, 0
        %1385 = vmatprep.subr.mxu0 0.0
        %1386 = vmatpush1.msra.mxu0 %v1347
        %1387 = vmatprep.subr.mxu0 0.0
        %1388 = vmatpush1.msra.mxu0 %v1348
        %1389 = vmatprep.subr.mxu0 0.0
        %1390 = vmatpush1.msra.mxu0 %v1349
        %1391 = vmatprep.subr.mxu0 0.0
        %1392 = vmatpush1.msra.mxu0 %v1350
        %1393 = vmatprep.subr.mxu0 0.0
        %1394 = vmatpush1.msra.mxu0 %v1351
        %1395 = vmatprep.subr.mxu0 0.0
        %1396 = vmatpush1.msra.mxu0 %v1352
        %1397 = vmatprep.subr.mxu0 0.0
        %1398 = vmatpush1.msra.mxu0 %v1353
        %1399 = vmatprep.subr.mxu0 0.0
        %1400 = vmatpush1.msra.mxu0 %v1354
        %1401 = vmatprep.subr.mxu0 0.0
        %1402 = vmatpush1.msra.mxu0 0.0
        %1403 = vmatprep.subr.mxu0 0.0
        %1404 = vmatpush1.msra.mxu0 0.0
        %1405 = vmatprep.subr.mxu0 0.0
        %1406 = vmatpush1.msra.mxu0 0.0
        %1407 = vmatprep.subr.mxu0 0.0
        %1408 = vmatpush1.msra.mxu0 0.0
        %1409 = vmatprep.subr.mxu0 0.0
        %1410 = vmatpush1.msra.mxu0 0.0
        %1411 = vmatprep.subr.mxu0 0.0
        %1412 = vmatpush1.msra.mxu0 0.0
        %1413 = vmatprep.subr.mxu0 0.0
        %1414 = vmatpush1.msra.mxu0 0.0
        %1415 = vmatprep.subr.mxu0 0.0
        %1416 = vmatpush1.msra.mxu0 0.0
        %1417 = vmatprep.subr.mxu0 0.0
        %1418 = vmatpush1.msra.mxu0 0.0
        %1419 = vmatprep.subr.mxu0 0.0
        %1420 = vmatpush1.msra.mxu0 0.0
        %1421 = vmatprep.subr.mxu0 0.0
        %1422 = vmatpush1.msra.mxu0 0.0
        %1423 = vmatprep.subr.mxu0 0.0
        %1424 = vmatpush1.msra.mxu0 0.0
        %1425 = vmatprep.subr.mxu0 0.0
        %1426 = vmatpush1.msra.mxu0 0.0
        %1427 = vmatprep.subr.mxu0 0.0
        %1428 = vmatpush1.msra.mxu0 0.0
        %1429 = vmatprep.subr.mxu0 0.0
        %1430 = vmatpush1.msra.mxu0 0.0
        %1431 = vmatprep.subr.mxu0 0.0
        %1432 = vmatpush1.msra.mxu0 0.0
        %1433 = vmatprep.subr.mxu0 0.0
        %1434 = vmatpush1.msra.mxu0 0.0
        %1435 = vmatprep.subr.mxu0 0.0
        %1436 = vmatpush1.msra.mxu0 0.0
        %1437 = vmatprep.subr.mxu0 0.0
        %1438 = vmatpush1.msra.mxu0 0.0
        %1439 = vmatprep.subr.mxu0 0.0
        %1440 = vmatpush1.msra.mxu0 0.0
        %1441 = vmatprep.subr.mxu0 0.0
        %1442 = vmatpush1.msra.mxu0 0.0
        %1443 = vmatprep.subr.mxu0 0.0
        %1444 = vmatpush1.msra.mxu0 0.0
        %1445 = vmatprep.subr.mxu0 0.0
        %1446 = vmatpush1.msra.mxu0 0.0
        %1447 = vmatprep.subr.mxu0 0.0
        %1448 = vmatpush1.msra.mxu0 0.0
        %1449 = vmatprep.mubr.f32.mxu0 0.0
        %1450 = vmatmul.mubr.f32.gmra.mrb[0].mxu0 %v1362
        %v1451 = vpop.f32.mrb[0].mxu0
        %v1452 = vadd.f32 %v1359, %v1451
        %v1453 = vpop.f32.mrb[0].mxu0
        %1454 = vmatprep.mubr.f32.mxu0 0.0
        %1455 = vmatmul.mubr.f32.gmra.mrb[0].mxu0 %v1365
        %v1456 = vpop.f32.mrb[0].mxu0
        %v1457 = vadd.f32 %v1359, %v1456
        %v1458 = vpop.f32.mrb[0].mxu0
        %1459 = vmatprep.mubr.f32.mxu0 0.0
        %1460 = vmatmul.mubr.f32.gmra.mrb[0].mxu0 %v1368
        %v1461 = vpop.f32.mrb[0].mxu0
        %v1462 = vadd.f32 %v1359, %v1461
        %v1463 = vpop.f32.mrb[0].mxu0
        %1464 = vmatprep.mubr.f32.mxu0 0.0
        %1465 = vmatmul.mubr.f32.gmra.mrb[0].mxu0 %v1371
        %v1466 = vpop.f32.mrb[0].mxu0
        %v1467 = vadd.f32 %v1359, %v1466
        %v1468 = vpop.f32.mrb[0].mxu0
        %1469 = vmatprep.mubr.f32.mxu0 0.0
        %1470 = vmatmul.mubr.f32.gmra.mrb[0].mxu0 %v1374
        %v1471 = vpop.f32.mrb[0].mxu0
        %v1472 = vadd.f32 %v1359, %v1471
        %v1473 = vpop.f32.mrb[0].mxu0
        %1474 = vmatprep.mubr.f32.mxu0 0.0
        %1475 = vmatmul.mubr.f32.gmra.mrb[0].mxu0 %v1377
        %v1476 = vpop.f32.mrb[0].mxu0
        %v1477 = vadd.f32 %v1359, %v1476
        %v1478 = vpop.f32.mrb[0].mxu0
        %1479 = vmatprep.mubr.f32.mxu0 0.0
        %1480 = vmatmul.mubr.f32.gmra.mrb[0].mxu0 %v1380
        %v1481 = vpop.f32.mrb[0].mxu0
        %v1482 = vadd.f32 %v1359, %v1481
        %v1483 = vpop.f32.mrb[0].mxu0
        %1484 = vmatprep.mubr.f32.mxu0 0.0
        %1485 = vmatmul.mubr.f32.gmra.mrb[0].mxu0 %v1383
        %v1486 = vpop.f32.mrb[0].mxu0
        %v1487 = vadd.f32 %v1359, %v1486
        %v1488 = vpop.f32.mrb[0].mxu0
        %1489 = vdwg.mxu0
        %v1490 = vmax.f32 %v1452, 0.0
        %v1491 = vmax.f32 %v1457, 0.0
        %v1492 = vmax.f32 %v1462, 0.0
        %v1493 = vmax.f32 %v1467, 0.0
        %v1494 = vmax.f32 %v1472, 0.0
        %v1495 = vmax.f32 %v1477, 0.0
        %v1496 = vmax.f32 %v1482, 0.0
        %v1497 = vmax.f32 %v1487, 0.0
        %v1498 = vld [vmem:[#allocation9] sm:$0xff]
        %v1499 = vld [vmem:[#allocation9 + $0x8] sm:$0xff]
        %v1500 = vld [vmem:[#allocation9 + $0x10] sm:$0xff]
        %v1501 = vld [vmem:[#allocation9 + $0x18] sm:$0xff]
        %v1502 = vld [vmem:[%s9] sm:$0x1]
        %v1504 = vlaneseq
        %v1505 = vshrl.u32 %v1504, 7
        %v1506 = vsub.s32 0, %v1505
        %v1507 = vrot.slane %v1502, %v1506
        %v1510 = vsel %vm548, %v1490, 0
        %v1513 = vsel %vm548, %v1491, 0
        %v1516 = vsel %vm548, %v1492, 0
        %v1519 = vsel %vm548, %v1493, 0
        %v1522 = vsel %vm548, %v1494, 0
        %v1525 = vsel %vm548, %v1495, 0
        %v1528 = vsel %vm548, %v1496, 0
        %v1531 = vsel %vm548, %v1497, 0
        %1533 = vmatprep.subr.mxu0 0.0
        %1534 = vmatpush1.msra.mxu0 %v1498
        %1535 = vmatprep.subr.mxu0 0.0
        %1536 = vmatpush1.msra.mxu0 %v1499
        %1537 = vmatprep.subr.mxu0 0.0
        %1538 = vmatpush1.msra.mxu0 %v1500
        %1539 = vmatprep.subr.mxu0 0.0
        %1540 = vmatpush1.msra.mxu0 %v1501
        %1541 = vmatprep.subr.mxu0 0.0
        %1542 = vmatpush1.msra.mxu0 0.0
        %1543 = vmatprep.subr.mxu0 0.0
        %1544 = vmatpush1.msra.mxu0 0.0
        %1545 = vmatprep.subr.mxu0 0.0
        %1546 = vmatpush1.msra.mxu0 0.0
        %1547 = vmatprep.subr.mxu0 0.0
        %1548 = vmatpush1.msra.mxu0 0.0
        %1549 = vmatprep.subr.mxu0 0.0
        %1550 = vmatpush1.msra.mxu0 0.0
        %1551 = vmatprep.subr.mxu0 0.0
        %1552 = vmatpush1.msra.mxu0 0.0
        %1553 = vmatprep.subr.mxu0 0.0
        %1554 = vmatpush1.msra.mxu0 0.0
        %1555 = vmatprep.subr.mxu0 0.0
        %1556 = vmatpush1.msra.mxu0 0.0
        %1557 = vmatprep.subr.mxu0 0.0
        %1558 = vmatpush1.msra.mxu0 0.0
        %1559 = vmatprep.subr.mxu0 0.0
        %1560 = vmatpush1.msra.mxu0 0.0
        %1561 = vmatprep.subr.mxu0 0.0
        %1562 = vmatpush1.msra.mxu0 0.0
        %1563 = vmatprep.subr.mxu0 0.0
        %1564 = vmatpush1.msra.mxu0 0.0
        %1565 = vmatprep.subr.mxu0 0.0
        %1566 = vmatpush1.msra.mxu0 0.0
        %1567 = vmatprep.subr.mxu0 0.0
        %1568 = vmatpush1.msra.mxu0 0.0
        %1569 = vmatprep.subr.mxu0 0.0
        %1570 = vmatpush1.msra.mxu0 0.0
        %1571 = vmatprep.subr.mxu0 0.0
        %1572 = vmatpush1.msra.mxu0 0.0
        %1573 = vmatprep.subr.mxu0 0.0
        %1574 = vmatpush1.msra.mxu0 0.0
        %1575 = vmatprep.subr.mxu0 0.0
        %1576 = vmatpush1.msra.mxu0 0.0
        %1577 = vmatprep.subr.mxu0 0.0
        %1578 = vmatpush1.msra.mxu0 0.0
        %1579 = vmatprep.subr.mxu0 0.0
        %1580 = vmatpush1.msra.mxu0 0.0
        %1581 = vmatprep.subr.mxu0 0.0
        %1582 = vmatpush1.msra.mxu0 0.0
        %1583 = vmatprep.subr.mxu0 0.0
        %1584 = vmatpush1.msra.mxu0 0.0
        %1585 = vmatprep.subr.mxu0 0.0
        %1586 = vmatpush1.msra.mxu0 0.0
        %1587 = vmatprep.subr.mxu0 0.0
        %1588 = vmatpush1.msra.mxu0 0.0
        %1589 = vmatprep.subr.mxu0 0.0
        %1590 = vmatpush1.msra.mxu0 0.0
        %1591 = vmatprep.subr.mxu0 0.0
        %1592 = vmatpush1.msra.mxu0 0.0
        %1593 = vmatprep.subr.mxu0 0.0
        %1594 = vmatpush1.msra.mxu0 0.0
        %1595 = vmatprep.subr.mxu0 0.0
        %1596 = vmatpush1.msra.mxu0 0.0
        %1597 = vmatprep.mubr.f32.mxu0 0.0
        %1598 = vmatmul.mubr.f32.gmra.mrb[0].mxu0 %v1510
        %v1599 = vpop.f32.mrb[0].mxu0
        %v1600 = vadd.f32 %v1507, %v1599
        %v1601 = vpop.f32.mrb[0].mxu0
        %1602 = vmatprep.mubr.f32.mxu0 0.0
        %1603 = vmatmul.mubr.f32.gmra.mrb[0].mxu0 %v1513
        %v1604 = vpop.f32.mrb[0].mxu0
        %v1605 = vadd.f32 %v1507, %v1604
        %v1606 = vpop.f32.mrb[0].mxu0
        %1607 = vmatprep.mubr.f32.mxu0 0.0
        %1608 = vmatmul.mubr.f32.gmra.mrb[0].mxu0 %v1516
        %v1609 = vpop.f32.mrb[0].mxu0
        %v1610 = vadd.f32 %v1507, %v1609
        %v1611 = vpop.f32.mrb[0].mxu0
        %1612 = vmatprep.mubr.f32.mxu0 0.0
        %1613 = vmatmul.mubr.f32.gmra.mrb[0].mxu0 %v1519
        %v1614 = vpop.f32.mrb[0].mxu0
        %v1615 = vadd.f32 %v1507, %v1614
        %v1616 = vpop.f32.mrb[0].mxu0
        %1617 = vmatprep.mubr.f32.mxu0 0.0
        %1618 = vmatmul.mubr.f32.gmra.mrb[0].mxu0 %v1522
        %v1619 = vpop.f32.mrb[0].mxu0
        %v1620 = vadd.f32 %v1507, %v1619
        %v1621 = vpop.f32.mrb[0].mxu0
        %1622 = vmatprep.mubr.f32.mxu0 0.0
        %1623 = vmatmul.mubr.f32.gmra.mrb[0].mxu0 %v1525
        %v1624 = vpop.f32.mrb[0].mxu0
        %v1625 = vadd.f32 %v1507, %v1624
        %v1626 = vpop.f32.mrb[0].mxu0
        %1627 = vmatprep.mubr.f32.mxu0 0.0
        %1628 = vmatmul.mubr.f32.gmra.mrb[0].mxu0 %v1528
        %v1629 = vpop.f32.mrb[0].mxu0
        %v1630 = vadd.f32 %v1507, %v1629
        %v1631 = vpop.f32.mrb[0].mxu0
        %1632 = vmatprep.mubr.f32.mxu0 0.0
        %1633 = vmatmul.mubr.f32.gmra.mrb[0].mxu0 %v1531
        %v1634 = vpop.f32.mrb[0].mxu0
        %v1635 = vadd.f32 %v1507, %v1634
        %v1636 = vpop.f32.mrb[0].mxu0
        %1637 = vdwg.mxu0
        %1639 = vrot.lane.b32.xlu0 %v1600, 96
        %v1640 = vpop.permute.xlu0 %1639
        %v1641 = vsel %vm548, %v1600, 0
        %v1643 = vsel %vm548, %v1640, 0
        %1645 = vmatprep.subr.mxu0 0.0
        %1646 = vmatpush1.xpose.msra.mxu0 %v1643
        %1647 = vmatprep.subr.mxu0 0.0
        %1648 = vmatpush1.xpose.msra.mxu0 0.0
        %1649 = vmatprep.subr.mxu0 0.0
        %1650 = vmatpush1.xpose.msra.mxu0 0.0
        %1651 = vmatprep.subr.mxu0 0.0
        %1652 = vmatpush1.xpose.msra.mxu0 0.0
        %1653 = vmatprep.subr.mxu0 0.0
        %1654 = vmatpush1.xpose.msra.mxu0 0.0
        %1655 = vmatprep.subr.mxu0 0.0
        %1656 = vmatpush1.xpose.msra.mxu0 0.0
        %1657 = vmatprep.subr.mxu0 0.0
        %1658 = vmatpush1.xpose.msra.mxu0 0.0
        %1659 = vmatprep.subr.mxu0 0.0
        %1660 = vmatpush1.xpose.msra.mxu0 0.0
        %1661 = vmatprep.subr.mxu0 0.0
        %1662 = vmatpush1.xpose.msra.mxu0 0.0
        %1663 = vmatprep.subr.mxu0 0.0
        %1664 = vmatpush1.xpose.msra.mxu0 0.0
        %1665 = vmatprep.subr.mxu0 0.0
        %1666 = vmatpush1.xpose.msra.mxu0 0.0
        %1667 = vmatprep.subr.mxu0 0.0
        %1668 = vmatpush1.xpose.msra.mxu0 0.0
        %1669 = vmatprep.subr.mxu0 0.0
        %1670 = vmatpush1.xpose.msra.mxu0 0.0
        %1671 = vmatprep.subr.mxu0 0.0
        %1672 = vmatpush1.xpose.msra.mxu0 0.0
        %1673 = vmatprep.subr.mxu0 0.0
        %1674 = vmatpush1.xpose.msra.mxu0 0.0
        %1675 = vmatprep.subr.mxu0 0.0
        %1676 = vmatpush1.xpose.msra.mxu0 0.0
        %1677 = vmatprep.subr.mxu0 0.0
        %1678 = vmatpush1.xpose.msra.mxu0 0.0
        %1679 = vmatprep.subr.mxu0 0.0
        %1680 = vmatpush1.xpose.msra.mxu0 0.0
        %1681 = vmatprep.subr.mxu0 0.0
        %1682 = vmatpush1.xpose.msra.mxu0 0.0
        %1683 = vmatprep.subr.mxu0 0.0
        %1684 = vmatpush1.xpose.msra.mxu0 0.0
        %1685 = vmatprep.subr.mxu0 0.0
        %1686 = vmatpush1.xpose.msra.mxu0 0.0
        %1687 = vmatprep.subr.mxu0 0.0
        %1688 = vmatpush1.xpose.msra.mxu0 0.0
        %1689 = vmatprep.subr.mxu0 0.0
        %1690 = vmatpush1.xpose.msra.mxu0 0.0
        %1691 = vmatprep.subr.mxu0 0.0
        %1692 = vmatpush1.xpose.msra.mxu0 0.0
        %1693 = vmatprep.subr.mxu0 0.0
        %1694 = vmatpush1.xpose.msra.mxu0 0.0
        %1695 = vmatprep.subr.mxu0 0.0
        %1696 = vmatpush1.xpose.msra.mxu0 0.0
        %1697 = vmatprep.subr.mxu0 0.0
        %1698 = vmatpush1.xpose.msra.mxu0 0.0
        %1699 = vmatprep.subr.mxu0 0.0
        %1700 = vmatpush1.xpose.msra.mxu0 0.0
        %1701 = vmatprep.subr.mxu0 0.0
        %1702 = vmatpush1.xpose.msra.mxu0 0.0
        %1703 = vmatprep.subr.mxu0 0.0
        %1704 = vmatpush1.xpose.msra.mxu0 0.0
        %1705 = vmatprep.subr.mxu0 0.0
        %1706 = vmatpush1.xpose.msra.mxu0 0.0
        %1707 = vmatprep.subr.mxu0 0.0
        %1708 = vmatpush1.xpose.msra.mxu0 0.0
        %1709 = vmatprep.mubr.f32.mxu0 0.0
        %1710 = vmatmul.mubr.f32.gmra.mrb[0].mxu0 %v1641
        %v1711 = vpop.f32.mrb[0].mxu0
        %v1712 = vadd.f32 0.0, %v1711
        %v1713 = vpop.f32.mrb[0].mxu0
        %1714 = vdwg.mxu0
        %1716 = vrot.lane.b32.xlu0 %v1605, 96
        %v1717 = vpop.permute.xlu0 %1716
        %v1718 = vsel %vm548, %v1605, 0
        %v1720 = vsel %vm548, %v1717, 0
        %1722 = vmatprep.subr.mxu0 0.0
        %1723 = vmatpush1.xpose.msra.mxu0 %v1720
        %1724 = vmatprep.subr.mxu0 0.0
        %1725 = vmatpush1.xpose.msra.mxu0 0.0
        %1726 = vmatprep.subr.mxu0 0.0
        %1727 = vmatpush1.xpose.msra.mxu0 0.0
        %1728 = vmatprep.subr.mxu0 0.0
        %1729 = vmatpush1.xpose.msra.mxu0 0.0
        %1730 = vmatprep.subr.mxu0 0.0
        %1731 = vmatpush1.xpose.msra.mxu0 0.0
        %1732 = vmatprep.subr.mxu0 0.0
        %1733 = vmatpush1.xpose.msra.mxu0 0.0
        %1734 = vmatprep.subr.mxu0 0.0
        %1735 = vmatpush1.xpose.msra.mxu0 0.0
        %1736 = vmatprep.subr.mxu0 0.0
        %1737 = vmatpush1.xpose.msra.mxu0 0.0
        %1738 = vmatprep.subr.mxu0 0.0
        %1739 = vmatpush1.xpose.msra.mxu0 0.0
        %1740 = vmatprep.subr.mxu0 0.0
        %1741 = vmatpush1.xpose.msra.mxu0 0.0
        %1742 = vmatprep.subr.mxu0 0.0
        %1743 = vmatpush1.xpose.msra.mxu0 0.0
        %1744 = vmatprep.subr.mxu0 0.0
        %1745 = vmatpush1.xpose.msra.mxu0 0.0
        %1746 = vmatprep.subr.mxu0 0.0
        %1747 = vmatpush1.xpose.msra.mxu0 0.0
        %1748 = vmatprep.subr.mxu0 0.0
        %1749 = vmatpush1.xpose.msra.mxu0 0.0
        %1750 = vmatprep.subr.mxu0 0.0
        %1751 = vmatpush1.xpose.msra.mxu0 0.0
        %1752 = vmatprep.subr.mxu0 0.0
        %1753 = vmatpush1.xpose.msra.mxu0 0.0
        %1754 = vmatprep.subr.mxu0 0.0
        %1755 = vmatpush1.xpose.msra.mxu0 0.0
        %1756 = vmatprep.subr.mxu0 0.0
        %1757 = vmatpush1.xpose.msra.mxu0 0.0
        %1758 = vmatprep.subr.mxu0 0.0
        %1759 = vmatpush1.xpose.msra.mxu0 0.0
        %1760 = vmatprep.subr.mxu0 0.0
        %1761 = vmatpush1.xpose.msra.mxu0 0.0
        %1762 = vmatprep.subr.mxu0 0.0
        %1763 = vmatpush1.xpose.msra.mxu0 0.0
        %1764 = vmatprep.subr.mxu0 0.0
        %1765 = vmatpush1.xpose.msra.mxu0 0.0
        %1766 = vmatprep.subr.mxu0 0.0
        %1767 = vmatpush1.xpose.msra.mxu0 0.0
        %1768 = vmatprep.subr.mxu0 0.0
        %1769 = vmatpush1.xpose.msra.mxu0 0.0
        %1770 = vmatprep.subr.mxu0 0.0
        %1771 = vmatpush1.xpose.msra.mxu0 0.0
        %1772 = vmatprep.subr.mxu0 0.0
        %1773 = vmatpush1.xpose.msra.mxu0 0.0
        %1774 = vmatprep.subr.mxu0 0.0
        %1775 = vmatpush1.xpose.msra.mxu0 0.0
        %1776 = vmatprep.subr.mxu0 0.0
        %1777 = vmatpush1.xpose.msra.mxu0 0.0
        %1778 = vmatprep.subr.mxu0 0.0
        %1779 = vmatpush1.xpose.msra.mxu0 0.0
        %1780 = vmatprep.subr.mxu0 0.0
        %1781 = vmatpush1.xpose.msra.mxu0 0.0
        %1782 = vmatprep.subr.mxu0 0.0
        %1783 = vmatpush1.xpose.msra.mxu0 0.0
        %1784 = vmatprep.subr.mxu0 0.0
        %1785 = vmatpush1.xpose.msra.mxu0 0.0
        %1786 = vmatprep.mubr.f32.mxu0 0.0
        %1787 = vmatmul.mubr.f32.gmra.mrb[0].mxu0 %v1718
        %v1788 = vpop.f32.mrb[0].mxu0
        %v1789 = vadd.f32 0.0, %v1788
        %v1790 = vpop.f32.mrb[0].mxu0
        %1791 = vdwg.mxu0
        %1793 = vrot.lane.b32.xlu0 %v1610, 96
        %v1794 = vpop.permute.xlu0 %1793
        %v1795 = vsel %vm548, %v1610, 0
        %v1797 = vsel %vm548, %v1794, 0
        %1799 = vmatprep.subr.mxu0 0.0
        %1800 = vmatpush1.xpose.msra.mxu0 %v1797
        %1801 = vmatprep.subr.mxu0 0.0
        %1802 = vmatpush1.xpose.msra.mxu0 0.0
        %1803 = vmatprep.subr.mxu0 0.0
        %1804 = vmatpush1.xpose.msra.mxu0 0.0
        %1805 = vmatprep.subr.mxu0 0.0
        %1806 = vmatpush1.xpose.msra.mxu0 0.0
        %1807 = vmatprep.subr.mxu0 0.0
        %1808 = vmatpush1.xpose.msra.mxu0 0.0
        %1809 = vmatprep.subr.mxu0 0.0
        %1810 = vmatpush1.xpose.msra.mxu0 0.0
        %1811 = vmatprep.subr.mxu0 0.0
        %1812 = vmatpush1.xpose.msra.mxu0 0.0
        %1813 = vmatprep.subr.mxu0 0.0
        %1814 = vmatpush1.xpose.msra.mxu0 0.0
        %1815 = vmatprep.subr.mxu0 0.0
        %1816 = vmatpush1.xpose.msra.mxu0 0.0
        %1817 = vmatprep.subr.mxu0 0.0
        %1818 = vmatpush1.xpose.msra.mxu0 0.0
        %1819 = vmatprep.subr.mxu0 0.0
        %1820 = vmatpush1.xpose.msra.mxu0 0.0
        %1821 = vmatprep.subr.mxu0 0.0
        %1822 = vmatpush1.xpose.msra.mxu0 0.0
        %1823 = vmatprep.subr.mxu0 0.0
        %1824 = vmatpush1.xpose.msra.mxu0 0.0
        %1825 = vmatprep.subr.mxu0 0.0
        %1826 = vmatpush1.xpose.msra.mxu0 0.0
        %1827 = vmatprep.subr.mxu0 0.0
        %1828 = vmatpush1.xpose.msra.mxu0 0.0
        %1829 = vmatprep.subr.mxu0 0.0
        %1830 = vmatpush1.xpose.msra.mxu0 0.0
        %1831 = vmatprep.subr.mxu0 0.0
        %1832 = vmatpush1.xpose.msra.mxu0 0.0
        %1833 = vmatprep.subr.mxu0 0.0
        %1834 = vmatpush1.xpose.msra.mxu0 0.0
        %1835 = vmatprep.subr.mxu0 0.0
        %1836 = vmatpush1.xpose.msra.mxu0 0.0
        %1837 = vmatprep.subr.mxu0 0.0
        %1838 = vmatpush1.xpose.msra.mxu0 0.0
        %1839 = vmatprep.subr.mxu0 0.0
        %1840 = vmatpush1.xpose.msra.mxu0 0.0
        %1841 = vmatprep.subr.mxu0 0.0
        %1842 = vmatpush1.xpose.msra.mxu0 0.0
        %1843 = vmatprep.subr.mxu0 0.0
        %1844 = vmatpush1.xpose.msra.mxu0 0.0
        %1845 = vmatprep.subr.mxu0 0.0
        %1846 = vmatpush1.xpose.msra.mxu0 0.0
        %1847 = vmatprep.subr.mxu0 0.0
        %1848 = vmatpush1.xpose.msra.mxu0 0.0
        %1849 = vmatprep.subr.mxu0 0.0
        %1850 = vmatpush1.xpose.msra.mxu0 0.0
        %1851 = vmatprep.subr.mxu0 0.0
        %1852 = vmatpush1.xpose.msra.mxu0 0.0
        %1853 = vmatprep.subr.mxu0 0.0
        %1854 = vmatpush1.xpose.msra.mxu0 0.0
        %1855 = vmatprep.subr.mxu0 0.0
        %1856 = vmatpush1.xpose.msra.mxu0 0.0
        %1857 = vmatprep.subr.mxu0 0.0
        %1858 = vmatpush1.xpose.msra.mxu0 0.0
        %1859 = vmatprep.subr.mxu0 0.0
        %1860 = vmatpush1.xpose.msra.mxu0 0.0
        %1861 = vmatprep.subr.mxu0 0.0
        %1862 = vmatpush1.xpose.msra.mxu0 0.0
        %1863 = vmatprep.mubr.f32.mxu0 0.0
        %1864 = vmatmul.mubr.f32.gmra.mrb[0].mxu0 %v1795
        %v1865 = vpop.f32.mrb[0].mxu0
        %v1866 = vadd.f32 0.0, %v1865
        %v1867 = vpop.f32.mrb[0].mxu0
        %1868 = vdwg.mxu0
        %1870 = vrot.lane.b32.xlu0 %v1615, 96
        %v1871 = vpop.permute.xlu0 %1870
        %v1872 = vsel %vm548, %v1615, 0
        %v1874 = vsel %vm548, %v1871, 0
        %1876 = vmatprep.subr.mxu0 0.0
        %1877 = vmatpush1.xpose.msra.mxu0 %v1874
        %1878 = vmatprep.subr.mxu0 0.0
        %1879 = vmatpush1.xpose.msra.mxu0 0.0
        %1880 = vmatprep.subr.mxu0 0.0
        %1881 = vmatpush1.xpose.msra.mxu0 0.0
        %1882 = vmatprep.subr.mxu0 0.0
        %1883 = vmatpush1.xpose.msra.mxu0 0.0
        %1884 = vmatprep.subr.mxu0 0.0
        %1885 = vmatpush1.xpose.msra.mxu0 0.0
        %1886 = vmatprep.subr.mxu0 0.0
        %1887 = vmatpush1.xpose.msra.mxu0 0.0
        %1888 = vmatprep.subr.mxu0 0.0
        %1889 = vmatpush1.xpose.msra.mxu0 0.0
        %1890 = vmatprep.subr.mxu0 0.0
        %1891 = vmatpush1.xpose.msra.mxu0 0.0
        %1892 = vmatprep.subr.mxu0 0.0
        %1893 = vmatpush1.xpose.msra.mxu0 0.0
        %1894 = vmatprep.subr.mxu0 0.0
        %1895 = vmatpush1.xpose.msra.mxu0 0.0
        %1896 = vmatprep.subr.mxu0 0.0
        %1897 = vmatpush1.xpose.msra.mxu0 0.0
        %1898 = vmatprep.subr.mxu0 0.0
        %1899 = vmatpush1.xpose.msra.mxu0 0.0
        %1900 = vmatprep.subr.mxu0 0.0
        %1901 = vmatpush1.xpose.msra.mxu0 0.0
        %1902 = vmatprep.subr.mxu0 0.0
        %1903 = vmatpush1.xpose.msra.mxu0 0.0
        %1904 = vmatprep.subr.mxu0 0.0
        %1905 = vmatpush1.xpose.msra.mxu0 0.0
        %1906 = vmatprep.subr.mxu0 0.0
        %1907 = vmatpush1.xpose.msra.mxu0 0.0
        %1908 = vmatprep.subr.mxu0 0.0
        %1909 = vmatpush1.xpose.msra.mxu0 0.0
        %1910 = vmatprep.subr.mxu0 0.0
        %1911 = vmatpush1.xpose.msra.mxu0 0.0
        %1912 = vmatprep.subr.mxu0 0.0
        %1913 = vmatpush1.xpose.msra.mxu0 0.0
        %1914 = vmatprep.subr.mxu0 0.0
        %1915 = vmatpush1.xpose.msra.mxu0 0.0
        %1916 = vmatprep.subr.mxu0 0.0
        %1917 = vmatpush1.xpose.msra.mxu0 0.0
        %1918 = vmatprep.subr.mxu0 0.0
        %1919 = vmatpush1.xpose.msra.mxu0 0.0
        %1920 = vmatprep.subr.mxu0 0.0
        %1921 = vmatpush1.xpose.msra.mxu0 0.0
        %1922 = vmatprep.subr.mxu0 0.0
        %1923 = vmatpush1.xpose.msra.mxu0 0.0
        %1924 = vmatprep.subr.mxu0 0.0
        %1925 = vmatpush1.xpose.msra.mxu0 0.0
        %1926 = vmatprep.subr.mxu0 0.0
        %1927 = vmatpush1.xpose.msra.mxu0 0.0
        %1928 = vmatprep.subr.mxu0 0.0
        %1929 = vmatpush1.xpose.msra.mxu0 0.0
        %1930 = vmatprep.subr.mxu0 0.0
        %1931 = vmatpush1.xpose.msra.mxu0 0.0
        %1932 = vmatprep.subr.mxu0 0.0
        %1933 = vmatpush1.xpose.msra.mxu0 0.0
        %1934 = vmatprep.subr.mxu0 0.0
        %1935 = vmatpush1.xpose.msra.mxu0 0.0
        %1936 = vmatprep.subr.mxu0 0.0
        %1937 = vmatpush1.xpose.msra.mxu0 0.0
        %1938 = vmatprep.subr.mxu0 0.0
        %1939 = vmatpush1.xpose.msra.mxu0 0.0
        %1940 = vmatprep.mubr.f32.mxu0 0.0
        %1941 = vmatmul.mubr.f32.gmra.mrb[0].mxu0 %v1872
        %v1942 = vpop.f32.mrb[0].mxu0
        %v1943 = vadd.f32 0.0, %v1942
        %v1944 = vpop.f32.mrb[0].mxu0
        %1945 = vdwg.mxu0
        %1947 = vrot.lane.b32.xlu0 %v1620, 96
        %v1948 = vpop.permute.xlu0 %1947
        %v1949 = vsel %vm548, %v1620, 0
        %v1951 = vsel %vm548, %v1948, 0
        %1953 = vmatprep.subr.mxu0 0.0
        %1954 = vmatpush1.xpose.msra.mxu0 %v1951
        %1955 = vmatprep.subr.mxu0 0.0
        %1956 = vmatpush1.xpose.msra.mxu0 0.0
        %1957 = vmatprep.subr.mxu0 0.0
        %1958 = vmatpush1.xpose.msra.mxu0 0.0
        %1959 = vmatprep.subr.mxu0 0.0
        %1960 = vmatpush1.xpose.msra.mxu0 0.0
        %1961 = vmatprep.subr.mxu0 0.0
        %1962 = vmatpush1.xpose.msra.mxu0 0.0
        %1963 = vmatprep.subr.mxu0 0.0
        %1964 = vmatpush1.xpose.msra.mxu0 0.0
        %1965 = vmatprep.subr.mxu0 0.0
        %1966 = vmatpush1.xpose.msra.mxu0 0.0
        %1967 = vmatprep.subr.mxu0 0.0
        %1968 = vmatpush1.xpose.msra.mxu0 0.0
        %1969 = vmatprep.subr.mxu0 0.0
        %1970 = vmatpush1.xpose.msra.mxu0 0.0
        %1971 = vmatprep.subr.mxu0 0.0
        %1972 = vmatpush1.xpose.msra.mxu0 0.0
        %1973 = vmatprep.subr.mxu0 0.0
        %1974 = vmatpush1.xpose.msra.mxu0 0.0
        %1975 = vmatprep.subr.mxu0 0.0
        %1976 = vmatpush1.xpose.msra.mxu0 0.0
        %1977 = vmatprep.subr.mxu0 0.0
        %1978 = vmatpush1.xpose.msra.mxu0 0.0
        %1979 = vmatprep.subr.mxu0 0.0
        %1980 = vmatpush1.xpose.msra.mxu0 0.0
        %1981 = vmatprep.subr.mxu0 0.0
        %1982 = vmatpush1.xpose.msra.mxu0 0.0
        %1983 = vmatprep.subr.mxu0 0.0
        %1984 = vmatpush1.xpose.msra.mxu0 0.0
        %1985 = vmatprep.subr.mxu0 0.0
        %1986 = vmatpush1.xpose.msra.mxu0 0.0
        %1987 = vmatprep.subr.mxu0 0.0
        %1988 = vmatpush1.xpose.msra.mxu0 0.0
        %1989 = vmatprep.subr.mxu0 0.0
        %1990 = vmatpush1.xpose.msra.mxu0 0.0
        %1991 = vmatprep.subr.mxu0 0.0
        %1992 = vmatpush1.xpose.msra.mxu0 0.0
        %1993 = vmatprep.subr.mxu0 0.0
        %1994 = vmatpush1.xpose.msra.mxu0 0.0
        %1995 = vmatprep.subr.mxu0 0.0
        %1996 = vmatpush1.xpose.msra.mxu0 0.0
        %1997 = vmatprep.subr.mxu0 0.0
        %1998 = vmatpush1.xpose.msra.mxu0 0.0
        %1999 = vmatprep.subr.mxu0 0.0
        %2000 = vmatpush1.xpose.msra.mxu0 0.0
        %2001 = vmatprep.subr.mxu0 0.0
        %2002 = vmatpush1.xpose.msra.mxu0 0.0
        %2003 = vmatprep.subr.mxu0 0.0
        %2004 = vmatpush1.xpose.msra.mxu0 0.0
        %2005 = vmatprep.subr.mxu0 0.0
        %2006 = vmatpush1.xpose.msra.mxu0 0.0
        %2007 = vmatprep.subr.mxu0 0.0
        %2008 = vmatpush1.xpose.msra.mxu0 0.0
        %2009 = vmatprep.subr.mxu0 0.0
        %2010 = vmatpush1.xpose.msra.mxu0 0.0
        %2011 = vmatprep.subr.mxu0 0.0
        %2012 = vmatpush1.xpose.msra.mxu0 0.0
        %2013 = vmatprep.subr.mxu0 0.0
        %2014 = vmatpush1.xpose.msra.mxu0 0.0
        %2015 = vmatprep.subr.mxu0 0.0
        %2016 = vmatpush1.xpose.msra.mxu0 0.0
        %2017 = vmatprep.mubr.f32.mxu0 0.0
        %2018 = vmatmul.mubr.f32.gmra.mrb[0].mxu0 %v1949
        %v2019 = vpop.f32.mrb[0].mxu0
        %v2020 = vadd.f32 0.0, %v2019
        %v2021 = vpop.f32.mrb[0].mxu0
        %2022 = vdwg.mxu0
        %2024 = vrot.lane.b32.xlu0 %v1625, 96
        %v2025 = vpop.permute.xlu0 %2024
        %v2026 = vsel %vm548, %v1625, 0
        %v2028 = vsel %vm548, %v2025, 0
        %2030 = vmatprep.subr.mxu0 0.0
        %2031 = vmatpush1.xpose.msra.mxu0 %v2028
        %2032 = vmatprep.subr.mxu0 0.0
        %2033 = vmatpush1.xpose.msra.mxu0 0.0
        %2034 = vmatprep.subr.mxu0 0.0
        %2035 = vmatpush1.xpose.msra.mxu0 0.0
        %2036 = vmatprep.subr.mxu0 0.0
        %2037 = vmatpush1.xpose.msra.mxu0 0.0
        %2038 = vmatprep.subr.mxu0 0.0
        %2039 = vmatpush1.xpose.msra.mxu0 0.0
        %2040 = vmatprep.subr.mxu0 0.0
        %2041 = vmatpush1.xpose.msra.mxu0 0.0
        %2042 = vmatprep.subr.mxu0 0.0
        %2043 = vmatpush1.xpose.msra.mxu0 0.0
        %2044 = vmatprep.subr.mxu0 0.0
        %2045 = vmatpush1.xpose.msra.mxu0 0.0
        %2046 = vmatprep.subr.mxu0 0.0
        %2047 = vmatpush1.xpose.msra.mxu0 0.0
        %2048 = vmatprep.subr.mxu0 0.0
        %2049 = vmatpush1.xpose.msra.mxu0 0.0
        %2050 = vmatprep.subr.mxu0 0.0
        %2051 = vmatpush1.xpose.msra.mxu0 0.0
        %2052 = vmatprep.subr.mxu0 0.0
        %2053 = vmatpush1.xpose.msra.mxu0 0.0
        %2054 = vmatprep.subr.mxu0 0.0
        %2055 = vmatpush1.xpose.msra.mxu0 0.0
        %2056 = vmatprep.subr.mxu0 0.0
        %2057 = vmatpush1.xpose.msra.mxu0 0.0
        %2058 = vmatprep.subr.mxu0 0.0
        %2059 = vmatpush1.xpose.msra.mxu0 0.0
        %2060 = vmatprep.subr.mxu0 0.0
        %2061 = vmatpush1.xpose.msra.mxu0 0.0
        %2062 = vmatprep.subr.mxu0 0.0
        %2063 = vmatpush1.xpose.msra.mxu0 0.0
        %2064 = vmatprep.subr.mxu0 0.0
        %2065 = vmatpush1.xpose.msra.mxu0 0.0
        %2066 = vmatprep.subr.mxu0 0.0
        %2067 = vmatpush1.xpose.msra.mxu0 0.0
        %2068 = vmatprep.subr.mxu0 0.0
        %2069 = vmatpush1.xpose.msra.mxu0 0.0
        %2070 = vmatprep.subr.mxu0 0.0
        %2071 = vmatpush1.xpose.msra.mxu0 0.0
        %2072 = vmatprep.subr.mxu0 0.0
        %2073 = vmatpush1.xpose.msra.mxu0 0.0
        %2074 = vmatprep.subr.mxu0 0.0
        %2075 = vmatpush1.xpose.msra.mxu0 0.0
        %2076 = vmatprep.subr.mxu0 0.0
        %2077 = vmatpush1.xpose.msra.mxu0 0.0
        %2078 = vmatprep.subr.mxu0 0.0
        %2079 = vmatpush1.xpose.msra.mxu0 0.0
        %2080 = vmatprep.subr.mxu0 0.0
        %2081 = vmatpush1.xpose.msra.mxu0 0.0
        %2082 = vmatprep.subr.mxu0 0.0
        %2083 = vmatpush1.xpose.msra.mxu0 0.0
        %2084 = vmatprep.subr.mxu0 0.0
        %2085 = vmatpush1.xpose.msra.mxu0 0.0
        %2086 = vmatprep.subr.mxu0 0.0
        %2087 = vmatpush1.xpose.msra.mxu0 0.0
        %2088 = vmatprep.subr.mxu0 0.0
        %2089 = vmatpush1.xpose.msra.mxu0 0.0
        %2090 = vmatprep.subr.mxu0 0.0
        %2091 = vmatpush1.xpose.msra.mxu0 0.0
        %2092 = vmatprep.subr.mxu0 0.0
        %2093 = vmatpush1.xpose.msra.mxu0 0.0
        %2094 = vmatprep.mubr.f32.mxu0 0.0
        %2095 = vmatmul.mubr.f32.gmra.mrb[0].mxu0 %v2026
        %v2096 = vpop.f32.mrb[0].mxu0
        %v2097 = vadd.f32 0.0, %v2096
        %v2098 = vpop.f32.mrb[0].mxu0
        %2099 = vdwg.mxu0
        %2101 = vrot.lane.b32.xlu0 %v1630, 96
        %v2102 = vpop.permute.xlu0 %2101
        %v2103 = vsel %vm548, %v1630, 0
        %v2105 = vsel %vm548, %v2102, 0
        %2107 = vmatprep.subr.mxu0 0.0
        %2108 = vmatpush1.xpose.msra.mxu0 %v2105
        %2109 = vmatprep.subr.mxu0 0.0
        %2110 = vmatpush1.xpose.msra.mxu0 0.0
        %2111 = vmatprep.subr.mxu0 0.0
        %2112 = vmatpush1.xpose.msra.mxu0 0.0
        %2113 = vmatprep.subr.mxu0 0.0
        %2114 = vmatpush1.xpose.msra.mxu0 0.0
        %2115 = vmatprep.subr.mxu0 0.0
        %2116 = vmatpush1.xpose.msra.mxu0 0.0
        %2117 = vmatprep.subr.mxu0 0.0
        %2118 = vmatpush1.xpose.msra.mxu0 0.0
        %2119 = vmatprep.subr.mxu0 0.0
        %2120 = vmatpush1.xpose.msra.mxu0 0.0
        %2121 = vmatprep.subr.mxu0 0.0
        %2122 = vmatpush1.xpose.msra.mxu0 0.0
        %2123 = vmatprep.subr.mxu0 0.0
        %2124 = vmatpush1.xpose.msra.mxu0 0.0
        %2125 = vmatprep.subr.mxu0 0.0
        %2126 = vmatpush1.xpose.msra.mxu0 0.0
        %2127 = vmatprep.subr.mxu0 0.0
        %2128 = vmatpush1.xpose.msra.mxu0 0.0
        %2129 = vmatprep.subr.mxu0 0.0
        %2130 = vmatpush1.xpose.msra.mxu0 0.0
        %2131 = vmatprep.subr.mxu0 0.0
        %2132 = vmatpush1.xpose.msra.mxu0 0.0
        %2133 = vmatprep.subr.mxu0 0.0
        %2134 = vmatpush1.xpose.msra.mxu0 0.0
        %2135 = vmatprep.subr.mxu0 0.0
        %2136 = vmatpush1.xpose.msra.mxu0 0.0
        %2137 = vmatprep.subr.mxu0 0.0
        %2138 = vmatpush1.xpose.msra.mxu0 0.0
        %2139 = vmatprep.subr.mxu0 0.0
        %2140 = vmatpush1.xpose.msra.mxu0 0.0
        %2141 = vmatprep.subr.mxu0 0.0
        %2142 = vmatpush1.xpose.msra.mxu0 0.0
        %2143 = vmatprep.subr.mxu0 0.0
        %2144 = vmatpush1.xpose.msra.mxu0 0.0
        %2145 = vmatprep.subr.mxu0 0.0
        %2146 = vmatpush1.xpose.msra.mxu0 0.0
        %2147 = vmatprep.subr.mxu0 0.0
        %2148 = vmatpush1.xpose.msra.mxu0 0.0
        %2149 = vmatprep.subr.mxu0 0.0
        %2150 = vmatpush1.xpose.msra.mxu0 0.0
        %2151 = vmatprep.subr.mxu0 0.0
        %2152 = vmatpush1.xpose.msra.mxu0 0.0
        %2153 = vmatprep.subr.mxu0 0.0
        %2154 = vmatpush1.xpose.msra.mxu0 0.0
        %2155 = vmatprep.subr.mxu0 0.0
        %2156 = vmatpush1.xpose.msra.mxu0 0.0
        %2157 = vmatprep.subr.mxu0 0.0
        %2158 = vmatpush1.xpose.msra.mxu0 0.0
        %2159 = vmatprep.subr.mxu0 0.0
        %2160 = vmatpush1.xpose.msra.mxu0 0.0
        %2161 = vmatprep.subr.mxu0 0.0
        %2162 = vmatpush1.xpose.msra.mxu0 0.0
        %2163 = vmatprep.subr.mxu0 0.0
        %2164 = vmatpush1.xpose.msra.mxu0 0.0
        %2165 = vmatprep.subr.mxu0 0.0
        %2166 = vmatpush1.xpose.msra.mxu0 0.0
        %2167 = vmatprep.subr.mxu0 0.0
        %2168 = vmatpush1.xpose.msra.mxu0 0.0
        %2169 = vmatprep.subr.mxu0 0.0
        %2170 = vmatpush1.xpose.msra.mxu0 0.0
        %2171 = vmatprep.mubr.f32.mxu0 0.0
        %2172 = vmatmul.mubr.f32.gmra.mrb[0].mxu0 %v2103
        %v2173 = vpop.f32.mrb[0].mxu0
        %v2174 = vadd.f32 0.0, %v2173
        %v2175 = vpop.f32.mrb[0].mxu0
        %2176 = vdwg.mxu0
        %2178 = vrot.lane.b32.xlu0 %v1635, 96
        %v2179 = vpop.permute.xlu0 %2178
        %v2180 = vsel %vm548, %v1635, 0
        %v2182 = vsel %vm548, %v2179, 0
        %2184 = vmatprep.subr.mxu0 0.0
        %2185 = vmatpush1.xpose.msra.mxu0 %v2182
        %2186 = vmatprep.subr.mxu0 0.0
        %2187 = vmatpush1.xpose.msra.mxu0 0.0
        %2188 = vmatprep.subr.mxu0 0.0
        %2189 = vmatpush1.xpose.msra.mxu0 0.0
        %2190 = vmatprep.subr.mxu0 0.0
        %2191 = vmatpush1.xpose.msra.mxu0 0.0
        %2192 = vmatprep.subr.mxu0 0.0
        %2193 = vmatpush1.xpose.msra.mxu0 0.0
        %2194 = vmatprep.subr.mxu0 0.0
        %2195 = vmatpush1.xpose.msra.mxu0 0.0
        %2196 = vmatprep.subr.mxu0 0.0
        %2197 = vmatpush1.xpose.msra.mxu0 0.0
        %2198 = vmatprep.subr.mxu0 0.0
        %2199 = vmatpush1.xpose.msra.mxu0 0.0
        %2200 = vmatprep.subr.mxu0 0.0
        %2201 = vmatpush1.xpose.msra.mxu0 0.0
        %2202 = vmatprep.subr.mxu0 0.0
        %2203 = vmatpush1.xpose.msra.mxu0 0.0
        %2204 = vmatprep.subr.mxu0 0.0
        %2205 = vmatpush1.xpose.msra.mxu0 0.0
        %2206 = vmatprep.subr.mxu0 0.0
        %2207 = vmatpush1.xpose.msra.mxu0 0.0
        %2208 = vmatprep.subr.mxu0 0.0
        %2209 = vmatpush1.xpose.msra.mxu0 0.0
        %2210 = vmatprep.subr.mxu0 0.0
        %2211 = vmatpush1.xpose.msra.mxu0 0.0
        %2212 = vmatprep.subr.mxu0 0.0
        %2213 = vmatpush1.xpose.msra.mxu0 0.0
        %2214 = vmatprep.subr.mxu0 0.0
        %2215 = vmatpush1.xpose.msra.mxu0 0.0
        %2216 = vmatprep.subr.mxu0 0.0
        %2217 = vmatpush1.xpose.msra.mxu0 0.0
        %2218 = vmatprep.subr.mxu0 0.0
        %2219 = vmatpush1.xpose.msra.mxu0 0.0
        %2220 = vmatprep.subr.mxu0 0.0
        %2221 = vmatpush1.xpose.msra.mxu0 0.0
        %2222 = vmatprep.subr.mxu0 0.0
        %2223 = vmatpush1.xpose.msra.mxu0 0.0
        %2224 = vmatprep.subr.mxu0 0.0
        %2225 = vmatpush1.xpose.msra.mxu0 0.0
        %2226 = vmatprep.subr.mxu0 0.0
        %2227 = vmatpush1.xpose.msra.mxu0 0.0
        %2228 = vmatprep.subr.mxu0 0.0
        %2229 = vmatpush1.xpose.msra.mxu0 0.0
        %2230 = vmatprep.subr.mxu0 0.0
        %2231 = vmatpush1.xpose.msra.mxu0 0.0
        %2232 = vmatprep.subr.mxu0 0.0
        %2233 = vmatpush1.xpose.msra.mxu0 0.0
        %2234 = vmatprep.subr.mxu0 0.0
        %2235 = vmatpush1.xpose.msra.mxu0 0.0
        %2236 = vmatprep.subr.mxu0 0.0
        %2237 = vmatpush1.xpose.msra.mxu0 0.0
        %2238 = vmatprep.subr.mxu0 0.0
        %2239 = vmatpush1.xpose.msra.mxu0 0.0
        %2240 = vmatprep.subr.mxu0 0.0
        %2241 = vmatpush1.xpose.msra.mxu0 0.0
        %2242 = vmatprep.subr.mxu0 0.0
        %2243 = vmatpush1.xpose.msra.mxu0 0.0
        %2244 = vmatprep.subr.mxu0 0.0
        %2245 = vmatpush1.xpose.msra.mxu0 0.0
        %2246 = vmatprep.subr.mxu0 0.0
        %2247 = vmatpush1.xpose.msra.mxu0 0.0
        %2248 = vmatprep.mubr.f32.mxu0 0.0
        %2249 = vmatmul.mubr.f32.gmra.mrb[0].mxu0 %v2180
        %v2250 = vpop.f32.mrb[0].mxu0
        %v2251 = vadd.f32 0.0, %v2250
        %v2252 = vpop.f32.mrb[0].mxu0
        %2253 = vdwg.mxu0
        %vm2254 = vcmask 64512
        %v2255 = vsel %vm2254, %v1712, -inf
        %2256 = vmax.xlane.f32.xlu0 %v2255
        %v2257 = vpop.xlane.xlu0 %2256
        %v2258 = vsel %vm2254, %v1789, -inf
        %2259 = vmax.xlane.f32.xlu0 %v2258
        %v2260 = vpop.xlane.xlu0 %2259
        %v2261 = vsel %vm2254, %v1866, -inf
        %2262 = vmax.xlane.f32.xlu0 %v2261
        %v2263 = vpop.xlane.xlu0 %2262
        %v2264 = vsel %vm2254, %v1943, -inf
        %2265 = vmax.xlane.f32.xlu0 %v2264
        %v2266 = vpop.xlane.xlu0 %2265
        %v2267 = vsel %vm2254, %v2020, -inf
        %2268 = vmax.xlane.f32.xlu0 %v2267
        %v2269 = vpop.xlane.xlu0 %2268
        %v2270 = vsel %vm2254, %v2097, -inf
        %2271 = vmax.xlane.f32.xlu0 %v2270
        %v2272 = vpop.xlane.xlu0 %2271
        %v2273 = vsel %vm2254, %v2174, -inf
        %2274 = vmax.xlane.f32.xlu0 %v2273
        %v2275 = vpop.xlane.xlu0 %2274
        %v2276 = vsel %vm2254, %v2251, -inf
        %2277 = vmax.xlane.f32.xlu0 %v2276
        %v2278 = vpop.xlane.xlu0 %2277
        %v2279 = vsub.f32 %v1712, %v2257
        %v2280 = vsub.f32 %v1789, %v2260
        %v2281 = vsub.f32 %v1866, %v2263
        %v2282 = vsub.f32 %v1943, %v2266
        %v2283 = vsub.f32 %v2020, %v2269
        %v2284 = vsub.f32 %v2097, %v2272
        %v2285 = vsub.f32 %v2174, %v2275
        %v2286 = vsub.f32 %v2251, %v2278
        %v2287 = vmul.f32 %v2279, 1.442695
        %v2288 = vpow.pop %v2287
        %v2289 = vmul.f32 %v2280, 1.442695
        %v2290 = vpow.pop %v2289
        %v2291 = vmul.f32 %v2281, 1.442695
        %v2292 = vpow.pop %v2291
        %v2293 = vmul.f32 %v2282, 1.442695
        %v2294 = vpow.pop %v2293
        %v2295 = vmul.f32 %v2283, 1.442695
        %v2296 = vpow.pop %v2295
        %v2297 = vmul.f32 %v2284, 1.442695
        %v2298 = vpow.pop %v2297
        %v2299 = vmul.f32 %v2285, 1.442695
        %v2300 = vpow.pop %v2299
        %v2301 = vmul.f32 %v2286, 1.442695
        %v2302 = vpow.pop %v2301
        %v2303 = vsel %vm2254, %v2288, 0.0
        %2304 = vadd.xlane.f32.xlu0 %v2303
        %v2305 = vpop.xlane.xlu0 %2304
        %v2306 = vsel %vm2254, %v2290, 0.0
        %2307 = vadd.xlane.f32.xlu0 %v2306
        %v2308 = vpop.xlane.xlu0 %2307
        %v2309 = vsel %vm2254, %v2292, 0.0
        %2310 = vadd.xlane.f32.xlu0 %v2309
        %v2311 = vpop.xlane.xlu0 %2310
        %v2312 = vsel %vm2254, %v2294, 0.0
        %2313 = vadd.xlane.f32.xlu0 %v2312
        %v2314 = vpop.xlane.xlu0 %2313
        %v2315 = vsel %vm2254, %v2296, 0.0
        %2316 = vadd.xlane.f32.xlu0 %v2315
        %v2317 = vpop.xlane.xlu0 %2316
        %v2318 = vsel %vm2254, %v2298, 0.0
        %2319 = vadd.xlane.f32.xlu0 %v2318
        %v2320 = vpop.xlane.xlu0 %2319
        %v2321 = vsel %vm2254, %v2300, 0.0
        %2322 = vadd.xlane.f32.xlu0 %v2321
        %v2323 = vpop.xlane.xlu0 %2322
        %v2324 = vsel %vm2254, %v2302, 0.0
        %2325 = vadd.xlane.f32.xlu0 %v2324
        %v2326 = vpop.xlane.xlu0 %2325
        %v2327 = vrcp.pop %v2305
        %v2328 = vrcp.pop %v2308
        %v2329 = vrcp.pop %v2311
        %v2330 = vrcp.pop %v2314
        %v2331 = vrcp.pop %v2317
        %v2332 = vrcp.pop %v2320
        %v2333 = vrcp.pop %v2323
        %v2334 = vrcp.pop %v2326
        %v2335 = vmul.f32 %v2288, %v2327
        %v2336 = vmul.f32 %v2290, %v2328
        %v2337 = vmul.f32 %v2292, %v2329
        %v2338 = vmul.f32 %v2294, %v2330
        %v2339 = vmul.f32 %v2296, %v2331
        %v2340 = vmul.f32 %v2298, %v2332
        %v2341 = vmul.f32 %v2300, %v2333
        %v2342 = vmul.f32 %v2302, %v2334
        %2343 = vrot.lane.b32.xlu0 %v1600, 64
        %v2344 = vpop.permute.xlu0 %2343
        %v2347 = vsel %vm2254, %v2335, 0
        %2349 = vmatprep.subr.mxu0 0.0
        %2350 = vmatpush1.msra.mxu0 %v2344
        %2351 = vmatprep.subr.mxu0 0.0
        %2352 = vmatpush1.msra.mxu0 0.0
        %2353 = vmatprep.subr.mxu0 0.0
        %2354 = vmatpush1.msra.mxu0 0.0
        %2355 = vmatprep.subr.mxu0 0.0
        %2356 = vmatpush1.msra.mxu0 0.0
        %2357 = vmatprep.subr.mxu0 0.0
        %2358 = vmatpush1.msra.mxu0 0.0
        %2359 = vmatprep.subr.mxu0 0.0
        %2360 = vmatpush1.msra.mxu0 0.0
        %2361 = vmatprep.subr.mxu0 0.0
        %2362 = vmatpush1.msra.mxu0 0.0
        %2363 = vmatprep.subr.mxu0 0.0
        %2364 = vmatpush1.msra.mxu0 0.0
        %2365 = vmatprep.subr.mxu0 0.0
        %2366 = vmatpush1.msra.mxu0 0.0
        %2367 = vmatprep.subr.mxu0 0.0
        %2368 = vmatpush1.msra.mxu0 0.0
        %2369 = vmatprep.subr.mxu0 0.0
        %2370 = vmatpush1.msra.mxu0 0.0
        %2371 = vmatprep.subr.mxu0 0.0
        %2372 = vmatpush1.msra.mxu0 0.0
        %2373 = vmatprep.subr.mxu0 0.0
        %2374 = vmatpush1.msra.mxu0 0.0
        %2375 = vmatprep.subr.mxu0 0.0
        %2376 = vmatpush1.msra.mxu0 0.0
        %2377 = vmatprep.subr.mxu0 0.0
        %2378 = vmatpush1.msra.mxu0 0.0
        %2379 = vmatprep.subr.mxu0 0.0
        %2380 = vmatpush1.msra.mxu0 0.0
        %2381 = vmatprep.subr.mxu0 0.0
        %2382 = vmatpush1.msra.mxu0 0.0
        %2383 = vmatprep.subr.mxu0 0.0
        %2384 = vmatpush1.msra.mxu0 0.0
        %2385 = vmatprep.subr.mxu0 0.0
        %2386 = vmatpush1.msra.mxu0 0.0
        %2387 = vmatprep.subr.mxu0 0.0
        %2388 = vmatpush1.msra.mxu0 0.0
        %2389 = vmatprep.subr.mxu0 0.0
        %2390 = vmatpush1.msra.mxu0 0.0
        %2391 = vmatprep.subr.mxu0 0.0
        %2392 = vmatpush1.msra.mxu0 0.0
        %2393 = vmatprep.subr.mxu0 0.0
        %2394 = vmatpush1.msra.mxu0 0.0
        %2395 = vmatprep.subr.mxu0 0.0
        %2396 = vmatpush1.msra.mxu0 0.0
        %2397 = vmatprep.subr.mxu0 0.0
        %2398 = vmatpush1.msra.mxu0 0.0
        %2399 = vmatprep.subr.mxu0 0.0
        %2400 = vmatpush1.msra.mxu0 0.0
        %2401 = vmatprep.subr.mxu0 0.0
        %2402 = vmatpush1.msra.mxu0 0.0
        %2403 = vmatprep.subr.mxu0 0.0
        %2404 = vmatpush1.msra.mxu0 0.0
        %2405 = vmatprep.subr.mxu0 0.0
        %2406 = vmatpush1.msra.mxu0 0.0
        %2407 = vmatprep.subr.mxu0 0.0
        %2408 = vmatpush1.msra.mxu0 0.0
        %2409 = vmatprep.subr.mxu0 0.0
        %2410 = vmatpush1.msra.mxu0 0.0
        %2411 = vmatprep.subr.mxu0 0.0
        %2412 = vmatpush1.msra.mxu0 0.0
        %2413 = vmatprep.mubr.f32.mxu0 0.0
        %2414 = vmatmul.mubr.f32.gmra.mrb[0].mxu0 %v2347
        %v2415 = vpop.f32.mrb[0].mxu0
        %v2416 = vadd.f32 0.0, %v2415
        %v2417 = vpop.f32.mrb[0].mxu0
        %2418 = vdwg.mxu0
        %2419 = vrot.lane.b32.xlu0 %v1605, 64
        %v2420 = vpop.permute.xlu0 %2419
        %v2423 = vsel %vm2254, %v2336, 0
        %2425 = vmatprep.subr.mxu0 0.0
        %2426 = vmatpush1.msra.mxu0 %v2420
        %2427 = vmatprep.subr.mxu0 0.0
        %2428 = vmatpush1.msra.mxu0 0.0
        %2429 = vmatprep.subr.mxu0 0.0
        %2430 = vmatpush1.msra.mxu0 0.0
        %2431 = vmatprep.subr.mxu0 0.0
        %2432 = vmatpush1.msra.mxu0 0.0
        %2433 = vmatprep.subr.mxu0 0.0
        %2434 = vmatpush1.msra.mxu0 0.0
        %2435 = vmatprep.subr.mxu0 0.0
        %2436 = vmatpush1.msra.mxu0 0.0
        %2437 = vmatprep.subr.mxu0 0.0
        %2438 = vmatpush1.msra.mxu0 0.0
        %2439 = vmatprep.subr.mxu0 0.0
        %2440 = vmatpush1.msra.mxu0 0.0
        %2441 = vmatprep.subr.mxu0 0.0
        %2442 = vmatpush1.msra.mxu0 0.0
        %2443 = vmatprep.subr.mxu0 0.0
        %2444 = vmatpush1.msra.mxu0 0.0
        %2445 = vmatprep.subr.mxu0 0.0
        %2446 = vmatpush1.msra.mxu0 0.0
        %2447 = vmatprep.subr.mxu0 0.0
        %2448 = vmatpush1.msra.mxu0 0.0
        %2449 = vmatprep.subr.mxu0 0.0
        %2450 = vmatpush1.msra.mxu0 0.0
        %2451 = vmatprep.subr.mxu0 0.0
        %2452 = vmatpush1.msra.mxu0 0.0
        %2453 = vmatprep.subr.mxu0 0.0
        %2454 = vmatpush1.msra.mxu0 0.0
        %2455 = vmatprep.subr.mxu0 0.0
        %2456 = vmatpush1.msra.mxu0 0.0
        %2457 = vmatprep.subr.mxu0 0.0
        %2458 = vmatpush1.msra.mxu0 0.0
        %2459 = vmatprep.subr.mxu0 0.0
        %2460 = vmatpush1.msra.mxu0 0.0
        %2461 = vmatprep.subr.mxu0 0.0
        %2462 = vmatpush1.msra.mxu0 0.0
        %2463 = vmatprep.subr.mxu0 0.0
        %2464 = vmatpush1.msra.mxu0 0.0
        %2465 = vmatprep.subr.mxu0 0.0
        %2466 = vmatpush1.msra.mxu0 0.0
        %2467 = vmatprep.subr.mxu0 0.0
        %2468 = vmatpush1.msra.mxu0 0.0
        %2469 = vmatprep.subr.mxu0 0.0
        %2470 = vmatpush1.msra.mxu0 0.0
        %2471 = vmatprep.subr.mxu0 0.0
        %2472 = vmatpush1.msra.mxu0 0.0
        %2473 = vmatprep.subr.mxu0 0.0
        %2474 = vmatpush1.msra.mxu0 0.0
        %2475 = vmatprep.subr.mxu0 0.0
        %2476 = vmatpush1.msra.mxu0 0.0
        %2477 = vmatprep.subr.mxu0 0.0
        %2478 = vmatpush1.msra.mxu0 0.0
        %2479 = vmatprep.subr.mxu0 0.0
        %2480 = vmatpush1.msra.mxu0 0.0
        %2481 = vmatprep.subr.mxu0 0.0
        %2482 = vmatpush1.msra.mxu0 0.0
        %2483 = vmatprep.subr.mxu0 0.0
        %2484 = vmatpush1.msra.mxu0 0.0
        %2485 = vmatprep.subr.mxu0 0.0
        %2486 = vmatpush1.msra.mxu0 0.0
        %2487 = vmatprep.subr.mxu0 0.0
        %2488 = vmatpush1.msra.mxu0 0.0
        %2489 = vmatprep.mubr.f32.mxu0 0.0
        %2490 = vmatmul.mubr.f32.gmra.mrb[0].mxu0 %v2423
        %v2491 = vpop.f32.mrb[0].mxu0
        %v2492 = vadd.f32 0.0, %v2491
        %v2493 = vpop.f32.mrb[0].mxu0
        %2494 = vdwg.mxu0
        %2495 = vrot.lane.b32.xlu0 %v1610, 64
        %v2496 = vpop.permute.xlu0 %2495
        %v2499 = vsel %vm2254, %v2337, 0
        %2501 = vmatprep.subr.mxu0 0.0
        %2502 = vmatpush1.msra.mxu0 %v2496
        %2503 = vmatprep.subr.mxu0 0.0
        %2504 = vmatpush1.msra.mxu0 0.0
        %2505 = vmatprep.subr.mxu0 0.0
        %2506 = vmatpush1.msra.mxu0 0.0
        %2507 = vmatprep.subr.mxu0 0.0
        %2508 = vmatpush1.msra.mxu0 0.0
        %2509 = vmatprep.subr.mxu0 0.0
        %2510 = vmatpush1.msra.mxu0 0.0
        %2511 = vmatprep.subr.mxu0 0.0
        %2512 = vmatpush1.msra.mxu0 0.0
        %2513 = vmatprep.subr.mxu0 0.0
        %2514 = vmatpush1.msra.mxu0 0.0
        %2515 = vmatprep.subr.mxu0 0.0
        %2516 = vmatpush1.msra.mxu0 0.0
        %2517 = vmatprep.subr.mxu0 0.0
        %2518 = vmatpush1.msra.mxu0 0.0
        %2519 = vmatprep.subr.mxu0 0.0
        %2520 = vmatpush1.msra.mxu0 0.0
        %2521 = vmatprep.subr.mxu0 0.0
        %2522 = vmatpush1.msra.mxu0 0.0
        %2523 = vmatprep.subr.mxu0 0.0
        %2524 = vmatpush1.msra.mxu0 0.0
        %2525 = vmatprep.subr.mxu0 0.0
        %2526 = vmatpush1.msra.mxu0 0.0
        %2527 = vmatprep.subr.mxu0 0.0
        %2528 = vmatpush1.msra.mxu0 0.0
        %2529 = vmatprep.subr.mxu0 0.0
        %2530 = vmatpush1.msra.mxu0 0.0
        %2531 = vmatprep.subr.mxu0 0.0
        %2532 = vmatpush1.msra.mxu0 0.0
        %2533 = vmatprep.subr.mxu0 0.0
        %2534 = vmatpush1.msra.mxu0 0.0
        %2535 = vmatprep.subr.mxu0 0.0
        %2536 = vmatpush1.msra.mxu0 0.0
        %2537 = vmatprep.subr.mxu0 0.0
        %2538 = vmatpush1.msra.mxu0 0.0
        %2539 = vmatprep.subr.mxu0 0.0
        %2540 = vmatpush1.msra.mxu0 0.0
        %2541 = vmatprep.subr.mxu0 0.0
        %2542 = vmatpush1.msra.mxu0 0.0
        %2543 = vmatprep.subr.mxu0 0.0
        %2544 = vmatpush1.msra.mxu0 0.0
        %2545 = vmatprep.subr.mxu0 0.0
        %2546 = vmatpush1.msra.mxu0 0.0
        %2547 = vmatprep.subr.mxu0 0.0
        %2548 = vmatpush1.msra.mxu0 0.0
        %2549 = vmatprep.subr.mxu0 0.0
        %2550 = vmatpush1.msra.mxu0 0.0
        %2551 = vmatprep.subr.mxu0 0.0
        %2552 = vmatpush1.msra.mxu0 0.0
        %2553 = vmatprep.subr.mxu0 0.0
        %2554 = vmatpush1.msra.mxu0 0.0
        %2555 = vmatprep.subr.mxu0 0.0
        %2556 = vmatpush1.msra.mxu0 0.0
        %2557 = vmatprep.subr.mxu0 0.0
        %2558 = vmatpush1.msra.mxu0 0.0
        %2559 = vmatprep.subr.mxu0 0.0
        %2560 = vmatpush1.msra.mxu0 0.0
        %2561 = vmatprep.subr.mxu0 0.0
        %2562 = vmatpush1.msra.mxu0 0.0
        %2563 = vmatprep.subr.mxu0 0.0
        %2564 = vmatpush1.msra.mxu0 0.0
        %2565 = vmatprep.mubr.f32.mxu0 0.0
        %2566 = vmatmul.mubr.f32.gmra.mrb[0].mxu0 %v2499
        %v2567 = vpop.f32.mrb[0].mxu0
        %v2568 = vadd.f32 0.0, %v2567
        %v2569 = vpop.f32.mrb[0].mxu0
        %2570 = vdwg.mxu0
        %2571 = vrot.lane.b32.xlu0 %v1615, 64
        %v2572 = vpop.permute.xlu0 %2571
        %v2575 = vsel %vm2254, %v2338, 0
        %2577 = vmatprep.subr.mxu0 0.0
        %2578 = vmatpush1.msra.mxu0 %v2572
        %2579 = vmatprep.subr.mxu0 0.0
        %2580 = vmatpush1.msra.mxu0 0.0
        %2581 = vmatprep.subr.mxu0 0.0
        %2582 = vmatpush1.msra.mxu0 0.0
        %2583 = vmatprep.subr.mxu0 0.0
        %2584 = vmatpush1.msra.mxu0 0.0
        %2585 = vmatprep.subr.mxu0 0.0
        %2586 = vmatpush1.msra.mxu0 0.0
        %2587 = vmatprep.subr.mxu0 0.0
        %2588 = vmatpush1.msra.mxu0 0.0
        %2589 = vmatprep.subr.mxu0 0.0
        %2590 = vmatpush1.msra.mxu0 0.0
        %2591 = vmatprep.subr.mxu0 0.0
        %2592 = vmatpush1.msra.mxu0 0.0
        %2593 = vmatprep.subr.mxu0 0.0
        %2594 = vmatpush1.msra.mxu0 0.0
        %2595 = vmatprep.subr.mxu0 0.0
        %2596 = vmatpush1.msra.mxu0 0.0
        %2597 = vmatprep.subr.mxu0 0.0
        %2598 = vmatpush1.msra.mxu0 0.0
        %2599 = vmatprep.subr.mxu0 0.0
        %2600 = vmatpush1.msra.mxu0 0.0
        %2601 = vmatprep.subr.mxu0 0.0
        %2602 = vmatpush1.msra.mxu0 0.0
        %2603 = vmatprep.subr.mxu0 0.0
        %2604 = vmatpush1.msra.mxu0 0.0
        %2605 = vmatprep.subr.mxu0 0.0
        %2606 = vmatpush1.msra.mxu0 0.0
        %2607 = vmatprep.subr.mxu0 0.0
        %2608 = vmatpush1.msra.mxu0 0.0
        %2609 = vmatprep.subr.mxu0 0.0
        %2610 = vmatpush1.msra.mxu0 0.0
        %2611 = vmatprep.subr.mxu0 0.0
        %2612 = vmatpush1.msra.mxu0 0.0
        %2613 = vmatprep.subr.mxu0 0.0
        %2614 = vmatpush1.msra.mxu0 0.0
        %2615 = vmatprep.subr.mxu0 0.0
        %2616 = vmatpush1.msra.mxu0 0.0
        %2617 = vmatprep.subr.mxu0 0.0
        %2618 = vmatpush1.msra.mxu0 0.0
        %2619 = vmatprep.subr.mxu0 0.0
        %2620 = vmatpush1.msra.mxu0 0.0
        %2621 = vmatprep.subr.mxu0 0.0
        %2622 = vmatpush1.msra.mxu0 0.0
        %2623 = vmatprep.subr.mxu0 0.0
        %2624 = vmatpush1.msra.mxu0 0.0
        %2625 = vmatprep.subr.mxu0 0.0
        %2626 = vmatpush1.msra.mxu0 0.0
        %2627 = vmatprep.subr.mxu0 0.0
        %2628 = vmatpush1.msra.mxu0 0.0
        %2629 = vmatprep.subr.mxu0 0.0
        %2630 = vmatpush1.msra.mxu0 0.0
        %2631 = vmatprep.subr.mxu0 0.0
        %2632 = vmatpush1.msra.mxu0 0.0
        %2633 = vmatprep.subr.mxu0 0.0
        %2634 = vmatpush1.msra.mxu0 0.0
        %2635 = vmatprep.subr.mxu0 0.0
        %2636 = vmatpush1.msra.mxu0 0.0
        %2637 = vmatprep.subr.mxu0 0.0
        %2638 = vmatpush1.msra.mxu0 0.0
        %2639 = vmatprep.subr.mxu0 0.0
        %2640 = vmatpush1.msra.mxu0 0.0
        %2641 = vmatprep.mubr.f32.mxu0 0.0
        %2642 = vmatmul.mubr.f32.gmra.mrb[0].mxu0 %v2575
        %v2643 = vpop.f32.mrb[0].mxu0
        %v2644 = vadd.f32 0.0, %v2643
        %v2645 = vpop.f32.mrb[0].mxu0
        %2646 = vdwg.mxu0
        %2647 = vrot.lane.b32.xlu0 %v1620, 64
        %v2648 = vpop.permute.xlu0 %2647
        %v2651 = vsel %vm2254, %v2339, 0
        %2653 = vmatprep.subr.mxu0 0.0
        %2654 = vmatpush1.msra.mxu0 %v2648
        %2655 = vmatprep.subr.mxu0 0.0
        %2656 = vmatpush1.msra.mxu0 0.0
        %2657 = vmatprep.subr.mxu0 0.0
        %2658 = vmatpush1.msra.mxu0 0.0
        %2659 = vmatprep.subr.mxu0 0.0
        %2660 = vmatpush1.msra.mxu0 0.0
        %2661 = vmatprep.subr.mxu0 0.0
        %2662 = vmatpush1.msra.mxu0 0.0
        %2663 = vmatprep.subr.mxu0 0.0
        %2664 = vmatpush1.msra.mxu0 0.0
        %2665 = vmatprep.subr.mxu0 0.0
        %2666 = vmatpush1.msra.mxu0 0.0
        %2667 = vmatprep.subr.mxu0 0.0
        %2668 = vmatpush1.msra.mxu0 0.0
        %2669 = vmatprep.subr.mxu0 0.0
        %2670 = vmatpush1.msra.mxu0 0.0
        %2671 = vmatprep.subr.mxu0 0.0
        %2672 = vmatpush1.msra.mxu0 0.0
        %2673 = vmatprep.subr.mxu0 0.0
        %2674 = vmatpush1.msra.mxu0 0.0
        %2675 = vmatprep.subr.mxu0 0.0
        %2676 = vmatpush1.msra.mxu0 0.0
        %2677 = vmatprep.subr.mxu0 0.0
        %2678 = vmatpush1.msra.mxu0 0.0
        %2679 = vmatprep.subr.mxu0 0.0
        %2680 = vmatpush1.msra.mxu0 0.0
        %2681 = vmatprep.subr.mxu0 0.0
        %2682 = vmatpush1.msra.mxu0 0.0
        %2683 = vmatprep.subr.mxu0 0.0
        %2684 = vmatpush1.msra.mxu0 0.0
        %2685 = vmatprep.subr.mxu0 0.0
        %2686 = vmatpush1.msra.mxu0 0.0
        %2687 = vmatprep.subr.mxu0 0.0
        %2688 = vmatpush1.msra.mxu0 0.0
        %2689 = vmatprep.subr.mxu0 0.0
        %2690 = vmatpush1.msra.mxu0 0.0
        %2691 = vmatprep.subr.mxu0 0.0
        %2692 = vmatpush1.msra.mxu0 0.0
        %2693 = vmatprep.subr.mxu0 0.0
        %2694 = vmatpush1.msra.mxu0 0.0
        %2695 = vmatprep.subr.mxu0 0.0
        %2696 = vmatpush1.msra.mxu0 0.0
        %2697 = vmatprep.subr.mxu0 0.0
        %2698 = vmatpush1.msra.mxu0 0.0
        %2699 = vmatprep.subr.mxu0 0.0
        %2700 = vmatpush1.msra.mxu0 0.0
        %2701 = vmatprep.subr.mxu0 0.0
        %2702 = vmatpush1.msra.mxu0 0.0
        %2703 = vmatprep.subr.mxu0 0.0
        %2704 = vmatpush1.msra.mxu0 0.0
        %2705 = vmatprep.subr.mxu0 0.0
        %2706 = vmatpush1.msra.mxu0 0.0
        %2707 = vmatprep.subr.mxu0 0.0
        %2708 = vmatpush1.msra.mxu0 0.0
        %2709 = vmatprep.subr.mxu0 0.0
        %2710 = vmatpush1.msra.mxu0 0.0
        %2711 = vmatprep.subr.mxu0 0.0
        %2712 = vmatpush1.msra.mxu0 0.0
        %2713 = vmatprep.subr.mxu0 0.0
        %2714 = vmatpush1.msra.mxu0 0.0
        %2715 = vmatprep.subr.mxu0 0.0
        %2716 = vmatpush1.msra.mxu0 0.0
        %2717 = vmatprep.mubr.f32.mxu0 0.0
        %2718 = vmatmul.mubr.f32.gmra.mrb[0].mxu0 %v2651
        %v2719 = vpop.f32.mrb[0].mxu0
        %v2720 = vadd.f32 0.0, %v2719
        %v2721 = vpop.f32.mrb[0].mxu0
        %2722 = vdwg.mxu0
        %2723 = vrot.lane.b32.xlu0 %v1625, 64
        %v2724 = vpop.permute.xlu0 %2723
        %v2727 = vsel %vm2254, %v2340, 0
        %2729 = vmatprep.subr.mxu0 0.0
        %2730 = vmatpush1.msra.mxu0 %v2724
        %2731 = vmatprep.subr.mxu0 0.0
        %2732 = vmatpush1.msra.mxu0 0.0
        %2733 = vmatprep.subr.mxu0 0.0
        %2734 = vmatpush1.msra.mxu0 0.0
        %2735 = vmatprep.subr.mxu0 0.0
        %2736 = vmatpush1.msra.mxu0 0.0
        %2737 = vmatprep.subr.mxu0 0.0
        %2738 = vmatpush1.msra.mxu0 0.0
        %2739 = vmatprep.subr.mxu0 0.0
        %2740 = vmatpush1.msra.mxu0 0.0
        %2741 = vmatprep.subr.mxu0 0.0
        %2742 = vmatpush1.msra.mxu0 0.0
        %2743 = vmatprep.subr.mxu0 0.0
        %2744 = vmatpush1.msra.mxu0 0.0
        %2745 = vmatprep.subr.mxu0 0.0
        %2746 = vmatpush1.msra.mxu0 0.0
        %2747 = vmatprep.subr.mxu0 0.0
        %2748 = vmatpush1.msra.mxu0 0.0
        %2749 = vmatprep.subr.mxu0 0.0
        %2750 = vmatpush1.msra.mxu0 0.0
        %2751 = vmatprep.subr.mxu0 0.0
        %2752 = vmatpush1.msra.mxu0 0.0
        %2753 = vmatprep.subr.mxu0 0.0
        %2754 = vmatpush1.msra.mxu0 0.0
        %2755 = vmatprep.subr.mxu0 0.0
        %2756 = vmatpush1.msra.mxu0 0.0
        %2757 = vmatprep.subr.mxu0 0.0
        %2758 = vmatpush1.msra.mxu0 0.0
        %2759 = vmatprep.subr.mxu0 0.0
        %2760 = vmatpush1.msra.mxu0 0.0
        %2761 = vmatprep.subr.mxu0 0.0
        %2762 = vmatpush1.msra.mxu0 0.0
        %2763 = vmatprep.subr.mxu0 0.0
        %2764 = vmatpush1.msra.mxu0 0.0
        %2765 = vmatprep.subr.mxu0 0.0
        %2766 = vmatpush1.msra.mxu0 0.0
        %2767 = vmatprep.subr.mxu0 0.0
        %2768 = vmatpush1.msra.mxu0 0.0
        %2769 = vmatprep.subr.mxu0 0.0
        %2770 = vmatpush1.msra.mxu0 0.0
        %2771 = vmatprep.subr.mxu0 0.0
        %2772 = vmatpush1.msra.mxu0 0.0
        %2773 = vmatprep.subr.mxu0 0.0
        %2774 = vmatpush1.msra.mxu0 0.0
        %2775 = vmatprep.subr.mxu0 0.0
        %2776 = vmatpush1.msra.mxu0 0.0
        %2777 = vmatprep.subr.mxu0 0.0
        %2778 = vmatpush1.msra.mxu0 0.0
        %2779 = vmatprep.subr.mxu0 0.0
        %2780 = vmatpush1.msra.mxu0 0.0
        %2781 = vmatprep.subr.mxu0 0.0
        %2782 = vmatpush1.msra.mxu0 0.0
        %2783 = vmatprep.subr.mxu0 0.0
        %2784 = vmatpush1.msra.mxu0 0.0
        %2785 = vmatprep.subr.mxu0 0.0
        %2786 = vmatpush1.msra.mxu0 0.0
        %2787 = vmatprep.subr.mxu0 0.0
        %2788 = vmatpush1.msra.mxu0 0.0
        %2789 = vmatprep.subr.mxu0 0.0
        %2790 = vmatpush1.msra.mxu0 0.0
        %2791 = vmatprep.subr.mxu0 0.0
        %2792 = vmatpush1.msra.mxu0 0.0
        %2793 = vmatprep.mubr.f32.mxu0 0.0
        %2794 = vmatmul.mubr.f32.gmra.mrb[0].mxu0 %v2727
        %v2795 = vpop.f32.mrb[0].mxu0
        %v2796 = vadd.f32 0.0, %v2795
        %v2797 = vpop.f32.mrb[0].mxu0
        %2798 = vdwg.mxu0
        %2799 = vrot.lane.b32.xlu0 %v1630, 64
        %v2800 = vpop.permute.xlu0 %2799
        %v2803 = vsel %vm2254, %v2341, 0
        %2805 = vmatprep.subr.mxu0 0.0
        %2806 = vmatpush1.msra.mxu0 %v2800
        %2807 = vmatprep.subr.mxu0 0.0
        %2808 = vmatpush1.msra.mxu0 0.0
        %2809 = vmatprep.subr.mxu0 0.0
        %2810 = vmatpush1.msra.mxu0 0.0
        %2811 = vmatprep.subr.mxu0 0.0
        %2812 = vmatpush1.msra.mxu0 0.0
        %2813 = vmatprep.subr.mxu0 0.0
        %2814 = vmatpush1.msra.mxu0 0.0
        %2815 = vmatprep.subr.mxu0 0.0
        %2816 = vmatpush1.msra.mxu0 0.0
        %2817 = vmatprep.subr.mxu0 0.0
        %2818 = vmatpush1.msra.mxu0 0.0
        %2819 = vmatprep.subr.mxu0 0.0
        %2820 = vmatpush1.msra.mxu0 0.0
        %2821 = vmatprep.subr.mxu0 0.0
        %2822 = vmatpush1.msra.mxu0 0.0
        %2823 = vmatprep.subr.mxu0 0.0
        %2824 = vmatpush1.msra.mxu0 0.0
        %2825 = vmatprep.subr.mxu0 0.0
        %2826 = vmatpush1.msra.mxu0 0.0
        %2827 = vmatprep.subr.mxu0 0.0
        %2828 = vmatpush1.msra.mxu0 0.0
        %2829 = vmatprep.subr.mxu0 0.0
        %2830 = vmatpush1.msra.mxu0 0.0
        %2831 = vmatprep.subr.mxu0 0.0
        %2832 = vmatpush1.msra.mxu0 0.0
        %2833 = vmatprep.subr.mxu0 0.0
        %2834 = vmatpush1.msra.mxu0 0.0
        %2835 = vmatprep.subr.mxu0 0.0
        %2836 = vmatpush1.msra.mxu0 0.0
        %2837 = vmatprep.subr.mxu0 0.0
        %2838 = vmatpush1.msra.mxu0 0.0
        %2839 = vmatprep.subr.mxu0 0.0
        %2840 = vmatpush1.msra.mxu0 0.0
        %2841 = vmatprep.subr.mxu0 0.0
        %2842 = vmatpush1.msra.mxu0 0.0
        %2843 = vmatprep.subr.mxu0 0.0
        %2844 = vmatpush1.msra.mxu0 0.0
        %2845 = vmatprep.subr.mxu0 0.0
        %2846 = vmatpush1.msra.mxu0 0.0
        %2847 = vmatprep.subr.mxu0 0.0
        %2848 = vmatpush1.msra.mxu0 0.0
        %2849 = vmatprep.subr.mxu0 0.0
        %2850 = vmatpush1.msra.mxu0 0.0
        %2851 = vmatprep.subr.mxu0 0.0
        %2852 = vmatpush1.msra.mxu0 0.0
        %2853 = vmatprep.subr.mxu0 0.0
        %2854 = vmatpush1.msra.mxu0 0.0
        %2855 = vmatprep.subr.mxu0 0.0
        %2856 = vmatpush1.msra.mxu0 0.0
        %2857 = vmatprep.subr.mxu0 0.0
        %2858 = vmatpush1.msra.mxu0 0.0
        %2859 = vmatprep.subr.mxu0 0.0
        %2860 = vmatpush1.msra.mxu0 0.0
        %2861 = vmatprep.subr.mxu0 0.0
        %2862 = vmatpush1.msra.mxu0 0.0
        %2863 = vmatprep.subr.mxu0 0.0
        %2864 = vmatpush1.msra.mxu0 0.0
        %2865 = vmatprep.subr.mxu0 0.0
        %2866 = vmatpush1.msra.mxu0 0.0
        %2867 = vmatprep.subr.mxu0 0.0
        %2868 = vmatpush1.msra.mxu0 0.0
        %2869 = vmatprep.mubr.f32.mxu0 0.0
        %2870 = vmatmul.mubr.f32.gmra.mrb[0].mxu0 %v2803
        %v2871 = vpop.f32.mrb[0].mxu0
        %v2872 = vadd.f32 0.0, %v2871
        %v2873 = vpop.f32.mrb[0].mxu0
        %2874 = vdwg.mxu0
        %2875 = vrot.lane.b32.xlu0 %v1635, 64
        %v2876 = vpop.permute.xlu0 %2875
        %v2879 = vsel %vm2254, %v2342, 0
        %2881 = vmatprep.subr.mxu0 0.0
        %2882 = vmatpush1.msra.mxu0 %v2876
        %2883 = vmatprep.subr.mxu0 0.0
        %2884 = vmatpush1.msra.mxu0 0.0
        %2885 = vmatprep.subr.mxu0 0.0
        %2886 = vmatpush1.msra.mxu0 0.0
        %2887 = vmatprep.subr.mxu0 0.0
        %2888 = vmatpush1.msra.mxu0 0.0
        %2889 = vmatprep.subr.mxu0 0.0
        %2890 = vmatpush1.msra.mxu0 0.0
        %2891 = vmatprep.subr.mxu0 0.0
        %2892 = vmatpush1.msra.mxu0 0.0
        %2893 = vmatprep.subr.mxu0 0.0
        %2894 = vmatpush1.msra.mxu0 0.0
        %2895 = vmatprep.subr.mxu0 0.0
        %2896 = vmatpush1.msra.mxu0 0.0
        %2897 = vmatprep.subr.mxu0 0.0
        %2898 = vmatpush1.msra.mxu0 0.0
        %2899 = vmatprep.subr.mxu0 0.0
        %2900 = vmatpush1.msra.mxu0 0.0
        %2901 = vmatprep.subr.mxu0 0.0
        %2902 = vmatpush1.msra.mxu0 0.0
        %2903 = vmatprep.subr.mxu0 0.0
        %2904 = vmatpush1.msra.mxu0 0.0
        %2905 = vmatprep.subr.mxu0 0.0
        %2906 = vmatpush1.msra.mxu0 0.0
        %2907 = vmatprep.subr.mxu0 0.0
        %2908 = vmatpush1.msra.mxu0 0.0
        %2909 = vmatprep.subr.mxu0 0.0
        %2910 = vmatpush1.msra.mxu0 0.0
        %2911 = vmatprep.subr.mxu0 0.0
        %2912 = vmatpush1.msra.mxu0 0.0
        %2913 = vmatprep.subr.mxu0 0.0
        %2914 = vmatpush1.msra.mxu0 0.0
        %2915 = vmatprep.subr.mxu0 0.0
        %2916 = vmatpush1.msra.mxu0 0.0
        %2917 = vmatprep.subr.mxu0 0.0
        %2918 = vmatpush1.msra.mxu0 0.0
        %2919 = vmatprep.subr.mxu0 0.0
        %2920 = vmatpush1.msra.mxu0 0.0
        %2921 = vmatprep.subr.mxu0 0.0
        %2922 = vmatpush1.msra.mxu0 0.0
        %2923 = vmatprep.subr.mxu0 0.0
        %2924 = vmatpush1.msra.mxu0 0.0
        %2925 = vmatprep.subr.mxu0 0.0
        %2926 = vmatpush1.msra.mxu0 0.0
        %2927 = vmatprep.subr.mxu0 0.0
        %2928 = vmatpush1.msra.mxu0 0.0
        %2929 = vmatprep.subr.mxu0 0.0
        %2930 = vmatpush1.msra.mxu0 0.0
        %2931 = vmatprep.subr.mxu0 0.0
        %2932 = vmatpush1.msra.mxu0 0.0
        %2933 = vmatprep.subr.mxu0 0.0
        %2934 = vmatpush1.msra.mxu0 0.0
        %2935 = vmatprep.subr.mxu0 0.0
        %2936 = vmatpush1.msra.mxu0 0.0
        %2937 = vmatprep.subr.mxu0 0.0
        %2938 = vmatpush1.msra.mxu0 0.0
        %2939 = vmatprep.subr.mxu0 0.0
        %2940 = vmatpush1.msra.mxu0 0.0
        %2941 = vmatprep.subr.mxu0 0.0
        %2942 = vmatpush1.msra.mxu0 0.0
        %2943 = vmatprep.subr.mxu0 0.0
        %2944 = vmatpush1.msra.mxu0 0.0
        %2945 = vmatprep.mubr.f32.mxu0 0.0
        %2946 = vmatmul.mubr.f32.gmra.mrb[0].mxu0 %v2879
        %v2947 = vpop.f32.mrb[0].mxu0
        %v2948 = vadd.f32 0.0, %v2947
        %v2949 = vpop.f32.mrb[0].mxu0
        %2950 = vdwg.mxu0
        %v2951 = vld [vmem:[#allocation10] sm:$0xff]
        %v2952 = vld [vmem:[#allocation10 + $0x8] sm:$0xff]
        %v2953 = vld [vmem:[#allocation10 + $0x10] sm:$0xff]
        %v2954 = vld [vmem:[#allocation10 + $0x18] sm:$0xff]
        %v2955 = vld [vmem:[%s11 + $0x1] sm:$0x1]
        %v2956 = vlaneseq
        %v2957 = vshrl.u32 %v2956, 7
        %v2958 = vsub.s32 0, %v2957
        %v2959 = vrot.slane %v2955, %v2958
        %v2961 = vsel %vm548, %v2416, 0
        %v2964 = vsel %vm548, %v2492, 0
        %v2967 = vsel %vm548, %v2568, 0
        %v2970 = vsel %vm548, %v2644, 0
        %v2973 = vsel %vm548, %v2720, 0
        %v2976 = vsel %vm548, %v2796, 0
        %v2979 = vsel %vm548, %v2872, 0
        %v2982 = vsel %vm548, %v2948, 0
        %2984 = vmatprep.subr.mxu0 0.0
        %2985 = vmatpush1.msra.mxu0 %v2951
        %2986 = vmatprep.subr.mxu0 0.0
        %2987 = vmatpush1.msra.mxu0 %v2952
        %2988 = vmatprep.subr.mxu0 0.0
        %2989 = vmatpush1.msra.mxu0 %v2953
        %2990 = vmatprep.subr.mxu0 0.0
        %2991 = vmatpush1.msra.mxu0 %v2954
        %2992 = vmatprep.subr.mxu0 0.0
        %2993 = vmatpush1.msra.mxu0 0.0
        %2994 = vmatprep.subr.mxu0 0.0
        %2995 = vmatpush1.msra.mxu0 0.0
        %2996 = vmatprep.subr.mxu0 0.0
        %2997 = vmatpush1.msra.mxu0 0.0
        %2998 = vmatprep.subr.mxu0 0.0
        %2999 = vmatpush1.msra.mxu0 0.0
        %3000 = vmatprep.subr.mxu0 0.0
        %3001 = vmatpush1.msra.mxu0 0.0
        %3002 = vmatprep.subr.mxu0 0.0
        %3003 = vmatpush1.msra.mxu0 0.0
        %3004 = vmatprep.subr.mxu0 0.0
        %3005 = vmatpush1.msra.mxu0 0.0
        %3006 = vmatprep.subr.mxu0 0.0
        %3007 = vmatpush1.msra.mxu0 0.0
        %3008 = vmatprep.subr.mxu0 0.0
        %3009 = vmatpush1.msra.mxu0 0.0
        %3010 = vmatprep.subr.mxu0 0.0
        %3011 = vmatpush1.msra.mxu0 0.0
        %3012 = vmatprep.subr.mxu0 0.0
        %3013 = vmatpush1.msra.mxu0 0.0
        %3014 = vmatprep.subr.mxu0 0.0
        %3015 = vmatpush1.msra.mxu0 0.0
        %3016 = vmatprep.subr.mxu0 0.0
        %3017 = vmatpush1.msra.mxu0 0.0
        %3018 = vmatprep.subr.mxu0 0.0
        %3019 = vmatpush1.msra.mxu0 0.0
        %3020 = vmatprep.subr.mxu0 0.0
        %3021 = vmatpush1.msra.mxu0 0.0
        %3022 = vmatprep.subr.mxu0 0.0
        %3023 = vmatpush1.msra.mxu0 0.0
        %3024 = vmatprep.subr.mxu0 0.0
        %3025 = vmatpush1.msra.mxu0 0.0
        %3026 = vmatprep.subr.mxu0 0.0
        %3027 = vmatpush1.msra.mxu0 0.0
        %3028 = vmatprep.subr.mxu0 0.0
        %3029 = vmatpush1.msra.mxu0 0.0
        %3030 = vmatprep.subr.mxu0 0.0
        %3031 = vmatpush1.msra.mxu0 0.0
        %3032 = vmatprep.subr.mxu0 0.0
        %3033 = vmatpush1.msra.mxu0 0.0
        %3034 = vmatprep.subr.mxu0 0.0
        %3035 = vmatpush1.msra.mxu0 0.0
        %3036 = vmatprep.subr.mxu0 0.0
        %3037 = vmatpush1.msra.mxu0 0.0
        %3038 = vmatprep.subr.mxu0 0.0
        %3039 = vmatpush1.msra.mxu0 0.0
        %3040 = vmatprep.subr.mxu0 0.0
        %3041 = vmatpush1.msra.mxu0 0.0
        %3042 = vmatprep.subr.mxu0 0.0
        %3043 = vmatpush1.msra.mxu0 0.0
        %3044 = vmatprep.subr.mxu0 0.0
        %3045 = vmatpush1.msra.mxu0 0.0
        %3046 = vmatprep.subr.mxu0 0.0
        %3047 = vmatpush1.msra.mxu0 0.0
        %3048 = vmatprep.mubr.f32.mxu0 0.0
        %3049 = vmatmul.mubr.f32.gmra.mrb[0].mxu0 %v2961
        %v3050 = vpop.f32.mrb[0].mxu0
        %v3051 = vadd.f32 %v2959, %v3050
        %v3052 = vpop.f32.mrb[0].mxu0
        %3053 = vmatprep.mubr.f32.mxu0 0.0
        %3054 = vmatmul.mubr.f32.gmra.mrb[0].mxu0 %v2964
        %v3055 = vpop.f32.mrb[0].mxu0
        %v3056 = vadd.f32 %v2959, %v3055
        %v3057 = vpop.f32.mrb[0].mxu0
        %3058 = vmatprep.mubr.f32.mxu0 0.0
        %3059 = vmatmul.mubr.f32.gmra.mrb[0].mxu0 %v2967
        %v3060 = vpop.f32.mrb[0].mxu0
        %v3061 = vadd.f32 %v2959, %v3060
        %v3062 = vpop.f32.mrb[0].mxu0
        %3063 = vmatprep.mubr.f32.mxu0 0.0
        %3064 = vmatmul.mubr.f32.gmra.mrb[0].mxu0 %v2970
        %v3065 = vpop.f32.mrb[0].mxu0
        %v3066 = vadd.f32 %v2959, %v3065
        %v3067 = vpop.f32.mrb[0].mxu0
        %3068 = vmatprep.mubr.f32.mxu0 0.0
        %3069 = vmatmul.mubr.f32.gmra.mrb[0].mxu0 %v2973
        %v3070 = vpop.f32.mrb[0].mxu0
        %v3071 = vadd.f32 %v2959, %v3070
        %v3072 = vpop.f32.mrb[0].mxu0
        %3073 = vmatprep.mubr.f32.mxu0 0.0
        %3074 = vmatmul.mubr.f32.gmra.mrb[0].mxu0 %v2976
        %v3075 = vpop.f32.mrb[0].mxu0
        %v3076 = vadd.f32 %v2959, %v3075
        %v3077 = vpop.f32.mrb[0].mxu0
        %3078 = vmatprep.mubr.f32.mxu0 0.0
        %3079 = vmatmul.mubr.f32.gmra.mrb[0].mxu0 %v2979
        %v3080 = vpop.f32.mrb[0].mxu0
        %v3081 = vadd.f32 %v2959, %v3080
        %v3082 = vpop.f32.mrb[0].mxu0
        %3083 = vmatprep.mubr.f32.mxu0 0.0
        %3084 = vmatmul.mubr.f32.gmra.mrb[0].mxu0 %v2982
        %v3085 = vpop.f32.mrb[0].mxu0
        %v3086 = vadd.f32 %v2959, %v3085
        %v3087 = vpop.f32.mrb[0].mxu0
        %3088 = vdwg.mxu0
        %v3089 = vadd.f32 %v1490, %v3051
        %v3090 = vadd.f32 %v1491, %v3056
        %v3091 = vadd.f32 %v1492, %v3061
        %v3092 = vadd.f32 %v1493, %v3066
        %v3093 = vadd.f32 %v1494, %v3071
        %v3094 = vadd.f32 %v1495, %v3076
        %v3095 = vadd.f32 %v1496, %v3081
        %v3096 = vadd.f32 %v1497, %v3086
        %v3097 = vld [vmem:[%s11 + $0x2] sm:$0x1]
        %v3098 = vld [vmem:[%s11 + $0x3] sm:$0x1]
        %v3099 = vsel %vm548, %v3089, 0.0
        %3100 = vadd.xlane.f32.xlu0 %v3099
        %v3101 = vpop.xlane.xlu0 %3100
        %v3102 = vsel %vm548, %v3090, 0.0
        %3103 = vadd.xlane.f32.xlu0 %v3102
        %v3104 = vpop.xlane.xlu0 %3103
        %v3105 = vsel %vm548, %v3091, 0.0
        %3106 = vadd.xlane.f32.xlu0 %v3105
        %v3107 = vpop.xlane.xlu0 %3106
        %v3108 = vsel %vm548, %v3092, 0.0
        %3109 = vadd.xlane.f32.xlu0 %v3108
        %v3110 = vpop.xlane.xlu0 %3109
        %v3111 = vsel %vm548, %v3093, 0.0
        %3112 = vadd.xlane.f32.xlu0 %v3111
        %v3113 = vpop.xlane.xlu0 %3112
        %v3114 = vsel %vm548, %v3094, 0.0
        %3115 = vadd.xlane.f32.xlu0 %v3114
        %v3116 = vpop.xlane.xlu0 %3115
        %v3117 = vsel %vm548, %v3095, 0.0
        %3118 = vadd.xlane.f32.xlu0 %v3117
        %v3119 = vpop.xlane.xlu0 %3118
        %v3120 = vsel %vm548, %v3096, 0.0
        %3121 = vadd.xlane.f32.xlu0 %v3120
        %v3122 = vpop.xlane.xlu0 %3121
        %v3123 = vrcp.pop 32.0
        %v3124 = vmul.f32 %v3101, %v3123
        %v3125 = vmul.f32 %v3104, %v3123
        %v3126 = vmul.f32 %v3107, %v3123
        %v3127 = vmul.f32 %v3110, %v3123
        %v3128 = vmul.f32 %v3113, %v3123
        %v3129 = vmul.f32 %v3116, %v3123
        %v3130 = vmul.f32 %v3119, %v3123
        %v3131 = vmul.f32 %v3122, %v3123
        %v3132 = vsub.f32 %v3089, %v3124
        %v3133 = vsub.f32 %v3090, %v3125
        %v3134 = vsub.f32 %v3091, %v3126
        %v3135 = vsub.f32 %v3092, %v3127
        %v3136 = vsub.f32 %v3093, %v3128
        %v3137 = vsub.f32 %v3094, %v3129
        %v3138 = vsub.f32 %v3095, %v3130
        %v3139 = vsub.f32 %v3096, %v3131
        %v3140 = vmul.f32 %v3132, %v3132
        %v3141 = vmul.f32 %v3133, %v3133
        %v3142 = vmul.f32 %v3134, %v3134
        %v3143 = vmul.f32 %v3135, %v3135
        %v3144 = vmul.f32 %v3136, %v3136
        %v3145 = vmul.f32 %v3137, %v3137
        %v3146 = vmul.f32 %v3138, %v3138
        %v3147 = vmul.f32 %v3139, %v3139
        %v3148 = vsel %vm548, %v3140, 0.0
        %3149 = vadd.xlane.f32.xlu0 %v3148
        %v3150 = vpop.xlane.xlu0 %3149
        %v3151 = vsel %vm548, %v3141, 0.0
        %3152 = vadd.xlane.f32.xlu0 %v3151
        %v3153 = vpop.xlane.xlu0 %3152
        %v3154 = vsel %vm548, %v3142, 0.0
        %3155 = vadd.xlane.f32.xlu0 %v3154
        %v3156 = vpop.xlane.xlu0 %3155
        %v3157 = vsel %vm548, %v3143, 0.0
        %3158 = vadd.xlane.f32.xlu0 %v3157
        %v3159 = vpop.xlane.xlu0 %3158
        %v3160 = vsel %vm548, %v3144, 0.0
        %3161 = vadd.xlane.f32.xlu0 %v3160
        %v3162 = vpop.xlane.xlu0 %3161
        %v3163 = vsel %vm548, %v3145, 0.0
        %3164 = vadd.xlane.f32.xlu0 %v3163
        %v3165 = vpop.xlane.xlu0 %3164
        %v3166 = vsel %vm548, %v3146, 0.0
        %3167 = vadd.xlane.f32.xlu0 %v3166
        %v3168 = vpop.xlane.xlu0 %3167
        %v3169 = vsel %vm548, %v3147, 0.0
        %3170 = vadd.xlane.f32.xlu0 %v3169
        %v3171 = vpop.xlane.xlu0 %3170
        %v3172 = vmul.f32 %v3150, 0.032258064
        %v3173 = vmul.f32 %v3153, 0.032258064
        %v3174 = vmul.f32 %v3156, 0.032258064
        %v3175 = vmul.f32 %v3159, 0.032258064
        %v3176 = vmul.f32 %v3162, 0.032258064
        %v3177 = vmul.f32 %v3165, 0.032258064
        %v3178 = vmul.f32 %v3168, 0.032258064
        %v3179 = vmul.f32 %v3171, 0.032258064
        %v3180 = vrsqrt.pop %v3172
        %v3181 = vmul.f32 %v3172, %v3180
        %vm3182 = vcmp.eq.f32.partialorder %v3172, inf
        %v3183 = vsel %vm3182, %v3172, %v3181
        %vm3184 = vcmp.eq.f32.partialorder %v3172, 0.0
        %v3185 = vand.u32 %v3172, 2147483648
        %v3186 = vsel %vm3184, %v3185, %v3183
        %v3187 = vrsqrt.pop %v3173
        %v3188 = vmul.f32 %v3173, %v3187
        %vm3189 = vcmp.eq.f32.partialorder %v3173, inf
        %v3190 = vsel %vm3189, %v3173, %v3188
        %vm3191 = vcmp.eq.f32.partialorder %v3173, 0.0
        %v3192 = vand.u32 %v3173, 2147483648
        %v3193 = vsel %vm3191, %v3192, %v3190
        %v3194 = vrsqrt.pop %v3174
        %v3195 = vmul.f32 %v3174, %v3194
        %vm3196 = vcmp.eq.f32.partialorder %v3174, inf
        %v3197 = vsel %vm3196, %v3174, %v3195
        %vm3198 = vcmp.eq.f32.partialorder %v3174, 0.0
        %v3199 = vand.u32 %v3174, 2147483648
        %v3200 = vsel %vm3198, %v3199, %v3197
        %v3201 = vrsqrt.pop %v3175
        %v3202 = vmul.f32 %v3175, %v3201
        %vm3203 = vcmp.eq.f32.partialorder %v3175, inf
        %v3204 = vsel %vm3203, %v3175, %v3202
        %vm3205 = vcmp.eq.f32.partialorder %v3175, 0.0
        %v3206 = vand.u32 %v3175, 2147483648
        %v3207 = vsel %vm3205, %v3206, %v3204
        %v3208 = vrsqrt.pop %v3176
        %v3209 = vmul.f32 %v3176, %v3208
        %vm3210 = vcmp.eq.f32.partialorder %v3176, inf
        %v3211 = vsel %vm3210, %v3176, %v3209
        %vm3212 = vcmp.eq.f32.partialorder %v3176, 0.0
        %v3213 = vand.u32 %v3176, 2147483648
        %v3214 = vsel %vm3212, %v3213, %v3211
        %v3215 = vrsqrt.pop %v3177
        %v3216 = vmul.f32 %v3177, %v3215
        %vm3217 = vcmp.eq.f32.partialorder %v3177, inf
        %v3218 = vsel %vm3217, %v3177, %v3216
        %vm3219 = vcmp.eq.f32.partialorder %v3177, 0.0
        %v3220 = vand.u32 %v3177, 2147483648
        %v3221 = vsel %vm3219, %v3220, %v3218
        %v3222 = vrsqrt.pop %v3178
        %v3223 = vmul.f32 %v3178, %v3222
        %vm3224 = vcmp.eq.f32.partialorder %v3178, inf
        %v3225 = vsel %vm3224, %v3178, %v3223
        %vm3226 = vcmp.eq.f32.partialorder %v3178, 0.0
        %v3227 = vand.u32 %v3178, 2147483648
        %v3228 = vsel %vm3226, %v3227, %v3225
        %v3229 = vrsqrt.pop %v3179
        %v3230 = vmul.f32 %v3179, %v3229
        %vm3231 = vcmp.eq.f32.partialorder %v3179, inf
        %v3232 = vsel %vm3231, %v3179, %v3230
        %vm3233 = vcmp.eq.f32.partialorder %v3179, 0.0
        %v3234 = vand.u32 %v3179, 2147483648
        %v3235 = vsel %vm3233, %v3234, %v3232
        %v3236 = vadd.f32 %v3186, 1e-06
        %v3237 = vadd.f32 %v3193, 1e-06
        %v3238 = vadd.f32 %v3200, 1e-06
        %v3239 = vadd.f32 %v3207, 1e-06
        %v3240 = vadd.f32 %v3214, 1e-06
        %v3241 = vadd.f32 %v3221, 1e-06
        %v3242 = vadd.f32 %v3228, 1e-06
        %v3243 = vadd.f32 %v3235, 1e-06
        %v3244 = vrcp.pop %v3236
        %v3245 = vrcp.pop %v3237
        %v3246 = vrcp.pop %v3238
        %v3247 = vrcp.pop %v3239
        %v3248 = vrcp.pop %v3240
        %v3249 = vrcp.pop %v3241
        %v3250 = vrcp.pop %v3242
        %v3251 = vrcp.pop %v3243
        %v3252 = vlaneseq
        %v3253 = vshrl.u32 %v3252, 7
        %v3254 = vsub.s32 0, %v3253
        %v3255 = vrot.slane %v3097, %v3254
        %v3256 = vmul.f32 %v3255, %v3132
        %v3257 = vmul.f32 %v3255, %v3133
        %v3258 = vmul.f32 %v3255, %v3134
        %v3259 = vmul.f32 %v3255, %v3135
        %v3260 = vmul.f32 %v3255, %v3136
        %v3261 = vmul.f32 %v3255, %v3137
        %v3262 = vmul.f32 %v3255, %v3138
        %v3263 = vmul.f32 %v3255, %v3139
        %v3264 = vmul.f32 %v3256, %v3244
        %v3265 = vmul.f32 %v3257, %v3245
        %v3266 = vmul.f32 %v3258, %v3246
        %v3267 = vmul.f32 %v3259, %v3247
        %v3268 = vmul.f32 %v3260, %v3248
        %v3269 = vmul.f32 %v3261, %v3249
        %v3270 = vmul.f32 %v3262, %v3250
        %v3271 = vmul.f32 %v3263, %v3251
        %v3272 = vlaneseq
        %v3273 = vshrl.u32 %v3272, 7
        %v3274 = vsub.s32 0, %v3273
        %v3275 = vrot.slane %v3098, %v3274
        %v3276 = vadd.f32 %v3264, %v3275
        %v3277 = vadd.f32 %v3265, %v3275
        %v3278 = vadd.f32 %v3266, %v3275
        %v3279 = vadd.f32 %v3267, %v3275
        %v3280 = vadd.f32 %v3268, %v3275
        %v3281 = vadd.f32 %v3269, %v3275
        %v3282 = vadd.f32 %v3270, %v3275
        %v3283 = vadd.f32 %v3271, %v3275
        %v3284 = vld [vmem:[#allocation12] sm:$0xff]
        %v3285 = vld [vmem:[#allocation12 + $0x8] sm:$0xff]
        %v3286 = vld [vmem:[#allocation12 + $0x10] sm:$0xff]
        %v3287 = vld [vmem:[#allocation12 + $0x18] sm:$0xff]
        %v3288 = vld [vmem:[%s10 + $0x1] sm:$0x1]
        %v3289 = vlaneseq
        %v3290 = vshrl.u32 %v3289, 7
        %v3291 = vsub.s32 0, %v3290
        %v3292 = vrot.slane %v3288, %v3291
        %v3294 = vsel %vm548, %v3276, 0
        %v3297 = vsel %vm548, %v3277, 0
        %v3300 = vsel %vm548, %v3278, 0
        %v3303 = vsel %vm548, %v3279, 0
        %v3306 = vsel %vm548, %v3280, 0
        %v3309 = vsel %vm548, %v3281, 0
        %v3312 = vsel %vm548, %v3282, 0
        %v3315 = vsel %vm548, %v3283, 0
        %3317 = vmatprep.subr.mxu0 0.0
        %3318 = vmatpush1.msra.mxu0 %v3284
        %3319 = vmatprep.subr.mxu0 0.0
        %3320 = vmatpush1.msra.mxu0 %v3285
        %3321 = vmatprep.subr.mxu0 0.0
        %3322 = vmatpush1.msra.mxu0 %v3286
        %3323 = vmatprep.subr.mxu0 0.0
        %3324 = vmatpush1.msra.mxu0 %v3287
        %3325 = vmatprep.subr.mxu0 0.0
        %3326 = vmatpush1.msra.mxu0 0.0
        %3327 = vmatprep.subr.mxu0 0.0
        %3328 = vmatpush1.msra.mxu0 0.0
        %3329 = vmatprep.subr.mxu0 0.0
        %3330 = vmatpush1.msra.mxu0 0.0
        %3331 = vmatprep.subr.mxu0 0.0
        %3332 = vmatpush1.msra.mxu0 0.0
        %3333 = vmatprep.subr.mxu0 0.0
        %3334 = vmatpush1.msra.mxu0 0.0
        %3335 = vmatprep.subr.mxu0 0.0
        %3336 = vmatpush1.msra.mxu0 0.0
        %3337 = vmatprep.subr.mxu0 0.0
        %3338 = vmatpush1.msra.mxu0 0.0
        %3339 = vmatprep.subr.mxu0 0.0
        %3340 = vmatpush1.msra.mxu0 0.0
        %3341 = vmatprep.subr.mxu0 0.0
        %3342 = vmatpush1.msra.mxu0 0.0
        %3343 = vmatprep.subr.mxu0 0.0
        %3344 = vmatpush1.msra.mxu0 0.0
        %3345 = vmatprep.subr.mxu0 0.0
        %3346 = vmatpush1.msra.mxu0 0.0
        %3347 = vmatprep.subr.mxu0 0.0
        %3348 = vmatpush1.msra.mxu0 0.0
        %3349 = vmatprep.subr.mxu0 0.0
        %3350 = vmatpush1.msra.mxu0 0.0
        %3351 = vmatprep.subr.mxu0 0.0
        %3352 = vmatpush1.msra.mxu0 0.0
        %3353 = vmatprep.subr.mxu0 0.0
        %3354 = vmatpush1.msra.mxu0 0.0
        %3355 = vmatprep.subr.mxu0 0.0
        %3356 = vmatpush1.msra.mxu0 0.0
        %3357 = vmatprep.subr.mxu0 0.0
        %3358 = vmatpush1.msra.mxu0 0.0
        %3359 = vmatprep.subr.mxu0 0.0
        %3360 = vmatpush1.msra.mxu0 0.0
        %3361 = vmatprep.subr.mxu0 0.0
        %3362 = vmatpush1.msra.mxu0 0.0
        %3363 = vmatprep.subr.mxu0 0.0
        %3364 = vmatpush1.msra.mxu0 0.0
        %3365 = vmatprep.subr.mxu0 0.0
        %3366 = vmatpush1.msra.mxu0 0.0
        %3367 = vmatprep.subr.mxu0 0.0
        %3368 = vmatpush1.msra.mxu0 0.0
        %3369 = vmatprep.subr.mxu0 0.0
        %3370 = vmatpush1.msra.mxu0 0.0
        %3371 = vmatprep.subr.mxu0 0.0
        %3372 = vmatpush1.msra.mxu0 0.0
        %3373 = vmatprep.subr.mxu0 0.0
        %3374 = vmatpush1.msra.mxu0 0.0
        %3375 = vmatprep.subr.mxu0 0.0
        %3376 = vmatpush1.msra.mxu0 0.0
        %3377 = vmatprep.subr.mxu0 0.0
        %3378 = vmatpush1.msra.mxu0 0.0
        %3379 = vmatprep.subr.mxu0 0.0
        %3380 = vmatpush1.msra.mxu0 0.0
        %3381 = vmatprep.mubr.f32.mxu0 0.0
        %3382 = vmatmul.mubr.f32.gmra.mrb[0].mxu0 %v3294
        %v3383 = vpop.f32.mrb[0].mxu0
        %v3384 = vadd.f32 %v3292, %v3383
        %v3385 = vpop.f32.mrb[0].mxu0
        %3386 = vmatprep.mubr.f32.mxu0 0.0
        %3387 = vmatmul.mubr.f32.gmra.mrb[0].mxu0 %v3297
        %v3388 = vpop.f32.mrb[0].mxu0
        %v3389 = vadd.f32 %v3292, %v3388
        %v3390 = vpop.f32.mrb[0].mxu0
        %3391 = vmatprep.mubr.f32.mxu0 0.0
        %3392 = vmatmul.mubr.f32.gmra.mrb[0].mxu0 %v3300
        %v3393 = vpop.f32.mrb[0].mxu0
        %v3394 = vadd.f32 %v3292, %v3393
        %v3395 = vpop.f32.mrb[0].mxu0
        %3396 = vmatprep.mubr.f32.mxu0 0.0
        %3397 = vmatmul.mubr.f32.gmra.mrb[0].mxu0 %v3303
        %v3398 = vpop.f32.mrb[0].mxu0
        %v3399 = vadd.f32 %v3292, %v3398
        %v3400 = vpop.f32.mrb[0].mxu0
        %3401 = vmatprep.mubr.f32.mxu0 0.0
        %3402 = vmatmul.mubr.f32.gmra.mrb[0].mxu0 %v3306
        %v3403 = vpop.f32.mrb[0].mxu0
        %v3404 = vadd.f32 %v3292, %v3403
        %v3405 = vpop.f32.mrb[0].mxu0
        %3406 = vmatprep.mubr.f32.mxu0 0.0
        %3407 = vmatmul.mubr.f32.gmra.mrb[0].mxu0 %v3309
        %v3408 = vpop.f32.mrb[0].mxu0
        %v3409 = vadd.f32 %v3292, %v3408
        %v3410 = vpop.f32.mrb[0].mxu0
        %3411 = vmatprep.mubr.f32.mxu0 0.0
        %3412 = vmatmul.mubr.f32.gmra.mrb[0].mxu0 %v3312
        %v3413 = vpop.f32.mrb[0].mxu0
        %v3414 = vadd.f32 %v3292, %v3413
        %v3415 = vpop.f32.mrb[0].mxu0
        %3416 = vmatprep.mubr.f32.mxu0 0.0
        %3417 = vmatmul.mubr.f32.gmra.mrb[0].mxu0 %v3315
        %v3418 = vpop.f32.mrb[0].mxu0
        %v3419 = vadd.f32 %v3292, %v3418
        %v3420 = vpop.f32.mrb[0].mxu0
        %3421 = vdwg.mxu0
        %v3422 = vmax.f32 %v3384, 0.0
        %v3423 = vmax.f32 %v3389, 0.0
        %v3424 = vmax.f32 %v3394, 0.0
        %v3425 = vmax.f32 %v3399, 0.0
        %v3426 = vmax.f32 %v3404, 0.0
        %v3427 = vmax.f32 %v3409, 0.0
        %v3428 = vmax.f32 %v3414, 0.0
        %v3429 = vmax.f32 %v3419, 0.0
        %v3430 = vld [vmem:[%s8] sm:$0xff]
        %v3431 = vld [vmem:[%s8 + $0x8] sm:$0xff]
        %v3432 = vld [vmem:[%s8 + $0x10] sm:$0xff]
        %v3433 = vld [vmem:[%s8 + $0x18] sm:$0xff]
        %v3434 = vld [vmem:[%s8 + $0x20] sm:$0xff]
        %v3435 = vld [vmem:[%s8 + $0x28] sm:$0xff]
        %v3436 = vld [vmem:[%s8 + $0x30] sm:$0xff]
        %v3437 = vld [vmem:[%s8 + $0x38] sm:$0xff]
        %v3438 = vld [vmem:[%s11 + $0x4] sm:$0x1]
        %v3439 = vlaneseq
        %v3440 = vshrl.u32 %v3439, 7
        %v3441 = vsub.s32 0, %v3440
        %v3442 = vrot.slane %v3438, %v3441
        %v3444 = vsel %vm1360, %v3422, 0
        %v3447 = vsel %vm1360, %v3423, 0
        %v3450 = vsel %vm1360, %v3424, 0
        %v3453 = vsel %vm1360, %v3425, 0
        %v3456 = vsel %vm1360, %v3426, 0
        %v3459 = vsel %vm1360, %v3427, 0
        %v3462 = vsel %vm1360, %v3428, 0
        %v3465 = vsel %vm1360, %v3429, 0
        %3467 = vmatprep.subr.mxu0 0.0
        %3468 = vmatpush1.msra.mxu0 %v3430
        %3469 = vmatprep.subr.mxu0 0.0
        %3470 = vmatpush1.msra.mxu0 %v3431
        %3471 = vmatprep.subr.mxu0 0.0
        %3472 = vmatpush1.msra.mxu0 %v3432
        %3473 = vmatprep.subr.mxu0 0.0
        %3474 = vmatpush1.msra.mxu0 %v3433
        %3475 = vmatprep.subr.mxu0 0.0
        %3476 = vmatpush1.msra.mxu0 %v3434
        %3477 = vmatprep.subr.mxu0 0.0
        %3478 = vmatpush1.msra.mxu0 %v3435
        %3479 = vmatprep.subr.mxu0 0.0
        %3480 = vmatpush1.msra.mxu0 %v3436
        %3481 = vmatprep.subr.mxu0 0.0
        %3482 = vmatpush1.msra.mxu0 %v3437
        %3483 = vmatprep.subr.mxu0 0.0
        %3484 = vmatpush1.msra.mxu0 0.0
        %3485 = vmatprep.subr.mxu0 0.0
        %3486 = vmatpush1.msra.mxu0 0.0
        %3487 = vmatprep.subr.mxu0 0.0
        %3488 = vmatpush1.msra.mxu0 0.0
        %3489 = vmatprep.subr.mxu0 0.0
        %3490 = vmatpush1.msra.mxu0 0.0
        %3491 = vmatprep.subr.mxu0 0.0
        %3492 = vmatpush1.msra.mxu0 0.0
        %3493 = vmatprep.subr.mxu0 0.0
        %3494 = vmatpush1.msra.mxu0 0.0
        %3495 = vmatprep.subr.mxu0 0.0
        %3496 = vmatpush1.msra.mxu0 0.0
        %3497 = vmatprep.subr.mxu0 0.0
        %3498 = vmatpush1.msra.mxu0 0.0
        %3499 = vmatprep.subr.mxu0 0.0
        %3500 = vmatpush1.msra.mxu0 0.0
        %3501 = vmatprep.subr.mxu0 0.0
        %3502 = vmatpush1.msra.mxu0 0.0
        %3503 = vmatprep.subr.mxu0 0.0
        %3504 = vmatpush1.msra.mxu0 0.0
        %3505 = vmatprep.subr.mxu0 0.0
        %3506 = vmatpush1.msra.mxu0 0.0
        %3507 = vmatprep.subr.mxu0 0.0
        %3508 = vmatpush1.msra.mxu0 0.0
        %3509 = vmatprep.subr.mxu0 0.0
        %3510 = vmatpush1.msra.mxu0 0.0
        %3511 = vmatprep.subr.mxu0 0.0
        %3512 = vmatpush1.msra.mxu0 0.0
        %3513 = vmatprep.subr.mxu0 0.0
        %3514 = vmatpush1.msra.mxu0 0.0
        %3515 = vmatprep.subr.mxu0 0.0
        %3516 = vmatpush1.msra.mxu0 0.0
        %3517 = vmatprep.subr.mxu0 0.0
        %3518 = vmatpush1.msra.mxu0 0.0
        %3519 = vmatprep.subr.mxu0 0.0
        %3520 = vmatpush1.msra.mxu0 0.0
        %3521 = vmatprep.subr.mxu0 0.0
        %3522 = vmatpush1.msra.mxu0 0.0
        %3523 = vmatprep.subr.mxu0 0.0
        %3524 = vmatpush1.msra.mxu0 0.0
        %3525 = vmatprep.subr.mxu0 0.0
        %3526 = vmatpush1.msra.mxu0 0.0
        %3527 = vmatprep.subr.mxu0 0.0
        %3528 = vmatpush1.msra.mxu0 0.0
        %3529 = vmatprep.subr.mxu0 0.0
        %3530 = vmatpush1.msra.mxu0 0.0
        %3531 = vmatprep.mubr.f32.mxu0 0.0
        %3532 = vmatmul.mubr.f32.gmra.mrb[0].mxu0 %v3444
        %v3533 = vpop.f32.mrb[0].mxu0
        %v3534 = vadd.f32 %v3442, %v3533
        %v3535 = vpop.f32.mrb[0].mxu0
        %3536 = vmatprep.mubr.f32.mxu0 0.0
        %3537 = vmatmul.mubr.f32.gmra.mrb[0].mxu0 %v3447
        %v3538 = vpop.f32.mrb[0].mxu0
        %v3539 = vadd.f32 %v3442, %v3538
        %v3540 = vpop.f32.mrb[0].mxu0
        %3541 = vmatprep.mubr.f32.mxu0 0.0
        %3542 = vmatmul.mubr.f32.gmra.mrb[0].mxu0 %v3450
        %v3543 = vpop.f32.mrb[0].mxu0
        %v3544 = vadd.f32 %v3442, %v3543
        %v3545 = vpop.f32.mrb[0].mxu0
        %3546 = vmatprep.mubr.f32.mxu0 0.0
        %3547 = vmatmul.mubr.f32.gmra.mrb[0].mxu0 %v3453
        %v3548 = vpop.f32.mrb[0].mxu0
        %v3549 = vadd.f32 %v3442, %v3548
        %v3550 = vpop.f32.mrb[0].mxu0
        %3551 = vmatprep.mubr.f32.mxu0 0.0
        %3552 = vmatmul.mubr.f32.gmra.mrb[0].mxu0 %v3456
        %v3553 = vpop.f32.mrb[0].mxu0
        %v3554 = vadd.f32 %v3442, %v3553
        %v3555 = vpop.f32.mrb[0].mxu0
        %3556 = vmatprep.mubr.f32.mxu0 0.0
        %3557 = vmatmul.mubr.f32.gmra.mrb[0].mxu0 %v3459
        %v3558 = vpop.f32.mrb[0].mxu0
        %v3559 = vadd.f32 %v3442, %v3558
        %v3560 = vpop.f32.mrb[0].mxu0
        %3561 = vmatprep.mubr.f32.mxu0 0.0
        %3562 = vmatmul.mubr.f32.gmra.mrb[0].mxu0 %v3462
        %v3563 = vpop.f32.mrb[0].mxu0
        %v3564 = vadd.f32 %v3442, %v3563
        %v3565 = vpop.f32.mrb[0].mxu0
        %3566 = vmatprep.mubr.f32.mxu0 0.0
        %3567 = vmatmul.mubr.f32.gmra.mrb[0].mxu0 %v3465
        %v3568 = vpop.f32.mrb[0].mxu0
        %v3569 = vadd.f32 %v3442, %v3568
        %v3570 = vpop.f32.mrb[0].mxu0
        %3571 = vdwg.mxu0
        %v3572 = vmax.f32 %v3534, 0.0
        %v3573 = vmax.f32 %v3539, 0.0
        %v3574 = vmax.f32 %v3544, 0.0
        %v3575 = vmax.f32 %v3549, 0.0
        %v3576 = vmax.f32 %v3554, 0.0
        %v3577 = vmax.f32 %v3559, 0.0
        %v3578 = vmax.f32 %v3564, 0.0
        %v3579 = vmax.f32 %v3569, 0.0
        %v3580 = vadd.f32 %v3276, %v3572
        %v3581 = vadd.f32 %v3277, %v3573
        %v3582 = vadd.f32 %v3278, %v3574
        %v3583 = vadd.f32 %v3279, %v3575
        %v3584 = vadd.f32 %v3280, %v3576
        %v3585 = vadd.f32 %v3281, %v3577
        %v3586 = vadd.f32 %v3282, %v3578
        %v3587 = vadd.f32 %v3283, %v3579
        %v3588 = vld [vmem:[%s11 + $0x5] sm:$0x1]
        %v3589 = vld [vmem:[%s11 + $0x6] sm:$0x1]
        %v3590 = vsel %vm548, %v3580, 0.0
        %3591 = vadd.xlane.f32.xlu0 %v3590
        %v3592 = vpop.xlane.xlu0 %3591
        %v3593 = vsel %vm548, %v3581, 0.0
        %3594 = vadd.xlane.f32.xlu0 %v3593
        %v3595 = vpop.xlane.xlu0 %3594
        %v3596 = vsel %vm548, %v3582, 0.0
        %3597 = vadd.xlane.f32.xlu0 %v3596
        %v3598 = vpop.xlane.xlu0 %3597
        %v3599 = vsel %vm548, %v3583, 0.0
        %3600 = vadd.xlane.f32.xlu0 %v3599
        %v3601 = vpop.xlane.xlu0 %3600
        %v3602 = vsel %vm548, %v3584, 0.0
        %3603 = vadd.xlane.f32.xlu0 %v3602
        %v3604 = vpop.xlane.xlu0 %3603
        %v3605 = vsel %vm548, %v3585, 0.0
        %3606 = vadd.xlane.f32.xlu0 %v3605
        %v3607 = vpop.xlane.xlu0 %3606
        %v3608 = vsel %vm548, %v3586, 0.0
        %3609 = vadd.xlane.f32.xlu0 %v3608
        %v3610 = vpop.xlane.xlu0 %3609
        %v3611 = vsel %vm548, %v3587, 0.0
        %3612 = vadd.xlane.f32.xlu0 %v3611
        %v3613 = vpop.xlane.xlu0 %3612
        %v3614 = vmul.f32 %v3592, %v3123
        %v3615 = vmul.f32 %v3595, %v3123
        %v3616 = vmul.f32 %v3598, %v3123
        %v3617 = vmul.f32 %v3601, %v3123
        %v3618 = vmul.f32 %v3604, %v3123
        %v3619 = vmul.f32 %v3607, %v3123
        %v3620 = vmul.f32 %v3610, %v3123
        %v3621 = vmul.f32 %v3613, %v3123
        %v3622 = vsub.f32 %v3580, %v3614
        %v3623 = vsub.f32 %v3581, %v3615
        %v3624 = vsub.f32 %v3582, %v3616
        %v3625 = vsub.f32 %v3583, %v3617
        %v3626 = vsub.f32 %v3584, %v3618
        %v3627 = vsub.f32 %v3585, %v3619
        %v3628 = vsub.f32 %v3586, %v3620
        %v3629 = vsub.f32 %v3587, %v3621
        %v3630 = vmul.f32 %v3622, %v3622
        %v3631 = vmul.f32 %v3623, %v3623
        %v3632 = vmul.f32 %v3624, %v3624
        %v3633 = vmul.f32 %v3625, %v3625
        %v3634 = vmul.f32 %v3626, %v3626
        %v3635 = vmul.f32 %v3627, %v3627
        %v3636 = vmul.f32 %v3628, %v3628
        %v3637 = vmul.f32 %v3629, %v3629
        %v3638 = vsel %vm548, %v3630, 0.0
        %3639 = vadd.xlane.f32.xlu0 %v3638
        %v3640 = vpop.xlane.xlu0 %3639
        %v3641 = vsel %vm548, %v3631, 0.0
        %3642 = vadd.xlane.f32.xlu0 %v3641
        %v3643 = vpop.xlane.xlu0 %3642
        %v3644 = vsel %vm548, %v3632, 0.0
        %3645 = vadd.xlane.f32.xlu0 %v3644
        %v3646 = vpop.xlane.xlu0 %3645
        %v3647 = vsel %vm548, %v3633, 0.0
        %3648 = vadd.xlane.f32.xlu0 %v3647
        %v3649 = vpop.xlane.xlu0 %3648
        %v3650 = vsel %vm548, %v3634, 0.0
        %3651 = vadd.xlane.f32.xlu0 %v3650
        %v3652 = vpop.xlane.xlu0 %3651
        %v3653 = vsel %vm548, %v3635, 0.0
        %3654 = vadd.xlane.f32.xlu0 %v3653
        %v3655 = vpop.xlane.xlu0 %3654
        %v3656 = vsel %vm548, %v3636, 0.0
        %3657 = vadd.xlane.f32.xlu0 %v3656
        %v3658 = vpop.xlane.xlu0 %3657
        %v3659 = vsel %vm548, %v3637, 0.0
        %3660 = vadd.xlane.f32.xlu0 %v3659
        %v3661 = vpop.xlane.xlu0 %3660
        %v3662 = vmul.f32 %v3640, 0.032258064
        %v3663 = vmul.f32 %v3643, 0.032258064
        %v3664 = vmul.f32 %v3646, 0.032258064
        %v3665 = vmul.f32 %v3649, 0.032258064
        %v3666 = vmul.f32 %v3652, 0.032258064
        %v3667 = vmul.f32 %v3655, 0.032258064
        %v3668 = vmul.f32 %v3658, 0.032258064
        %v3669 = vmul.f32 %v3661, 0.032258064
        %v3670 = vrsqrt.pop %v3662
        %v3671 = vmul.f32 %v3662, %v3670
        %vm3672 = vcmp.eq.f32.partialorder %v3662, inf
        %v3673 = vsel %vm3672, %v3662, %v3671
        %vm3674 = vcmp.eq.f32.partialorder %v3662, 0.0
        %v3675 = vand.u32 %v3662, 2147483648
        %v3676 = vsel %vm3674, %v3675, %v3673
        %v3677 = vrsqrt.pop %v3663
        %v3678 = vmul.f32 %v3663, %v3677
        %vm3679 = vcmp.eq.f32.partialorder %v3663, inf
        %v3680 = vsel %vm3679, %v3663, %v3678
        %vm3681 = vcmp.eq.f32.partialorder %v3663, 0.0
        %v3682 = vand.u32 %v3663, 2147483648
        %v3683 = vsel %vm3681, %v3682, %v3680
        %v3684 = vrsqrt.pop %v3664
        %v3685 = vmul.f32 %v3664, %v3684
        %vm3686 = vcmp.eq.f32.partialorder %v3664, inf
        %v3687 = vsel %vm3686, %v3664, %v3685
        %vm3688 = vcmp.eq.f32.partialorder %v3664, 0.0
        %v3689 = vand.u32 %v3664, 2147483648
        %v3690 = vsel %vm3688, %v3689, %v3687
        %v3691 = vrsqrt.pop %v3665
        %v3692 = vmul.f32 %v3665, %v3691
        %vm3693 = vcmp.eq.f32.partialorder %v3665, inf
        %v3694 = vsel %vm3693, %v3665, %v3692
        %vm3695 = vcmp.eq.f32.partialorder %v3665, 0.0
        %v3696 = vand.u32 %v3665, 2147483648
        %v3697 = vsel %vm3695, %v3696, %v3694
        %v3698 = vrsqrt.pop %v3666
        %v3699 = vmul.f32 %v3666, %v3698
        %vm3700 = vcmp.eq.f32.partialorder %v3666, inf
        %v3701 = vsel %vm3700, %v3666, %v3699
        %vm3702 = vcmp.eq.f32.partialorder %v3666, 0.0
        %v3703 = vand.u32 %v3666, 2147483648
        %v3704 = vsel %vm3702, %v3703, %v3701
        %v3705 = vrsqrt.pop %v3667
        %v3706 = vmul.f32 %v3667, %v3705
        %vm3707 = vcmp.eq.f32.partialorder %v3667, inf
        %v3708 = vsel %vm3707, %v3667, %v3706
        %vm3709 = vcmp.eq.f32.partialorder %v3667, 0.0
        %v3710 = vand.u32 %v3667, 2147483648
        %v3711 = vsel %vm3709, %v3710, %v3708
        %v3712 = vrsqrt.pop %v3668
        %v3713 = vmul.f32 %v3668, %v3712
        %vm3714 = vcmp.eq.f32.partialorder %v3668, inf
        %v3715 = vsel %vm3714, %v3668, %v3713
        %vm3716 = vcmp.eq.f32.partialorder %v3668, 0.0
        %v3717 = vand.u32 %v3668, 2147483648
        %v3718 = vsel %vm3716, %v3717, %v3715
        %v3719 = vrsqrt.pop %v3669
        %v3720 = vmul.f32 %v3669, %v3719
        %vm3721 = vcmp.eq.f32.partialorder %v3669, inf
        %v3722 = vsel %vm3721, %v3669, %v3720
        %vm3723 = vcmp.eq.f32.partialorder %v3669, 0.0
        %v3724 = vand.u32 %v3669, 2147483648
        %v3725 = vsel %vm3723, %v3724, %v3722
        %v3726 = vadd.f32 %v3676, 1e-06
        %v3727 = vadd.f32 %v3683, 1e-06
        %v3728 = vadd.f32 %v3690, 1e-06
        %v3729 = vadd.f32 %v3697, 1e-06
        %v3730 = vadd.f32 %v3704, 1e-06
        %v3731 = vadd.f32 %v3711, 1e-06
        %v3732 = vadd.f32 %v3718, 1e-06
        %v3733 = vadd.f32 %v3725, 1e-06
        %v3734 = vrcp.pop %v3726
        %v3735 = vrcp.pop %v3727
        %v3736 = vrcp.pop %v3728
        %v3737 = vrcp.pop %v3729
        %v3738 = vrcp.pop %v3730
        %v3739 = vrcp.pop %v3731
        %v3740 = vrcp.pop %v3732
        %v3741 = vrcp.pop %v3733
        %v3742 = vlaneseq
        %v3743 = vshrl.u32 %v3742, 7
        %v3744 = vsub.s32 0, %v3743
        %v3745 = vrot.slane %v3588, %v3744
        %v3746 = vmul.f32 %v3745, %v3622
        %v3747 = vmul.f32 %v3745, %v3623
        %v3748 = vmul.f32 %v3745, %v3624
        %v3749 = vmul.f32 %v3745, %v3625
        %v3750 = vmul.f32 %v3745, %v3626
        %v3751 = vmul.f32 %v3745, %v3627
        %v3752 = vmul.f32 %v3745, %v3628
        %v3753 = vmul.f32 %v3745, %v3629
        %v3754 = vmul.f32 %v3746, %v3734
        %v3755 = vmul.f32 %v3747, %v3735
        %v3756 = vmul.f32 %v3748, %v3736
        %v3757 = vmul.f32 %v3749, %v3737
        %v3758 = vmul.f32 %v3750, %v3738
        %v3759 = vmul.f32 %v3751, %v3739
        %v3760 = vmul.f32 %v3752, %v3740
        %v3761 = vmul.f32 %v3753, %v3741
        %v3762 = vlaneseq
        %v3763 = vshrl.u32 %v3762, 7
        %v3764 = vsub.s32 0, %v3763
        %v3765 = vrot.slane %v3589, %v3764
        %v3766 = vadd.f32 %v3754, %v3765
        %v3767 = vadd.f32 %v3755, %v3765
        %v3768 = vadd.f32 %v3756, %v3765
        %v3769 = vadd.f32 %v3757, %v3765
        %v3770 = vadd.f32 %v3758, %v3765
        %v3771 = vadd.f32 %v3759, %v3765
        %v3772 = vadd.f32 %v3760, %v3765
        %v3773 = vadd.f32 %v3761, %v3765
        %v3775 = vcombine.high %v3766, %v3766
        %v3777 = vunpack.c.l.s4 1966171168
        %v3778 = vunpack.c.0.s8 %v3777
        %v3779 = vlaneseq
        %v3780 = vshrl.u32 %v3779, 7
        %v3781 = vsub.s32 %v3778, %v3780
        %v3782 = vrot.slane %v3766, %v3781
        %v3784 = vunpack.c.l.s4 1966171168
        %v3785 = vunpack.c.0.s8 %v3784
        %v3786 = vlaneseq
        %v3787 = vshrl.u32 %v3786, 7
        %v3788 = vsub.s32 %v3785, %v3787
        %v3789 = vrot.slane %v3775, %v3788
        %v3790 = vcombine.high %v3782, %v3782
        %v3791 = vcombine.high %v3789, %v3789
        %v3793 = vunpack.c.l.s4 1966171168
        %v3794 = vunpack.c.0.s8 %v3793
        %v3795 = vlaneseq
        %v3796 = vshrl.u32 %v3795, 7
        %v3797 = vsub.s32 %v3794, %v3796
        %v3798 = vrot.slane %v3782, %v3797
        %v3800 = vunpack.c.l.s4 1966171168
        %v3801 = vunpack.c.0.s8 %v3800
        %v3802 = vlaneseq
        %v3803 = vshrl.u32 %v3802, 7
        %v3804 = vsub.s32 %v3801, %v3803
        %v3805 = vrot.slane %v3789, %v3804
        %v3807 = vunpack.c.l.s4 1966171168
        %v3808 = vunpack.c.0.s8 %v3807
        %v3809 = vlaneseq
        %v3810 = vshrl.u32 %v3809, 7
        %v3811 = vsub.s32 %v3808, %v3810
        %v3812 = vrot.slane %v3790, %v3811
        %v3814 = vunpack.c.l.s4 1966171168
        %v3815 = vunpack.c.0.s8 %v3814
        %v3816 = vlaneseq
        %v3817 = vshrl.u32 %v3816, 7
        %v3818 = vsub.s32 %v3815, %v3817
        %v3819 = vrot.slane %v3791, %v3818
        %v3820 = vcombine.high %v3798, %v3798
        %v3821 = vcombine.high %v3805, %v3805
        %v3822 = vcombine.high %v3812, %v3812
        %v3823 = vcombine.high %v3819, %v3819
        %vm3832 = vcmask 253952
        %3833 = vst.msk [vmem:[%s504] sm:$0x1] %vm3832, %v3798
        %3834 = vst.msk [vmem:[%s504 + $0x8] sm:$0x1] %vm3832, %v3812
        %3835 = vst.msk [vmem:[%s504 + $0x10] sm:$0x1] %vm3832, %v3820
        %3836 = vst.msk [vmem:[%s504 + $0x18] sm:$0x1] %vm3832, %v3822
        %3837 = vst.msk [vmem:[%s504 + $0x20] sm:$0x1] %vm3832, %v3805
        %3838 = vst.msk [vmem:[%s504 + $0x28] sm:$0x1] %vm3832, %v3819
        %3839 = vst.msk [vmem:[%s504 + $0x30] sm:$0x1] %vm3832, %v3821
        %3840 = vst.msk [vmem:[%s504 + $0x38] sm:$0x1] %vm3832, %v3823
        %v3842 = vcombine.high %v3767, %v3767
        %v3844 = vunpack.c.l.s4 1966171168
        %v3845 = vunpack.c.0.s8 %v3844
        %v3846 = vlaneseq
        %v3847 = vshrl.u32 %v3846, 7
        %v3848 = vsub.s32 %v3845, %v3847
        %v3849 = vrot.slane %v3767, %v3848
        %v3851 = vunpack.c.l.s4 1966171168
        %v3852 = vunpack.c.0.s8 %v3851
        %v3853 = vlaneseq
        %v3854 = vshrl.u32 %v3853, 7
        %v3855 = vsub.s32 %v3852, %v3854
        %v3856 = vrot.slane %v3842, %v3855
        %v3857 = vcombine.high %v3849, %v3849
        %v3858 = vcombine.high %v3856, %v3856
        %v3860 = vunpack.c.l.s4 1966171168
        %v3861 = vunpack.c.0.s8 %v3860
        %v3862 = vlaneseq
        %v3863 = vshrl.u32 %v3862, 7
        %v3864 = vsub.s32 %v3861, %v3863
        %v3865 = vrot.slane %v3849, %v3864
        %v3867 = vunpack.c.l.s4 1966171168
        %v3868 = vunpack.c.0.s8 %v3867
        %v3869 = vlaneseq
        %v3870 = vshrl.u32 %v3869, 7
        %v3871 = vsub.s32 %v3868, %v3870
        %v3872 = vrot.slane %v3856, %v3871
        %v3874 = vunpack.c.l.s4 1966171168
        %v3875 = vunpack.c.0.s8 %v3874
        %v3876 = vlaneseq
        %v3877 = vshrl.u32 %v3876, 7
        %v3878 = vsub.s32 %v3875, %v3877
        %v3879 = vrot.slane %v3857, %v3878
        %v3881 = vunpack.c.l.s4 1966171168
        %v3882 = vunpack.c.0.s8 %v3881
        %v3883 = vlaneseq
        %v3884 = vshrl.u32 %v3883, 7
        %v3885 = vsub.s32 %v3882, %v3884
        %v3886 = vrot.slane %v3858, %v3885
        %v3887 = vcombine.high %v3865, %v3865
        %v3888 = vcombine.high %v3872, %v3872
        %v3889 = vcombine.high %v3879, %v3879
        %v3890 = vcombine.high %v3886, %v3886
        %3899 = vst.msk [vmem:[%s504 + $0x1] sm:$0x1] %vm3832, %v3865
        %3900 = vst.msk [vmem:[%s504 + $0x9] sm:$0x1] %vm3832, %v3879
        %3901 = vst.msk [vmem:[%s504 + $0x11] sm:$0x1] %vm3832, %v3887
        %3902 = vst.msk [vmem:[%s504 + $0x19] sm:$0x1] %vm3832, %v3889
        %3903 = vst.msk [vmem:[%s504 + $0x21] sm:$0x1] %vm3832, %v3872
        %3904 = vst.msk [vmem:[%s504 + $0x29] sm:$0x1] %vm3832, %v3886
        %3905 = vst.msk [vmem:[%s504 + $0x31] sm:$0x1] %vm3832, %v3888
        %3906 = vst.msk [vmem:[%s504 + $0x39] sm:$0x1] %vm3832, %v3890
        %v3908 = vcombine.high %v3768, %v3768
        %v3910 = vunpack.c.l.s4 1966171168
        %v3911 = vunpack.c.0.s8 %v3910
        %v3912 = vlaneseq
        %v3913 = vshrl.u32 %v3912, 7
        %v3914 = vsub.s32 %v3911, %v3913
        %v3915 = vrot.slane %v3768, %v3914
        %v3917 = vunpack.c.l.s4 1966171168
        %v3918 = vunpack.c.0.s8 %v3917
        %v3919 = vlaneseq
        %v3920 = vshrl.u32 %v3919, 7
        %v3921 = vsub.s32 %v3918, %v3920
        %v3922 = vrot.slane %v3908, %v3921
        %v3923 = vcombine.high %v3915, %v3915
        %v3924 = vcombine.high %v3922, %v3922
        %v3926 = vunpack.c.l.s4 1966171168
        %v3927 = vunpack.c.0.s8 %v3926
        %v3928 = vlaneseq
        %v3929 = vshrl.u32 %v3928, 7
        %v3930 = vsub.s32 %v3927, %v3929
        %v3931 = vrot.slane %v3915, %v3930
        %v3933 = vunpack.c.l.s4 1966171168
        %v3934 = vunpack.c.0.s8 %v3933
        %v3935 = vlaneseq
        %v3936 = vshrl.u32 %v3935, 7
        %v3937 = vsub.s32 %v3934, %v3936
        %v3938 = vrot.slane %v3922, %v3937
        %v3940 = vunpack.c.l.s4 1966171168
        %v3941 = vunpack.c.0.s8 %v3940
        %v3942 = vlaneseq
        %v3943 = vshrl.u32 %v3942, 7
        %v3944 = vsub.s32 %v3941, %v3943
        %v3945 = vrot.slane %v3923, %v3944
        %v3947 = vunpack.c.l.s4 1966171168
        %v3948 = vunpack.c.0.s8 %v3947
        %v3949 = vlaneseq
        %v3950 = vshrl.u32 %v3949, 7
        %v3951 = vsub.s32 %v3948, %v3950
        %v3952 = vrot.slane %v3924, %v3951
        %v3953 = vcombine.high %v3931, %v3931
        %v3954 = vcombine.high %v3938, %v3938
        %v3955 = vcombine.high %v3945, %v3945
        %v3956 = vcombine.high %v3952, %v3952
        %3965 = vst.msk [vmem:[%s504 + $0x2] sm:$0x1] %vm3832, %v3931
        %3966 = vst.msk [vmem:[%s504 + $0xa] sm:$0x1] %vm3832, %v3945
        %3967 = vst.msk [vmem:[%s504 + $0x12] sm:$0x1] %vm3832, %v3953
        %3968 = vst.msk [vmem:[%s504 + $0x1a] sm:$0x1] %vm3832, %v3955
        %3969 = vst.msk [vmem:[%s504 + $0x22] sm:$0x1] %vm3832, %v3938
        %3970 = vst.msk [vmem:[%s504 + $0x2a] sm:$0x1] %vm3832, %v3952
        %3971 = vst.msk [vmem:[%s504 + $0x32] sm:$0x1] %vm3832, %v3954
        %3972 = vst.msk [vmem:[%s504 + $0x3a] sm:$0x1] %vm3832, %v3956
        %v3974 = vcombine.high %v3769, %v3769
        %v3976 = vunpack.c.l.s4 1966171168
        %v3977 = vunpack.c.0.s8 %v3976
        %v3978 = vlaneseq
        %v3979 = vshrl.u32 %v3978, 7
        %v3980 = vsub.s32 %v3977, %v3979
        %v3981 = vrot.slane %v3769, %v3980
        %v3983 = vunpack.c.l.s4 1966171168
        %v3984 = vunpack.c.0.s8 %v3983
        %v3985 = vlaneseq
        %v3986 = vshrl.u32 %v3985, 7
        %v3987 = vsub.s32 %v3984, %v3986
        %v3988 = vrot.slane %v3974, %v3987
        %v3989 = vcombine.high %v3981, %v3981
        %v3990 = vcombine.high %v3988, %v3988
        %v3992 = vunpack.c.l.s4 1966171168
        %v3993 = vunpack.c.0.s8 %v3992
        %v3994 = vlaneseq
        %v3995 = vshrl.u32 %v3994, 7
        %v3996 = vsub.s32 %v3993, %v3995
        %v3997 = vrot.slane %v3981, %v3996
        %v3999 = vunpack.c.l.s4 1966171168
        %v4000 = vunpack.c.0.s8 %v3999
        %v4001 = vlaneseq
        %v4002 = vshrl.u32 %v4001, 7
        %v4003 = vsub.s32 %v4000, %v4002
        %v4004 = vrot.slane %v3988, %v4003
        %v4006 = vunpack.c.l.s4 1966171168
        %v4007 = vunpack.c.0.s8 %v4006
        %v4008 = vlaneseq
        %v4009 = vshrl.u32 %v4008, 7
        %v4010 = vsub.s32 %v4007, %v4009
        %v4011 = vrot.slane %v3989, %v4010
        %v4013 = vunpack.c.l.s4 1966171168
        %v4014 = vunpack.c.0.s8 %v4013
        %v4015 = vlaneseq
        %v4016 = vshrl.u32 %v4015, 7
        %v4017 = vsub.s32 %v4014, %v4016
        %v4018 = vrot.slane %v3990, %v4017
        %v4019 = vcombine.high %v3997, %v3997
        %v4020 = vcombine.high %v4004, %v4004
        %v4021 = vcombine.high %v4011, %v4011
        %v4022 = vcombine.high %v4018, %v4018
        %4031 = vst.msk [vmem:[%s504 + $0x3] sm:$0x1] %vm3832, %v3997
        %4032 = vst.msk [vmem:[%s504 + $0xb] sm:$0x1] %vm3832, %v4011
        %4033 = vst.msk [vmem:[%s504 + $0x13] sm:$0x1] %vm3832, %v4019
        %4034 = vst.msk [vmem:[%s504 + $0x1b] sm:$0x1] %vm3832, %v4021
        %4035 = vst.msk [vmem:[%s504 + $0x23] sm:$0x1] %vm3832, %v4004
        %4036 = vst.msk [vmem:[%s504 + $0x2b] sm:$0x1] %vm3832, %v4018
        %4037 = vst.msk [vmem:[%s504 + $0x33] sm:$0x1] %vm3832, %v4020
        %4038 = vst.msk [vmem:[%s504 + $0x3b] sm:$0x1] %vm3832, %v4022
        %v4040 = vcombine.high %v3770, %v3770
        %v4042 = vunpack.c.l.s4 1966171168
        %v4043 = vunpack.c.0.s8 %v4042
        %v4044 = vlaneseq
        %v4045 = vshrl.u32 %v4044, 7
        %v4046 = vsub.s32 %v4043, %v4045
        %v4047 = vrot.slane %v3770, %v4046
        %v4049 = vunpack.c.l.s4 1966171168
        %v4050 = vunpack.c.0.s8 %v4049
        %v4051 = vlaneseq
        %v4052 = vshrl.u32 %v4051, 7
        %v4053 = vsub.s32 %v4050, %v4052
        %v4054 = vrot.slane %v4040, %v4053
        %v4055 = vcombine.high %v4047, %v4047
        %v4056 = vcombine.high %v4054, %v4054
        %v4058 = vunpack.c.l.s4 1966171168
        %v4059 = vunpack.c.0.s8 %v4058
        %v4060 = vlaneseq
        %v4061 = vshrl.u32 %v4060, 7
        %v4062 = vsub.s32 %v4059, %v4061
        %v4063 = vrot.slane %v4047, %v4062
        %v4065 = vunpack.c.l.s4 1966171168
        %v4066 = vunpack.c.0.s8 %v4065
        %v4067 = vlaneseq
        %v4068 = vshrl.u32 %v4067, 7
        %v4069 = vsub.s32 %v4066, %v4068
        %v4070 = vrot.slane %v4054, %v4069
        %v4072 = vunpack.c.l.s4 1966171168
        %v4073 = vunpack.c.0.s8 %v4072
        %v4074 = vlaneseq
        %v4075 = vshrl.u32 %v4074, 7
        %v4076 = vsub.s32 %v4073, %v4075
        %v4077 = vrot.slane %v4055, %v4076
        %v4079 = vunpack.c.l.s4 1966171168
        %v4080 = vunpack.c.0.s8 %v4079
        %v4081 = vlaneseq
        %v4082 = vshrl.u32 %v4081, 7
        %v4083 = vsub.s32 %v4080, %v4082
        %v4084 = vrot.slane %v4056, %v4083
        %v4085 = vcombine.high %v4063, %v4063
        %v4086 = vcombine.high %v4070, %v4070
        %v4087 = vcombine.high %v4077, %v4077
        %v4088 = vcombine.high %v4084, %v4084
        %4097 = vst.msk [vmem:[%s504 + $0x4] sm:$0x1] %vm3832, %v4063
        %4098 = vst.msk [vmem:[%s504 + $0xc] sm:$0x1] %vm3832, %v4077
        %4099 = vst.msk [vmem:[%s504 + $0x14] sm:$0x1] %vm3832, %v4085
        %4100 = vst.msk [vmem:[%s504 + $0x1c] sm:$0x1] %vm3832, %v4087
        %4101 = vst.msk [vmem:[%s504 + $0x24] sm:$0x1] %vm3832, %v4070
        %4102 = vst.msk [vmem:[%s504 + $0x2c] sm:$0x1] %vm3832, %v4084
        %4103 = vst.msk [vmem:[%s504 + $0x34] sm:$0x1] %vm3832, %v4086
        %4104 = vst.msk [vmem:[%s504 + $0x3c] sm:$0x1] %vm3832, %v4088
        %v4106 = vcombine.high %v3771, %v3771
        %v4108 = vunpack.c.l.s4 1966171168
        %v4109 = vunpack.c.0.s8 %v4108
        %v4110 = vlaneseq
        %v4111 = vshrl.u32 %v4110, 7
        %v4112 = vsub.s32 %v4109, %v4111
        %v4113 = vrot.slane %v3771, %v4112
        %v4115 = vunpack.c.l.s4 1966171168
        %v4116 = vunpack.c.0.s8 %v4115
        %v4117 = vlaneseq
        %v4118 = vshrl.u32 %v4117, 7
        %v4119 = vsub.s32 %v4116, %v4118
        %v4120 = vrot.slane %v4106, %v4119
        %v4121 = vcombine.high %v4113, %v4113
        %v4122 = vcombine.high %v4120, %v4120
        %v4124 = vunpack.c.l.s4 1966171168
        %v4125 = vunpack.c.0.s8 %v4124
        %v4126 = vlaneseq
        %v4127 = vshrl.u32 %v4126, 7
        %v4128 = vsub.s32 %v4125, %v4127
        %v4129 = vrot.slane %v4113, %v4128
        %v4131 = vunpack.c.l.s4 1966171168
        %v4132 = vunpack.c.0.s8 %v4131
        %v4133 = vlaneseq
        %v4134 = vshrl.u32 %v4133, 7
        %v4135 = vsub.s32 %v4132, %v4134
        %v4136 = vrot.slane %v4120, %v4135
        %v4138 = vunpack.c.l.s4 1966171168
        %v4139 = vunpack.c.0.s8 %v4138
        %v4140 = vlaneseq
        %v4141 = vshrl.u32 %v4140, 7
        %v4142 = vsub.s32 %v4139, %v4141
        %v4143 = vrot.slane %v4121, %v4142
        %v4145 = vunpack.c.l.s4 1966171168
        %v4146 = vunpack.c.0.s8 %v4145
        %v4147 = vlaneseq
        %v4148 = vshrl.u32 %v4147, 7
        %v4149 = vsub.s32 %v4146, %v4148
        %v4150 = vrot.slane %v4122, %v4149
        %v4151 = vcombine.high %v4129, %v4129
        %v4152 = vcombine.high %v4136, %v4136
        %v4153 = vcombine.high %v4143, %v4143
        %v4154 = vcombine.high %v4150, %v4150
        %4163 = vst.msk [vmem:[%s504 + $0x5] sm:$0x1] %vm3832, %v4129
        %4164 = vst.msk [vmem:[%s504 + $0xd] sm:$0x1] %vm3832, %v4143
        %4165 = vst.msk [vmem:[%s504 + $0x15] sm:$0x1] %vm3832, %v4151
        %4166 = vst.msk [vmem:[%s504 + $0x1d] sm:$0x1] %vm3832, %v4153
        %4167 = vst.msk [vmem:[%s504 + $0x25] sm:$0x1] %vm3832, %v4136
        %4168 = vst.msk [vmem:[%s504 + $0x2d] sm:$0x1] %vm3832, %v4150
        %4169 = vst.msk [vmem:[%s504 + $0x35] sm:$0x1] %vm3832, %v4152
        %4170 = vst.msk [vmem:[%s504 + $0x3d] sm:$0x1] %vm3832, %v4154
        %v4172 = vcombine.high %v3772, %v3772
        %v4174 = vunpack.c.l.s4 1966171168
        %v4175 = vunpack.c.0.s8 %v4174
        %v4176 = vlaneseq
        %v4177 = vshrl.u32 %v4176, 7
        %v4178 = vsub.s32 %v4175, %v4177
        %v4179 = vrot.slane %v3772, %v4178
        %v4181 = vunpack.c.l.s4 1966171168
        %v4182 = vunpack.c.0.s8 %v4181
        %v4183 = vlaneseq
        %v4184 = vshrl.u32 %v4183, 7
        %v4185 = vsub.s32 %v4182, %v4184
        %v4186 = vrot.slane %v4172, %v4185
        %v4187 = vcombine.high %v4179, %v4179
        %v4188 = vcombine.high %v4186, %v4186
        %v4190 = vunpack.c.l.s4 1966171168
        %v4191 = vunpack.c.0.s8 %v4190
        %v4192 = vlaneseq
        %v4193 = vshrl.u32 %v4192, 7
        %v4194 = vsub.s32 %v4191, %v4193
        %v4195 = vrot.slane %v4179, %v4194
        %v4197 = vunpack.c.l.s4 1966171168
        %v4198 = vunpack.c.0.s8 %v4197
        %v4199 = vlaneseq
        %v4200 = vshrl.u32 %v4199, 7
        %v4201 = vsub.s32 %v4198, %v4200
        %v4202 = vrot.slane %v4186, %v4201
        %v4204 = vunpack.c.l.s4 1966171168
        %v4205 = vunpack.c.0.s8 %v4204
        %v4206 = vlaneseq
        %v4207 = vshrl.u32 %v4206, 7
        %v4208 = vsub.s32 %v4205, %v4207
        %v4209 = vrot.slane %v4187, %v4208
        %v4211 = vunpack.c.l.s4 1966171168
        %v4212 = vunpack.c.0.s8 %v4211
        %v4213 = vlaneseq
        %v4214 = vshrl.u32 %v4213, 7
        %v4215 = vsub.s32 %v4212, %v4214
        %v4216 = vrot.slane %v4188, %v4215
        %v4217 = vcombine.high %v4195, %v4195
        %v4218 = vcombine.high %v4202, %v4202
        %v4219 = vcombine.high %v4209, %v4209
        %v4220 = vcombine.high %v4216, %v4216
        %4229 = vst.msk [vmem:[%s504 + $0x6] sm:$0x1] %vm3832, %v4195
        %4230 = vst.msk [vmem:[%s504 + $0xe] sm:$0x1] %vm3832, %v4209
        %4231 = vst.msk [vmem:[%s504 + $0x16] sm:$0x1] %vm3832, %v4217
        %4232 = vst.msk [vmem:[%s504 + $0x1e] sm:$0x1] %vm3832, %v4219
        %4233 = vst.msk [vmem:[%s504 + $0x26] sm:$0x1] %vm3832, %v4202
        %4234 = vst.msk [vmem:[%s504 + $0x2e] sm:$0x1] %vm3832, %v4216
        %4235 = vst.msk [vmem:[%s504 + $0x36] sm:$0x1] %vm3832, %v4218
        %4236 = vst.msk [vmem:[%s504 + $0x3e] sm:$0x1] %vm3832, %v4220
        %v4238 = vcombine.high %v3773, %v3773
        %v4240 = vunpack.c.l.s4 1966171168
        %v4241 = vunpack.c.0.s8 %v4240
        %v4242 = vlaneseq
        %v4243 = vshrl.u32 %v4242, 7
        %v4244 = vsub.s32 %v4241, %v4243
        %v4245 = vrot.slane %v3773, %v4244
        %v4247 = vunpack.c.l.s4 1966171168
        %v4248 = vunpack.c.0.s8 %v4247
        %v4249 = vlaneseq
        %v4250 = vshrl.u32 %v4249, 7
        %v4251 = vsub.s32 %v4248, %v4250
        %v4252 = vrot.slane %v4238, %v4251
        %v4253 = vcombine.high %v4245, %v4245
        %v4254 = vcombine.high %v4252, %v4252
        %v4256 = vunpack.c.l.s4 1966171168
        %v4257 = vunpack.c.0.s8 %v4256
        %v4258 = vlaneseq
        %v4259 = vshrl.u32 %v4258, 7
        %v4260 = vsub.s32 %v4257, %v4259
        %v4261 = vrot.slane %v4245, %v4260
        %v4263 = vunpack.c.l.s4 1966171168
        %v4264 = vunpack.c.0.s8 %v4263
        %v4265 = vlaneseq
        %v4266 = vshrl.u32 %v4265, 7
        %v4267 = vsub.s32 %v4264, %v4266
        %v4268 = vrot.slane %v4252, %v4267
        %v4270 = vunpack.c.l.s4 1966171168
        %v4271 = vunpack.c.0.s8 %v4270
        %v4272 = vlaneseq
        %v4273 = vshrl.u32 %v4272, 7
        %v4274 = vsub.s32 %v4271, %v4273
        %v4275 = vrot.slane %v4253, %v4274
        %v4277 = vunpack.c.l.s4 1966171168
        %v4278 = vunpack.c.0.s8 %v4277
        %v4279 = vlaneseq
        %v4280 = vshrl.u32 %v4279, 7
        %v4281 = vsub.s32 %v4278, %v4280
        %v4282 = vrot.slane %v4254, %v4281
        %v4283 = vcombine.high %v4261, %v4261
        %v4284 = vcombine.high %v4268, %v4268
        %v4285 = vcombine.high %v4275, %v4275
        %v4286 = vcombine.high %v4282, %v4282
        %4295 = vst.msk [vmem:[%s504 + $0x7] sm:$0x1] %vm3832, %v4261
        %4296 = vst.msk [vmem:[%s504 + $0xf] sm:$0x1] %vm3832, %v4275
        %4297 = vst.msk [vmem:[%s504 + $0x17] sm:$0x1] %vm3832, %v4283
        %4298 = vst.msk [vmem:[%s504 + $0x1f] sm:$0x1] %vm3832, %v4285
        %4299 = vst.msk [vmem:[%s504 + $0x27] sm:$0x1] %vm3832, %v4268
        %4300 = vst.msk [vmem:[%s504 + $0x2f] sm:$0x1] %vm3832, %v4282
        %4301 = vst.msk [vmem:[%s504 + $0x37] sm:$0x1] %vm3832, %v4284
        %4302 = vst.msk [vmem:[%s504 + $0x3f] sm:$0x1] %vm3832, %v4286
        %s4303 = sand.u32 %s301, 1
        %s4304 = scalar_lea.sflag [#allocation6], %s4303
        %s4305 = sand.u32 %s301, 1
        %s4306 = smul.addr %s4305, 64
        %s4307 = scalar_lea.vmem [#allocation13], %s4306
        // Predicated region
        $region89: #{tpu_custom_call.1} parent=67 // pred_check
          %p4308 = pneg %p311
        $region90: #{tpu_custom_call.1} parent=67 // pred_check_branch
          %4310 = sbr.rel (%p4308) target = $region92
        $region91: #{tpu_custom_call.1} parent=67 // pred_region
          %s4312 = ssub.s32 1024, 1024
          %4313 = vsyncadd %s4304, %s4312
          %s4314 = smul.addr %s31, 8
          %s4315 = smul.addr %s4314, 128
          %s4316 = scalar_lea.hbm %s12, %s4315
          %s4317 = sshll.u32 %s4307, 4
          %s4318 = int_to_ptr.vmem [resolvable:$true] %s4317
          %4323 = dma.vmem_to_hbm [thread:$0]  %s4318, 1024, %s4316, %s4304, 128, 128, 8
        $region92: #{tpu_custom_call.1} parent=67 // pred_fallthru
          _
      $region68: #{tpu_custom_call.1} parent=5 // pred_fallthru
        _
      %p4324 = scmp.le.s32.totalorder 2, %s26
      // Predicated region
      $region93: #{tpu_custom_call.1} parent=5 // pred_check
        %p4325 = pneg %p4324
      $region94: #{tpu_custom_call.1} parent=5 // pred_check_branch
        %4327 = sbr.rel (%p4325) target = $region96
      $region95: #{tpu_custom_call.1} parent=5 // pred_region
        %s4328 = ssub.s32 %s26, 2
        // Predicated region
        $region97: #{tpu_custom_call.1} parent=95 // pred_check
          %p4329 = pneg %p317
        $region98: #{tpu_custom_call.1} parent=95 // pred_check_branch
          %4331 = sbr.rel (%p4329) target = $region100
        $region99: #{tpu_custom_call.1} parent=95 // pred_region
          %s4332 = sand.u32 %s302, 1
          %s4333 = scalar_lea.sflag [#allocation6], %s4332
          %s4334 = sand.u32 %s302, 1
          %s4335 = smul.addr %s4334, 64
          %s4336 = scalar_lea.vmem [#allocation13], %s4335
          %4337 = dma.done %s4333, 1024
        $region100: #{tpu_custom_call.1} parent=95 // pred_fallthru
          _
      $region96: #{tpu_custom_call.1} parent=5 // pred_fallthru
        _
    $region6: #{tpu_custom_call.1} parent=1 // loop_footer
      %s30 = sadd.s32 1, %s26
    $region7: #{tpu_custom_call.1} parent=1 // loop_footer_branch
      %25 = sbr.rel target = $region3
    $region8: #{tpu_custom_call.1} parent=1 // loop_exit
      _
    %4338 = vsyncpa [#allocation5], 1
    %s4339 = scalar_lea.sflag [#allocation5], 1
    %4340 = vsyncpa %s4339, 1
    %4341 = vsyncpa [#allocation8], 1
    %4342 = vsyncpa [#allocation11], 1
    %4343 = vsyncpa [#allocation6], 1
    %s4344 = scalar_lea.sflag [#allocation6], 1
    %4345 = vsyncpa %s4344, 1

</llo_original>
